<compile_context>
chip_gen: v7x
topology: tpu7x:2x2x1
jax: 0.10.0
libtpu: 0.0.40
codegen_flags: <defaults>
</compile_context>

<pallas_src>
import jax
import jax.numpy as jnp
from jax.experimental import pallas as pl
from jax.experimental.pallas import tpu as pltpu

EMB = 32          # embedding_size
NUM_HEADS = 4     # num_heads
HEAD = EMB // NUM_HEADS
FF = 4 * EMB


def _make_kernel(B, T1, T2, E, num_heads):
    HS = E // num_heads
    # NOTE: the PyTorch Head scales scores by C ** -0.5 with C = q.shape[-1] taken
    # BEFORE projection, i.e. C = embedding_size (NOT head_size). Reproduced exactly.
    scale = E ** -0.5

    def layernorm(x, g, b, eps=1e-5):
        mu = jnp.mean(x, axis=-1, keepdims=True)
        var = jnp.mean((x - mu) ** 2, axis=-1, keepdims=True)
        return (x - mu) * jax.lax.rsqrt(var + eps) * g + b

    def softmax(s):
        m = jnp.max(s, axis=-1, keepdims=True)
        e = jnp.exp(s - m)
        # divide -> EUP reciprocal + VPU multiply (keeps the VALU slot free)
        return e * pl.reciprocal(jnp.sum(e, axis=-1, keepdims=True), approx=True)

    def attend(Q, K, V, wp, bp, Tq, Tk):
        # Q: (B*Tq, E); K, V: (B*Tk, E).
        # Per-head work uses B-batched dot_generals (one per head, statically
        # unrolled); head outputs fold straight into the output projection, so
        # there is no jnp.concatenate and no lane-offset scratch writes.
        Q3 = (Q * scale).reshape(B, Tq, E)          # pre-scale once
        K3 = K.reshape(B, Tk, E)
        V3 = V.reshape(B, Tk, E)
        parts = []
        for h in range(num_heads):
            lo, hi = h * HS, (h + 1) * HS
            s = jnp.einsum('bqd,bkd->bqk', Q3[:, :, lo:hi], K3[:, :, lo:hi],
                           preferred_element_type=jnp.float32)
            p = softmax(s)
            o = jnp.einsum('bqk,bkd->bqd', p, V3[:, :, lo:hi],
                           preferred_element_type=jnp.float32)        # (B, Tq, HS)
            # concat_h(O_h) @ Wp == sum_h O_h @ Wp[h*HS:(h+1)*HS, :]  (sublane slice)
            parts.append(jnp.dot(o.reshape(B * Tq, HS), wp[lo:hi, :],
                                 preferred_element_type=jnp.float32))
        return sum(parts) + bp                                        # (B*Tq, E)

    def kernel(x_ref, y_ref,
               wqkv_s_ref, wp_s_ref, wq_c_ref, wkv_c_ref, wp_c_ref,
               wf1_ref, wf2_ref, vecs_ref, out_ref):
        x = x_ref[...]          # (B*T1, E) decoder tokens (flattened)
        y = y_ref[...]          # (B*T2, E) encoder memory (flattened)
        vecs = vecs_ref[...]    # (13, 4E) packed bias / LayerNorm slab

        b_qkv_s = vecs[0:1, 0:3 * E]
        b_p_s = vecs[1:2, 0:E]
        b_q_c = vecs[2:3, 0:E]
        b_kv_c = vecs[3:4, 0:2 * E]
        b_p_c = vecs[4:5, 0:E]
        g1, be1 = vecs[5:6, 0:E], vecs[6:7, 0:E]
        g2, be2 = vecs[7:8, 0:E], vecs[8:9, 0:E]
        b_f1 = vecs[9:10, 0:4 * E]
        b_f2 = vecs[10:11, 0:E]
        g3, be3 = vecs[11:12, 0:E], vecs[12:13, 0:E]

        # --- self-attention (single fused (E,3E) QKV matmul) + residual + ln1 ---
        qkv = jnp.dot(x, wqkv_s_ref[...], preferred_element_type=jnp.float32) + b_qkv_s
        sa = attend(qkv[:, 0:E], qkv[:, E:2 * E], qkv[:, 2 * E:3 * E],
                    wp_s_ref[...], b_p_s, T1, T1)
        x1 = layernorm(sa + x, g1, be1)

        # --- cross-attention (q from x1, fused (E,2E) KV from encoder) + residual + ln2 ---
        q_c = jnp.dot(x1, wq_c_ref[...], preferred_element_type=jnp.float32) + b_q_c
        kv = jnp.dot(y, wkv_c_ref[...], preferred_element_type=jnp.float32) + b_kv_c
        ca = attend(q_c, kv[:, 0:E], kv[:, E:2 * E],
                    wp_c_ref[...], b_p_c, T1, T2)
        x2 = layernorm(ca + x1, g2, be2)

        # --- feed-forward + residual + ln3 ---
        hdn = jnp.maximum(
            jnp.dot(x2, wf1_ref[...], preferred_element_type=jnp.float32) + b_f1, 0.0)
        ff = jnp.dot(hdn, wf2_ref[...], preferred_element_type=jnp.float32) + b_f2
        out_ref[...] = layernorm(ff + x2, g3, be3)
        # TODO(synk): nn.Dropout layers are identity in eval mode; attention masks
        # default to None in the reference forward, so no masking is applied here.

    return kernel


def transformer_block(first_inp, second_inp, params):
    B, T1, E = first_inp.shape
    _, T2, _ = second_inp.shape
    xf = first_inp.reshape(B * T1, E)
    yf = second_inp.reshape(B * T2, E)

    kernel = _make_kernel(B, T1, T2, E, NUM_HEADS)

    # No grid: every operand is small enough to live whole in VMEM; default
    # BlockSpecs map each array fully (no per-step pipeline overhead).
    out = pl.pallas_call(
        kernel,
        out_shape=jax.ShapeDtypeStruct((B * T1, E), jnp.float32),
    )(xf, yf, *params)
    return out.reshape(B, T1, E)


def init_params(key, E):
    keys = iter(jax.random.split(key, 16))
    Fh = 4 * E

    def w(shape, scale=0.02):
        return scale * jax.random.normal(next(keys), shape, jnp.float32)

    def pad(v):
        return jnp.pad(v, (0, Fh - v.shape[0]))

    # self-attention: fused [Wq | Wk | Wv] and proj
    w_qkv_s = w((E, 3 * E))
    w_p_s = w((E, E))
    # cross-attention: Wq (decoder stream), fused [Wk | Wv] (encoder stream), proj
    w_q_c = w((E, E))
    w_kv_c = w((E, 2 * E))
    w_p_c = w((E, E))
    # feed-forward
    w_f1 = w((E, Fh))
    w_f2 = w((Fh, E))

    # packed bias / LayerNorm slab (13 rows, padded to 4E = 128 lanes)
    rows = [
        pad(w((3 * E,))),                    # 0:  b_qkv (self)
        pad(w((E,))),                        # 1:  b_proj (self)
        pad(w((E,))),                        # 2:  b_q (cross)
        pad(w((2 * E,))),                    # 3:  b_kv (cross)
        pad(w((E,))),                        # 4:  b_proj (cross)
        pad(jnp.ones((E,), jnp.float32)),    # 5:  ln1 gamma
        pad(jnp.zeros((E,), jnp.float32)),   # 6:  ln1 beta
        pad(jnp.ones((E,), jnp.float32)),    # 7:  ln2 gamma
        pad(jnp.zeros((E,), jnp.float32)),   # 8:  ln2 beta
        w((Fh,)),                            # 9:  b_ff1
        pad(w((E,))),                        # 10: b_ff2
        pad(jnp.ones((E,), jnp.float32)),    # 11: ln3 gamma
        pad(jnp.zeros((E,), jnp.float32)),   # 12: ln3 beta
    ]
    vecs = jnp.stack(rows, axis=0)

    return [w_qkv_s, w_p_s, w_q_c, w_kv_c, w_p_c, w_f1, w_f2, vecs]


if __name__ == "__main__":
    key = jax.random.PRNGKey(0)
    kp, k1, k2 = jax.random.split(key, 3)
    B, T1, T2 = 2, 8, 8
    first_inp = jax.random.normal(k1, (B, T1, EMB), jnp.float32)   # decoder tokens
    second_inp = jax.random.normal(k2, (B, T2, EMB), jnp.float32)  # encoder memory
    params = init_params(kp, EMB)

    out = transformer_block(first_inp, second_inp, params)
    jax.block_until_ready(out)
    assert out.shape == (B, T1, EMB)
    print("KERNEL_OK")
</pallas_src>

<mosaic_0001>
module attributes {stable_mosaic.version = 11 : i64} {
  func.func @kernel(%arg0: memref<16x32xf32, #tpu.memory_space<vmem>>, %arg1: memref<16x32xf32, #tpu.memory_space<vmem>>, %arg2: memref<32x96xf32, #tpu.memory_space<vmem>>, %arg3: memref<32x32xf32, #tpu.memory_space<vmem>>, %arg4: memref<32x32xf32, #tpu.memory_space<vmem>>, %arg5: memref<32x64xf32, #tpu.memory_space<vmem>>, %arg6: memref<32x32xf32, #tpu.memory_space<vmem>>, %arg7: memref<32x128xf32, #tpu.memory_space<vmem>>, %arg8: memref<128x32xf32, #tpu.memory_space<vmem>>, %arg9: memref<13x128xf32, #tpu.memory_space<vmem>>, %arg10: memref<16x32xf32, #tpu.memory_space<vmem>>) attributes {dimension_semantics = [], scalar_prefetch = 0 : i64, scratch_operands = 0 : i64, tpu.core_type = #tpu.core_type<tc>} {
    %c0 = arith.constant 0 : index
    %c0_0 = arith.constant 0 : index
    %0 = vector.load %arg0[%c0, %c0_0] : memref<16x32xf32, #tpu.memory_space<vmem>>, vector<16x32xf32>
    %c0_1 = arith.constant 0 : index
    %c0_2 = arith.constant 0 : index
    %1 = vector.load %arg1[%c0_1, %c0_2] : memref<16x32xf32, #tpu.memory_space<vmem>>, vector<16x32xf32>
    %c0_3 = arith.constant 0 : index
    %c0_4 = arith.constant 0 : index
    %2 = vector.load %arg9[%c0_3, %c0_4] : memref<13x128xf32, #tpu.memory_space<vmem>>, vector<13x128xf32>
    %3 = vector.extract_strided_slice %2 {offsets = [0, 0], sizes = [1, 96], strides = [1, 1]} : vector<13x128xf32> to vector<1x96xf32>
    %4 = vector.extract_strided_slice %2 {offsets = [1, 0], sizes = [1, 32], strides = [1, 1]} : vector<13x128xf32> to vector<1x32xf32>
    %5 = vector.extract_strided_slice %2 {offsets = [2, 0], sizes = [1, 32], strides = [1, 1]} : vector<13x128xf32> to vector<1x32xf32>
    %6 = vector.extract_strided_slice %2 {offsets = [3, 0], sizes = [1, 64], strides = [1, 1]} : vector<13x128xf32> to vector<1x64xf32>
    %7 = vector.extract_strided_slice %2 {offsets = [4, 0], sizes = [1, 32], strides = [1, 1]} : vector<13x128xf32> to vector<1x32xf32>
    %8 = vector.extract_strided_slice %2 {offsets = [5, 0], sizes = [1, 32], strides = [1, 1]} : vector<13x128xf32> to vector<1x32xf32>
    %9 = vector.extract_strided_slice %2 {offsets = [6, 0], sizes = [1, 32], strides = [1, 1]} : vector<13x128xf32> to vector<1x32xf32>
    %10 = vector.extract_strided_slice %2 {offsets = [7, 0], sizes = [1, 32], strides = [1, 1]} : vector<13x128xf32> to vector<1x32xf32>
    %11 = vector.extract_strided_slice %2 {offsets = [8, 0], sizes = [1, 32], strides = [1, 1]} : vector<13x128xf32> to vector<1x32xf32>
    %12 = vector.extract_strided_slice %2 {offsets = [9, 0], sizes = [1, 128], strides = [1, 1]} : vector<13x128xf32> to vector<1x128xf32>
    %13 = vector.extract_strided_slice %2 {offsets = [10, 0], sizes = [1, 32], strides = [1, 1]} : vector<13x128xf32> to vector<1x32xf32>
    %14 = vector.extract_strided_slice %2 {offsets = [11, 0], sizes = [1, 32], strides = [1, 1]} : vector<13x128xf32> to vector<1x32xf32>
    %15 = vector.extract_strided_slice %2 {offsets = [12, 0], sizes = [1, 32], strides = [1, 1]} : vector<13x128xf32> to vector<1x32xf32>
    %c0_5 = arith.constant 0 : index
    %c0_6 = arith.constant 0 : index
    %16 = vector.load %arg2[%c0_5, %c0_6] : memref<32x96xf32, #tpu.memory_space<vmem>>, vector<32x96xf32>
    %cst = arith.constant dense<0.000000e+00> : vector<16x96xf32>
    %17 = tpu.matmul %0, %16, %cst {dimension_numbers = #tpu.dot_dimension_numbers<[1], [0], [0], [1], [0, 0, 1, 1], [], []>} : vector<16x32xf32>, vector<32x96xf32>, vector<16x96xf32> -> vector<16x96xf32>
    %18 = vector.broadcast %3 : vector<1x96xf32> to vector<16x96xf32>
    %19 = arith.addf %17, %18 : vector<16x96xf32>
    %20 = vector.extract_strided_slice %19 {offsets = [0, 0], sizes = [16, 32], strides = [1, 1]} : vector<16x96xf32> to vector<16x32xf32>
    %21 = vector.extract_strided_slice %19 {offsets = [0, 32], sizes = [16, 32], strides = [1, 1]} : vector<16x96xf32> to vector<16x32xf32>
    %22 = vector.extract_strided_slice %19 {offsets = [0, 64], sizes = [16, 32], strides = [1, 1]} : vector<16x96xf32> to vector<16x32xf32>
    %c0_7 = arith.constant 0 : index
    %c0_8 = arith.constant 0 : index
    %23 = vector.load %arg3[%c0_7, %c0_8] : memref<32x32xf32, #tpu.memory_space<vmem>>, vector<32x32xf32>
    %cst_9 = arith.constant 0.176776692 : f32
    %24 = vector.broadcast %cst_9 : f32 to vector<16x32xf32>
    %25 = arith.mulf %20, %24 : vector<16x32xf32>
    %26 = vector.shape_cast %25 : vector<16x32xf32> to vector<2x8x32xf32>
    %27 = vector.shape_cast %21 : vector<16x32xf32> to vector<2x8x32xf32>
    %28 = vector.shape_cast %22 : vector<16x32xf32> to vector<2x8x32xf32>
    %29 = vector.extract_strided_slice %26 {offsets = [0, 0, 0], sizes = [2, 8, 8], strides = [1, 1, 1]} : vector<2x8x32xf32> to vector<2x8x8xf32>
    %30 = vector.extract_strided_slice %27 {offsets = [0, 0, 0], sizes = [2, 8, 8], strides = [1, 1, 1]} : vector<2x8x32xf32> to vector<2x8x8xf32>
    "tpu.trace_start"() <{level = 10 : i32, message = "bqd,bkd->bqk"}> : () -> ()
    %cst_10 = arith.constant dense<0.000000e+00> : vector<2x8x8xf32>
    %31 = tpu.matmul %29, %30, %cst_10 {dimension_numbers = #tpu.dot_dimension_numbers<[2], [2], [1], [1], [0, 0, 0, 1, 1, 1], [0], [0]>} : vector<2x8x8xf32>, vector<2x8x8xf32>, vector<2x8x8xf32> -> vector<2x8x8xf32>
    "tpu.trace_stop"() : () -> ()
    %cst_11 = arith.constant dense<0xFF800000> : vector<2x8xf32>
    %32 = vector.multi_reduction <maximumf>, %31, %cst_11 [2] : vector<2x8x8xf32> to vector<2x8xf32>
    %33 = vector.shape_cast %32 : vector<2x8xf32> to vector<2x8x1xf32>
    %34 = vector.broadcast %33 : vector<2x8x1xf32> to vector<2x8x8xf32>
    %35 = arith.subf %31, %34 : vector<2x8x8xf32>
    %36 = math.exp %35 : vector<2x8x8xf32>
    %cst_12 = arith.constant dense<0.000000e+00> : vector<2x8xf32>
    %37 = vector.multi_reduction <add>, %36, %cst_12 [2] : vector<2x8x8xf32> to vector<2x8xf32>
    %38 = vector.shape_cast %37 : vector<2x8xf32> to vector<2x8x1xf32>
    %39 = tpu.reciprocal %38 {approx = true} : vector<2x8x1xf32> -> vector<2x8x1xf32>
    %40 = vector.broadcast %39 : vector<2x8x1xf32> to vector<2x8x8xf32>
    %41 = arith.mulf %36, %40 : vector<2x8x8xf32>
    %42 = vector.extract_strided_slice %28 {offsets = [0, 0, 0], sizes = [2, 8, 8], strides = [1, 1, 1]} : vector<2x8x32xf32> to vector<2x8x8xf32>
    "tpu.trace_start"() <{level = 10 : i32, message = "bqk,bkd->bqd"}> : () -> ()
    %cst_13 = arith.constant dense<0.000000e+00> : vector<2x8x8xf32>
    %43 = tpu.matmul %41, %42, %cst_13 {dimension_numbers = #tpu.dot_dimension_numbers<[2], [1], [1], [2], [0, 0, 0, 1, 1, 2], [0], [0]>} : vector<2x8x8xf32>, vector<2x8x8xf32>, vector<2x8x8xf32> -> vector<2x8x8xf32>
    "tpu.trace_stop"() : () -> ()
    %44 = vector.shape_cast %43 : vector<2x8x8xf32> to vector<16x8xf32>
    %45 = vector.extract_strided_slice %23 {offsets = [0, 0], sizes = [8, 32], strides = [1, 1]} : vector<32x32xf32> to vector<8x32xf32>
    %cst_14 = arith.constant dense<0.000000e+00> : vector<16x32xf32>
    %46 = tpu.matmul %44, %45, %cst_14 {dimension_numbers = #tpu.dot_dimension_numbers<[1], [0], [0], [1], [0, 0, 1, 1], [], []>} : vector<16x8xf32>, vector<8x32xf32>, vector<16x32xf32> -> vector<16x32xf32>
    %47 = vector.extract_strided_slice %26 {offsets = [0, 0, 8], sizes = [2, 8, 8], strides = [1, 1, 1]} : vector<2x8x32xf32> to vector<2x8x8xf32>
    %48 = vector.extract_strided_slice %27 {offsets = [0, 0, 8], sizes = [2, 8, 8], strides = [1, 1, 1]} : vector<2x8x32xf32> to vector<2x8x8xf32>
    "tpu.trace_start"() <{level = 10 : i32, message = "bqd,bkd->bqk"}> : () -> ()
    %cst_15 = arith.constant dense<0.000000e+00> : vector<2x8x8xf32>
    %49 = tpu.matmul %47, %48, %cst_15 {dimension_numbers = #tpu.dot_dimension_numbers<[2], [2], [1], [1], [0, 0, 0, 1, 1, 1], [0], [0]>} : vector<2x8x8xf32>, vector<2x8x8xf32>, vector<2x8x8xf32> -> vector<2x8x8xf32>
    "tpu.trace_stop"() : () -> ()
    %cst_16 = arith.constant dense<0xFF800000> : vector<2x8xf32>
    %50 = vector.multi_reduction <maximumf>, %49, %cst_16 [2] : vector<2x8x8xf32> to vector<2x8xf32>
    %51 = vector.shape_cast %50 : vector<2x8xf32> to vector<2x8x1xf32>
    %52 = vector.broadcast %51 : vector<2x8x1xf32> to vector<2x8x8xf32>
    %53 = arith.subf %49, %52 : vector<2x8x8xf32>
    %54 = math.exp %53 : vector<2x8x8xf32>
    %cst_17 = arith.constant dense<0.000000e+00> : vector<2x8xf32>
    %55 = vector.multi_reduction <add>, %54, %cst_17 [2] : vector<2x8x8xf32> to vector<2x8xf32>
    %56 = vector.shape_cast %55 : vector<2x8xf32> to vector<2x8x1xf32>
    %57 = tpu.reciprocal %56 {approx = true} : vector<2x8x1xf32> -> vector<2x8x1xf32>
    %58 = vector.broadcast %57 : vector<2x8x1xf32> to vector<2x8x8xf32>
    %59 = arith.mulf %54, %58 : vector<2x8x8xf32>
    %60 = vector.extract_strided_slice %28 {offsets = [0, 0, 8], sizes = [2, 8, 8], strides = [1, 1, 1]} : vector<2x8x32xf32> to vector<2x8x8xf32>
    "tpu.trace_start"() <{level = 10 : i32, message = "bqk,bkd->bqd"}> : () -> ()
    %cst_18 = arith.constant dense<0.000000e+00> : vector<2x8x8xf32>
    %61 = tpu.matmul %59, %60, %cst_18 {dimension_numbers = #tpu.dot_dimension_numbers<[2], [1], [1], [2], [0, 0, 0, 1, 1, 2], [0], [0]>} : vector<2x8x8xf32>, vector<2x8x8xf32>, vector<2x8x8xf32> -> vector<2x8x8xf32>
    "tpu.trace_stop"() : () -> ()
    %62 = vector.shape_cast %61 : vector<2x8x8xf32> to vector<16x8xf32>
    %63 = vector.extract_strided_slice %23 {offsets = [8, 0], sizes = [8, 32], strides = [1, 1]} : vector<32x32xf32> to vector<8x32xf32>
    %cst_19 = arith.constant dense<0.000000e+00> : vector<16x32xf32>
    %64 = tpu.matmul %62, %63, %cst_19 {dimension_numbers = #tpu.dot_dimension_numbers<[1], [0], [0], [1], [0, 0, 1, 1], [], []>} : vector<16x8xf32>, vector<8x32xf32>, vector<16x32xf32> -> vector<16x32xf32>
    %65 = vector.extract_strided_slice %26 {offsets = [0, 0, 16], sizes = [2, 8, 8], strides = [1, 1, 1]} : vector<2x8x32xf32> to vector<2x8x8xf32>
    %66 = vector.extract_strided_slice %27 {offsets = [0, 0, 16], sizes = [2, 8, 8], strides = [1, 1, 1]} : vector<2x8x32xf32> to vector<2x8x8xf32>
    "tpu.trace_start"() <{level = 10 : i32, message = "bqd,bkd->bqk"}> : () -> ()
    %cst_20 = arith.constant dense<0.000000e+00> : vector<2x8x8xf32>
    %67 = tpu.matmul %65, %66, %cst_20 {dimension_numbers = #tpu.dot_dimension_numbers<[2], [2], [1], [1], [0, 0, 0, 1, 1, 1], [0], [0]>} : vector<2x8x8xf32>, vector<2x8x8xf32>, vector<2x8x8xf32> -> vector<2x8x8xf32>
    "tpu.trace_stop"() : () -> ()
    %cst_21 = arith.constant dense<0xFF800000> : vector<2x8xf32>
    %68 = vector.multi_reduction <maximumf>, %67, %cst_21 [2] : vector<2x8x8xf32> to vector<2x8xf32>
    %69 = vector.shape_cast %68 : vector<2x8xf32> to vector<2x8x1xf32>
    %70 = vector.broadcast %69 : vector<2x8x1xf32> to vector<2x8x8xf32>
    %71 = arith.subf %67, %70 : vector<2x8x8xf32>
    %72 = math.exp %71 : vector<2x8x8xf32>
    %cst_22 = arith.constant dense<0.000000e+00> : vector<2x8xf32>
    %73 = vector.multi_reduction <add>, %72, %cst_22 [2] : vector<2x8x8xf32> to vector<2x8xf32>
    %74 = vector.shape_cast %73 : vector<2x8xf32> to vector<2x8x1xf32>
    %75 = tpu.reciprocal %74 {approx = true} : vector<2x8x1xf32> -> vector<2x8x1xf32>
    %76 = vector.broadcast %75 : vector<2x8x1xf32> to vector<2x8x8xf32>
    %77 = arith.mulf %72, %76 : vector<2x8x8xf32>
    %78 = vector.extract_strided_slice %28 {offsets = [0, 0, 16], sizes = [2, 8, 8], strides = [1, 1, 1]} : vector<2x8x32xf32> to vector<2x8x8xf32>
    "tpu.trace_start"() <{level = 10 : i32, message = "bqk,bkd->bqd"}> : () -> ()
    %cst_23 = arith.constant dense<0.000000e+00> : vector<2x8x8xf32>
    %79 = tpu.matmul %77, %78, %cst_23 {dimension_numbers = #tpu.dot_dimension_numbers<[2], [1], [1], [2], [0, 0, 0, 1, 1, 2], [0], [0]>} : vector<2x8x8xf32>, vector<2x8x8xf32>, vector<2x8x8xf32> -> vector<2x8x8xf32>
    "tpu.trace_stop"() : () -> ()
    %80 = vector.shape_cast %79 : vector<2x8x8xf32> to vector<16x8xf32>
    %81 = vector.extract_strided_slice %23 {offsets = [16, 0], sizes = [8, 32], strides = [1, 1]} : vector<32x32xf32> to vector<8x32xf32>
    %cst_24 = arith.constant dense<0.000000e+00> : vector<16x32xf32>
    %82 = tpu.matmul %80, %81, %cst_24 {dimension_numbers = #tpu.dot_dimension_numbers<[1], [0], [0], [1], [0, 0, 1, 1], [], []>} : vector<16x8xf32>, vector<8x32xf32>, vector<16x32xf32> -> vector<16x32xf32>
    %83 = vector.extract_strided_slice %26 {offsets = [0, 0, 24], sizes = [2, 8, 8], strides = [1, 1, 1]} : vector<2x8x32xf32> to vector<2x8x8xf32>
    %84 = vector.extract_strided_slice %27 {offsets = [0, 0, 24], sizes = [2, 8, 8], strides = [1, 1, 1]} : vector<2x8x32xf32> to vector<2x8x8xf32>
    "tpu.trace_start"() <{level = 10 : i32, message = "bqd,bkd->bqk"}> : () -> ()
    %cst_25 = arith.constant dense<0.000000e+00> : vector<2x8x8xf32>
    %85 = tpu.matmul %83, %84, %cst_25 {dimension_numbers = #tpu.dot_dimension_numbers<[2], [2], [1], [1], [0, 0, 0, 1, 1, 1], [0], [0]>} : vector<2x8x8xf32>, vector<2x8x8xf32>, vector<2x8x8xf32> -> vector<2x8x8xf32>
    "tpu.trace_stop"() : () -> ()
    %cst_26 = arith.constant dense<0xFF800000> : vector<2x8xf32>
    %86 = vector.multi_reduction <maximumf>, %85, %cst_26 [2] : vector<2x8x8xf32> to vector<2x8xf32>
    %87 = vector.shape_cast %86 : vector<2x8xf32> to vector<2x8x1xf32>
    %88 = vector.broadcast %87 : vector<2x8x1xf32> to vector<2x8x8xf32>
    %89 = arith.subf %85, %88 : vector<2x8x8xf32>
    %90 = math.exp %89 : vector<2x8x8xf32>
    %cst_27 = arith.constant dense<0.000000e+00> : vector<2x8xf32>
    %91 = vector.multi_reduction <add>, %90, %cst_27 [2] : vector<2x8x8xf32> to vector<2x8xf32>
    %92 = vector.shape_cast %91 : vector<2x8xf32> to vector<2x8x1xf32>
    %93 = tpu.reciprocal %92 {approx = true} : vector<2x8x1xf32> -> vector<2x8x1xf32>
    %94 = vector.broadcast %93 : vector<2x8x1xf32> to vector<2x8x8xf32>
    %95 = arith.mulf %90, %94 : vector<2x8x8xf32>
    %96 = vector.extract_strided_slice %28 {offsets = [0, 0, 24], sizes = [2, 8, 8], strides = [1, 1, 1]} : vector<2x8x32xf32> to vector<2x8x8xf32>
    "tpu.trace_start"() <{level = 10 : i32, message = "bqk,bkd->bqd"}> : () -> ()
    %cst_28 = arith.constant dense<0.000000e+00> : vector<2x8x8xf32>
    %97 = tpu.matmul %95, %96, %cst_28 {dimension_numbers = #tpu.dot_dimension_numbers<[2], [1], [1], [2], [0, 0, 0, 1, 1, 2], [0], [0]>} : vector<2x8x8xf32>, vector<2x8x8xf32>, vector<2x8x8xf32> -> vector<2x8x8xf32>
    "tpu.trace_stop"() : () -> ()
    %98 = vector.shape_cast %97 : vector<2x8x8xf32> to vector<16x8xf32>
    %99 = vector.extract_strided_slice %23 {offsets = [24, 0], sizes = [8, 32], strides = [1, 1]} : vector<32x32xf32> to vector<8x32xf32>
    %cst_29 = arith.constant dense<0.000000e+00> : vector<16x32xf32>
    %100 = tpu.matmul %98, %99, %cst_29 {dimension_numbers = #tpu.dot_dimension_numbers<[1], [0], [0], [1], [0, 0, 1, 1], [], []>} : vector<16x8xf32>, vector<8x32xf32>, vector<16x32xf32> -> vector<16x32xf32>
    %cst_30 = arith.constant 0.000000e+00 : f32
    %101 = vector.broadcast %cst_30 : f32 to vector<16x32xf32>
    %102 = arith.addf %101, %46 : vector<16x32xf32>
    %103 = arith.addf %102, %64 : vector<16x32xf32>
    %104 = arith.addf %103, %82 : vector<16x32xf32>
    %105 = arith.addf %104, %100 : vector<16x32xf32>
    %106 = vector.broadcast %4 : vector<1x32xf32> to vector<16x32xf32>
    %107 = arith.addf %105, %106 : vector<16x32xf32>
    %108 = arith.addf %107, %0 : vector<16x32xf32>
    %cst_31 = arith.constant dense<0.000000e+00> : vector<16xf32>
    %109 = vector.multi_reduction <add>, %108, %cst_31 [1] : vector<16x32xf32> to vector<16xf32>
    %110 = vector.shape_cast %109 : vector<16xf32> to vector<16x1xf32>
    %cst_32 = arith.constant 3.200000e+01 : f32
    %111 = vector.broadcast %cst_32 : f32 to vector<16x1xf32>
    %112 = arith.divf %110, %111 : vector<16x1xf32>
    %113 = vector.broadcast %112 : vector<16x1xf32> to vector<16x32xf32>
    %114 = arith.subf %108, %113 : vector<16x32xf32>
    %115 = arith.mulf %114, %114 : vector<16x32xf32>
    %cst_33 = arith.constant dense<0.000000e+00> : vector<16xf32>
    %116 = vector.multi_reduction <add>, %115, %cst_33 [1] : vector<16x32xf32> to vector<16xf32>
    %117 = vector.shape_cast %116 : vector<16xf32> to vector<16x1xf32>
    %cst_34 = arith.constant 3.200000e+01 : f32
    %118 = vector.broadcast %cst_34 : f32 to vector<16x1xf32>
    %119 = arith.divf %117, %118 : vector<16x1xf32>
    %120 = vector.broadcast %112 : vector<16x1xf32> to vector<16x32xf32>
    %121 = arith.subf %108, %120 : vector<16x32xf32>
    %cst_35 = arith.constant 9.99999974E-6 : f32
    %122 = vector.broadcast %cst_35 : f32 to vector<16x1xf32>
    %123 = arith.addf %119, %122 : vector<16x1xf32>
    %124 = math.rsqrt %123 : vector<16x1xf32>
    %125 = vector.broadcast %124 : vector<16x1xf32> to vector<16x32xf32>
    %126 = arith.mulf %121, %125 : vector<16x32xf32>
    %127 = vector.broadcast %8 : vector<1x32xf32> to vector<16x32xf32>
    %128 = arith.mulf %126, %127 : vector<16x32xf32>
    %129 = vector.broadcast %9 : vector<1x32xf32> to vector<16x32xf32>
    %130 = arith.addf %128, %129 : vector<16x32xf32>
    %c0_36 = arith.constant 0 : index
    %c0_37 = arith.constant 0 : index
    %131 = vector.load %arg4[%c0_36, %c0_37] : memref<32x32xf32, #tpu.memory_space<vmem>>, vector<32x32xf32>
    %cst_38 = arith.constant dense<0.000000e+00> : vector<16x32xf32>
    %132 = tpu.matmul %130, %131, %cst_38 {dimension_numbers = #tpu.dot_dimension_numbers<[1], [0], [0], [1], [0, 0, 1, 1], [], []>} : vector<16x32xf32>, vector<32x32xf32>, vector<16x32xf32> -> vector<16x32xf32>
    %133 = vector.broadcast %5 : vector<1x32xf32> to vector<16x32xf32>
    %134 = arith.addf %132, %133 : vector<16x32xf32>
    %c0_39 = arith.constant 0 : index
    %c0_40 = arith.constant 0 : index
    %135 = vector.load %arg5[%c0_39, %c0_40] : memref<32x64xf32, #tpu.memory_space<vmem>>, vector<32x64xf32>
    %cst_41 = arith.constant dense<0.000000e+00> : vector<16x64xf32>
    %136 = tpu.matmul %1, %135, %cst_41 {dimension_numbers = #tpu.dot_dimension_numbers<[1], [0], [0], [1], [0, 0, 1, 1], [], []>} : vector<16x32xf32>, vector<32x64xf32>, vector<16x64xf32> -> vector<16x64xf32>
    %137 = vector.broadcast %6 : vector<1x64xf32> to vector<16x64xf32>
    %138 = arith.addf %136, %137 : vector<16x64xf32>
    %139 = vector.extract_strided_slice %138 {offsets = [0, 0], sizes = [16, 32], strides = [1, 1]} : vector<16x64xf32> to vector<16x32xf32>
    %140 = vector.extract_strided_slice %138 {offsets = [0, 32], sizes = [16, 32], strides = [1, 1]} : vector<16x64xf32> to vector<16x32xf32>
    %c0_42 = arith.constant 0 : index
    %c0_43 = arith.constant 0 : index
    %141 = vector.load %arg6[%c0_42, %c0_43] : memref<32x32xf32, #tpu.memory_space<vmem>>, vector<32x32xf32>
    %cst_44 = arith.constant 0.176776692 : f32
    %142 = vector.broadcast %cst_44 : f32 to vector<16x32xf32>
    %143 = arith.mulf %134, %142 : vector<16x32xf32>
    %144 = vector.shape_cast %143 : vector<16x32xf32> to vector<2x8x32xf32>
    %145 = vector.shape_cast %139 : vector<16x32xf32> to vector<2x8x32xf32>
    %146 = vector.shape_cast %140 : vector<16x32xf32> to vector<2x8x32xf32>
    %147 = vector.extract_strided_slice %144 {offsets = [0, 0, 0], sizes = [2, 8, 8], strides = [1, 1, 1]} : vector<2x8x32xf32> to vector<2x8x8xf32>
    %148 = vector.extract_strided_slice %145 {offsets = [0, 0, 0], sizes = [2, 8, 8], strides = [1, 1, 1]} : vector<2x8x32xf32> to vector<2x8x8xf32>
    "tpu.trace_start"() <{level = 10 : i32, message = "bqd,bkd->bqk"}> : () -> ()
    %cst_45 = arith.constant dense<0.000000e+00> : vector<2x8x8xf32>
    %149 = tpu.matmul %147, %148, %cst_45 {dimension_numbers = #tpu.dot_dimension_numbers<[2], [2], [1], [1], [0, 0, 0, 1, 1, 1], [0], [0]>} : vector<2x8x8xf32>, vector<2x8x8xf32>, vector<2x8x8xf32> -> vector<2x8x8xf32>
    "tpu.trace_stop"() : () -> ()
    %cst_46 = arith.constant dense<0xFF800000> : vector<2x8xf32>
    %150 = vector.multi_reduction <maximumf>, %149, %cst_46 [2] : vector<2x8x8xf32> to vector<2x8xf32>
    %151 = vector.shape_cast %150 : vector<2x8xf32> to vector<2x8x1xf32>
    %152 = vector.broadcast %151 : vector<2x8x1xf32> to vector<2x8x8xf32>
    %153 = arith.subf %149, %152 : vector<2x8x8xf32>
    %154 = math.exp %153 : vector<2x8x8xf32>
    %cst_47 = arith.constant dense<0.000000e+00> : vector<2x8xf32>
    %155 = vector.multi_reduction <add>, %154, %cst_47 [2] : vector<2x8x8xf32> to vector<2x8xf32>
    %156 = vector.shape_cast %155 : vector<2x8xf32> to vector<2x8x1xf32>
    %157 = tpu.reciprocal %156 {approx = true} : vector<2x8x1xf32> -> vector<2x8x1xf32>
    %158 = vector.broadcast %157 : vector<2x8x1xf32> to vector<2x8x8xf32>
    %159 = arith.mulf %154, %158 : vector<2x8x8xf32>
    %160 = vector.extract_strided_slice %146 {offsets = [0, 0, 0], sizes = [2, 8, 8], strides = [1, 1, 1]} : vector<2x8x32xf32> to vector<2x8x8xf32>
    "tpu.trace_start"() <{level = 10 : i32, message = "bqk,bkd->bqd"}> : () -> ()
    %cst_48 = arith.constant dense<0.000000e+00> : vector<2x8x8xf32>
    %161 = tpu.matmul %159, %160, %cst_48 {dimension_numbers = #tpu.dot_dimension_numbers<[2], [1], [1], [2], [0, 0, 0, 1, 1, 2], [0], [0]>} : vector<2x8x8xf32>, vector<2x8x8xf32>, vector<2x8x8xf32> -> vector<2x8x8xf32>
    "tpu.trace_stop"() : () -> ()
    %162 = vector.shape_cast %161 : vector<2x8x8xf32> to vector<16x8xf32>
    %163 = vector.extract_strided_slice %141 {offsets = [0, 0], sizes = [8, 32], strides = [1, 1]} : vector<32x32xf32> to vector<8x32xf32>
    %cst_49 = arith.constant dense<0.000000e+00> : vector<16x32xf32>
    %164 = tpu.matmul %162, %163, %cst_49 {dimension_numbers = #tpu.dot_dimension_numbers<[1], [0], [0], [1], [0, 0, 1, 1], [], []>} : vector<16x8xf32>, vector<8x32xf32>, vector<16x32xf32> -> vector<16x32xf32>
    %165 = vector.extract_strided_slice %144 {offsets = [0, 0, 8], sizes = [2, 8, 8], strides = [1, 1, 1]} : vector<2x8x32xf32> to vector<2x8x8xf32>
    %166 = vector.extract_strided_slice %145 {offsets = [0, 0, 8], sizes = [2, 8, 8], strides = [1, 1, 1]} : vector<2x8x32xf32> to vector<2x8x8xf32>
    "tpu.trace_start"() <{level = 10 : i32, message = "bqd,bkd->bqk"}> : () -> ()
    %cst_50 = arith.constant dense<0.000000e+00> : vector<2x8x8xf32>
    %167 = tpu.matmul %165, %166, %cst_50 {dimension_numbers = #tpu.dot_dimension_numbers<[2], [2], [1], [1], [0, 0, 0, 1, 1, 1], [0], [0]>} : vector<2x8x8xf32>, vector<2x8x8xf32>, vector<2x8x8xf32> -> vector<2x8x8xf32>
    "tpu.trace_stop"() : () -> ()
    %cst_51 = arith.constant dense<0xFF800000> : vector<2x8xf32>
    %168 = vector.multi_reduction <maximumf>, %167, %cst_51 [2] : vector<2x8x8xf32> to vector<2x8xf32>
    %169 = vector.shape_cast %168 : vector<2x8xf32> to vector<2x8x1xf32>
    %170 = vector.broadcast %169 : vector<2x8x1xf32> to vector<2x8x8xf32>
    %171 = arith.subf %167, %170 : vector<2x8x8xf32>
    %172 = math.exp %171 : vector<2x8x8xf32>
    %cst_52 = arith.constant dense<0.000000e+00> : vector<2x8xf32>
    %173 = vector.multi_reduction <add>, %172, %cst_52 [2] : vector<2x8x8xf32> to vector<2x8xf32>
    %174 = vector.shape_cast %173 : vector<2x8xf32> to vector<2x8x1xf32>
    %175 = tpu.reciprocal %174 {approx = true} : vector<2x8x1xf32> -> vector<2x8x1xf32>
    %176 = vector.broadcast %175 : vector<2x8x1xf32> to vector<2x8x8xf32>
    %177 = arith.mulf %172, %176 : vector<2x8x8xf32>
    %178 = vector.extract_strided_slice %146 {offsets = [0, 0, 8], sizes = [2, 8, 8], strides = [1, 1, 1]} : vector<2x8x32xf32> to vector<2x8x8xf32>
    "tpu.trace_start"() <{level = 10 : i32, message = "bqk,bkd->bqd"}> : () -> ()
    %cst_53 = arith.constant dense<0.000000e+00> : vector<2x8x8xf32>
    %179 = tpu.matmul %177, %178, %cst_53 {dimension_numbers = #tpu.dot_dimension_numbers<[2], [1], [1], [2], [0, 0, 0, 1, 1, 2], [0], [0]>} : vector<2x8x8xf32>, vector<2x8x8xf32>, vector<2x8x8xf32> -> vector<2x8x8xf32>
    "tpu.trace_stop"() : () -> ()
    %180 = vector.shape_cast %179 : vector<2x8x8xf32> to vector<16x8xf32>
    %181 = vector.extract_strided_slice %141 {offsets = [8, 0], sizes = [8, 32], strides = [1, 1]} : vector<32x32xf32> to vector<8x32xf32>
    %cst_54 = arith.constant dense<0.000000e+00> : vector<16x32xf32>
    %182 = tpu.matmul %180, %181, %cst_54 {dimension_numbers = #tpu.dot_dimension_numbers<[1], [0], [0], [1], [0, 0, 1, 1], [], []>} : vector<16x8xf32>, vector<8x32xf32>, vector<16x32xf32> -> vector<16x32xf32>
    %183 = vector.extract_strided_slice %144 {offsets = [0, 0, 16], sizes = [2, 8, 8], strides = [1, 1, 1]} : vector<2x8x32xf32> to vector<2x8x8xf32>
    %184 = vector.extract_strided_slice %145 {offsets = [0, 0, 16], sizes = [2, 8, 8], strides = [1, 1, 1]} : vector<2x8x32xf32> to vector<2x8x8xf32>
    "tpu.trace_start"() <{level = 10 : i32, message = "bqd,bkd->bqk"}> : () -> ()
    %cst_55 = arith.constant dense<0.000000e+00> : vector<2x8x8xf32>
    %185 = tpu.matmul %183, %184, %cst_55 {dimension_numbers = #tpu.dot_dimension_numbers<[2], [2], [1], [1], [0, 0, 0, 1, 1, 1], [0], [0]>} : vector<2x8x8xf32>, vector<2x8x8xf32>, vector<2x8x8xf32> -> vector<2x8x8xf32>
    "tpu.trace_stop"() : () -> ()
    %cst_56 = arith.constant dense<0xFF800000> : vector<2x8xf32>
    %186 = vector.multi_reduction <maximumf>, %185, %cst_56 [2] : vector<2x8x8xf32> to vector<2x8xf32>
    %187 = vector.shape_cast %186 : vector<2x8xf32> to vector<2x8x1xf32>
    %188 = vector.broadcast %187 : vector<2x8x1xf32> to vector<2x8x8xf32>
    %189 = arith.subf %185, %188 : vector<2x8x8xf32>
    %190 = math.exp %189 : vector<2x8x8xf32>
    %cst_57 = arith.constant dense<0.000000e+00> : vector<2x8xf32>
    %191 = vector.multi_reduction <add>, %190, %cst_57 [2] : vector<2x8x8xf32> to vector<2x8xf32>
    %192 = vector.shape_cast %191 : vector<2x8xf32> to vector<2x8x1xf32>
    %193 = tpu.reciprocal %192 {approx = true} : vector<2x8x1xf32> -> vector<2x8x1xf32>
    %194 = vector.broadcast %193 : vector<2x8x1xf32> to vector<2x8x8xf32>
    %195 = arith.mulf %190, %194 : vector<2x8x8xf32>
    %196 = vector.extract_strided_slice %146 {offsets = [0, 0, 16], sizes = [2, 8, 8], strides = [1, 1, 1]} : vector<2x8x32xf32> to vector<2x8x8xf32>
    "tpu.trace_start"() <{level = 10 : i32, message = "bqk,bkd->bqd"}> : () -> ()
    %cst_58 = arith.constant dense<0.000000e+00> : vector<2x8x8xf32>
    %197 = tpu.matmul %195, %196, %cst_58 {dimension_numbers = #tpu.dot_dimension_numbers<[2], [1], [1], [2], [0, 0, 0, 1, 1, 2], [0], [0]>} : vector<2x8x8xf32>, vector<2x8x8xf32>, vector<2x8x8xf32> -> vector<2x8x8xf32>
    "tpu.trace_stop"() : () -> ()
    %198 = vector.shape_cast %197 : vector<2x8x8xf32> to vector<16x8xf32>
    %199 = vector.extract_strided_slice %141 {offsets = [16, 0], sizes = [8, 32], strides = [1, 1]} : vector<32x32xf32> to vector<8x32xf32>
    %cst_59 = arith.constant dense<0.000000e+00> : vector<16x32xf32>
    %200 = tpu.matmul %198, %199, %cst_59 {dimension_numbers = #tpu.dot_dimension_numbers<[1], [0], [0], [1], [0, 0, 1, 1], [], []>} : vector<16x8xf32>, vector<8x32xf32>, vector<16x32xf32> -> vector<16x32xf32>
    %201 = vector.extract_strided_slice %144 {offsets = [0, 0, 24], sizes = [2, 8, 8], strides = [1, 1, 1]} : vector<2x8x32xf32> to vector<2x8x8xf32>
    %202 = vector.extract_strided_slice %145 {offsets = [0, 0, 24], sizes = [2, 8, 8], strides = [1, 1, 1]} : vector<2x8x32xf32> to vector<2x8x8xf32>
    "tpu.trace_start"() <{level = 10 : i32, message = "bqd,bkd->bqk"}> : () -> ()
    %cst_60 = arith.constant dense<0.000000e+00> : vector<2x8x8xf32>
    %203 = tpu.matmul %201, %202, %cst_60 {dimension_numbers = #tpu.dot_dimension_numbers<[2], [2], [1], [1], [0, 0, 0, 1, 1, 1], [0], [0]>} : vector<2x8x8xf32>, vector<2x8x8xf32>, vector<2x8x8xf32> -> vector<2x8x8xf32>
    "tpu.trace_stop"() : () -> ()
    %cst_61 = arith.constant dense<0xFF800000> : vector<2x8xf32>
    %204 = vector.multi_reduction <maximumf>, %203, %cst_61 [2] : vector<2x8x8xf32> to vector<2x8xf32>
    %205 = vector.shape_cast %204 : vector<2x8xf32> to vector<2x8x1xf32>
    %206 = vector.broadcast %205 : vector<2x8x1xf32> to vector<2x8x8xf32>
    %207 = arith.subf %203, %206 : vector<2x8x8xf32>
    %208 = math.exp %207 : vector<2x8x8xf32>
    %cst_62 = arith.constant dense<0.000000e+00> : vector<2x8xf32>
    %209 = vector.multi_reduction <add>, %208, %cst_62 [2] : vector<2x8x8xf32> to vector<2x8xf32>
    %210 = vector.shape_cast %209 : vector<2x8xf32> to vector<2x8x1xf32>
    %211 = tpu.reciprocal %210 {approx = true} : vector<2x8x1xf32> -> vector<2x8x1xf32>
    %212 = vector.broadcast %211 : vector<2x8x1xf32> to vector<2x8x8xf32>
    %213 = arith.mulf %208, %212 : vector<2x8x8xf32>
    %214 = vector.extract_strided_slice %146 {offsets = [0, 0, 24], sizes = [2, 8, 8], strides = [1, 1, 1]} : vector<2x8x32xf32> to vector<2x8x8xf32>
    "tpu.trace_start"() <{level = 10 : i32, message = "bqk,bkd->bqd"}> : () -> ()
    %cst_63 = arith.constant dense<0.000000e+00> : vector<2x8x8xf32>
    %215 = tpu.matmul %213, %214, %cst_63 {dimension_numbers = #tpu.dot_dimension_numbers<[2], [1], [1], [2], [0, 0, 0, 1, 1, 2], [0], [0]>} : vector<2x8x8xf32>, vector<2x8x8xf32>, vector<2x8x8xf32> -> vector<2x8x8xf32>
    "tpu.trace_stop"() : () -> ()
    %216 = vector.shape_cast %215 : vector<2x8x8xf32> to vector<16x8xf32>
    %217 = vector.extract_strided_slice %141 {offsets = [24, 0], sizes = [8, 32], strides = [1, 1]} : vector<32x32xf32> to vector<8x32xf32>
    %cst_64 = arith.constant dense<0.000000e+00> : vector<16x32xf32>
    %218 = tpu.matmul %216, %217, %cst_64 {dimension_numbers = #tpu.dot_dimension_numbers<[1], [0], [0], [1], [0, 0, 1, 1], [], []>} : vector<16x8xf32>, vector<8x32xf32>, vector<16x32xf32> -> vector<16x32xf32>
    %cst_65 = arith.constant 0.000000e+00 : f32
    %219 = vector.broadcast %cst_65 : f32 to vector<16x32xf32>
    %220 = arith.addf %219, %164 : vector<16x32xf32>
    %221 = arith.addf %220, %182 : vector<16x32xf32>
    %222 = arith.addf %221, %200 : vector<16x32xf32>
    %223 = arith.addf %222, %218 : vector<16x32xf32>
    %224 = vector.broadcast %7 : vector<1x32xf32> to vector<16x32xf32>
    %225 = arith.addf %223, %224 : vector<16x32xf32>
    %226 = arith.addf %225, %130 : vector<16x32xf32>
    %cst_66 = arith.constant dense<0.000000e+00> : vector<16xf32>
    %227 = vector.multi_reduction <add>, %226, %cst_66 [1] : vector<16x32xf32> to vector<16xf32>
    %228 = vector.shape_cast %227 : vector<16xf32> to vector<16x1xf32>
    %cst_67 = arith.constant 3.200000e+01 : f32
    %229 = vector.broadcast %cst_67 : f32 to vector<16x1xf32>
    %230 = arith.divf %228, %229 : vector<16x1xf32>
    %231 = vector.broadcast %230 : vector<16x1xf32> to vector<16x32xf32>
    %232 = arith.subf %226, %231 : vector<16x32xf32>
    %233 = arith.mulf %232, %232 : vector<16x32xf32>
    %cst_68 = arith.constant dense<0.000000e+00> : vector<16xf32>
    %234 = vector.multi_reduction <add>, %233, %cst_68 [1] : vector<16x32xf32> to vector<16xf32>
    %235 = vector.shape_cast %234 : vector<16xf32> to vector<16x1xf32>
    %cst_69 = arith.constant 3.200000e+01 : f32
    %236 = vector.broadcast %cst_69 : f32 to vector<16x1xf32>
    %237 = arith.divf %235, %236 : vector<16x1xf32>
    %238 = vector.broadcast %230 : vector<16x1xf32> to vector<16x32xf32>
    %239 = arith.subf %226, %238 : vector<16x32xf32>
    %cst_70 = arith.constant 9.99999974E-6 : f32
    %240 = vector.broadcast %cst_70 : f32 to vector<16x1xf32>
    %241 = arith.addf %237, %240 : vector<16x1xf32>
    %242 = math.rsqrt %241 : vector<16x1xf32>
    %243 = vector.broadcast %242 : vector<16x1xf32> to vector<16x32xf32>
    %244 = arith.mulf %239, %243 : vector<16x32xf32>
    %245 = vector.broadcast %10 : vector<1x32xf32> to vector<16x32xf32>
    %246 = arith.mulf %244, %245 : vector<16x32xf32>
    %247 = vector.broadcast %11 : vector<1x32xf32> to vector<16x32xf32>
    %248 = arith.addf %246, %247 : vector<16x32xf32>
    %c0_71 = arith.constant 0 : index
    %c0_72 = arith.constant 0 : index
    %249 = vector.load %arg7[%c0_71, %c0_72] : memref<32x128xf32, #tpu.memory_space<vmem>>, vector<32x128xf32>
    %cst_73 = arith.constant dense<0.000000e+00> : vector<16x128xf32>
    %250 = tpu.matmul %248, %249, %cst_73 {dimension_numbers = #tpu.dot_dimension_numbers<[1], [0], [0], [1], [0, 0, 1, 1], [], []>} : vector<16x32xf32>, vector<32x128xf32>, vector<16x128xf32> -> vector<16x128xf32>
    %251 = vector.broadcast %12 : vector<1x128xf32> to vector<16x128xf32>
    %252 = arith.addf %250, %251 : vector<16x128xf32>
    %cst_74 = arith.constant 0.000000e+00 : f32
    %253 = vector.broadcast %cst_74 : f32 to vector<16x128xf32>
    %254 = arith.maximumf %252, %253 : vector<16x128xf32>
    %c0_75 = arith.constant 0 : index
    %c0_76 = arith.constant 0 : index
    %255 = vector.load %arg8[%c0_75, %c0_76] : memref<128x32xf32, #tpu.memory_space<vmem>>, vector<128x32xf32>
    %cst_77 = arith.constant dense<0.000000e+00> : vector<16x32xf32>
    %256 = tpu.matmul %254, %255, %cst_77 {dimension_numbers = #tpu.dot_dimension_numbers<[1], [0], [0], [1], [0, 0, 1, 1], [], []>} : vector<16x128xf32>, vector<128x32xf32>, vector<16x32xf32> -> vector<16x32xf32>
    %257 = vector.broadcast %13 : vector<1x32xf32> to vector<16x32xf32>
    %258 = arith.addf %256, %257 : vector<16x32xf32>
    %259 = arith.addf %258, %248 : vector<16x32xf32>
    %cst_78 = arith.constant dense<0.000000e+00> : vector<16xf32>
    %260 = vector.multi_reduction <add>, %259, %cst_78 [1] : vector<16x32xf32> to vector<16xf32>
    %261 = vector.shape_cast %260 : vector<16xf32> to vector<16x1xf32>
    %cst_79 = arith.constant 3.200000e+01 : f32
    %262 = vector.broadcast %cst_79 : f32 to vector<16x1xf32>
    %263 = arith.divf %261, %262 : vector<16x1xf32>
    %264 = vector.broadcast %263 : vector<16x1xf32> to vector<16x32xf32>
    %265 = arith.subf %259, %264 : vector<16x32xf32>
    %266 = arith.mulf %265, %265 : vector<16x32xf32>
    %cst_80 = arith.constant dense<0.000000e+00> : vector<16xf32>
    %267 = vector.multi_reduction <add>, %266, %cst_80 [1] : vector<16x32xf32> to vector<16xf32>
    %268 = vector.shape_cast %267 : vector<16xf32> to vector<16x1xf32>
    %cst_81 = arith.constant 3.200000e+01 : f32
    %269 = vector.broadcast %cst_81 : f32 to vector<16x1xf32>
    %270 = arith.divf %268, %269 : vector<16x1xf32>
    %271 = vector.broadcast %263 : vector<16x1xf32> to vector<16x32xf32>
    %272 = arith.subf %259, %271 : vector<16x32xf32>
    %cst_82 = arith.constant 9.99999974E-6 : f32
    %273 = vector.broadcast %cst_82 : f32 to vector<16x1xf32>
    %274 = arith.addf %270, %273 : vector<16x1xf32>
    %275 = math.rsqrt %274 : vector<16x1xf32>
    %276 = vector.broadcast %275 : vector<16x1xf32> to vector<16x32xf32>
    %277 = arith.mulf %272, %276 : vector<16x32xf32>
    %278 = vector.broadcast %14 : vector<1x32xf32> to vector<16x32xf32>
    %279 = arith.mulf %277, %278 : vector<16x32xf32>
    %280 = vector.broadcast %15 : vector<1x32xf32> to vector<16x32xf32>
    %281 = arith.addf %279, %280 : vector<16x32xf32>
    %c0_83 = arith.constant 0 : index
    %c0_84 = arith.constant 0 : index
    %282 = vector.load %arg10[%c0_83, %c0_84] : memref<16x32xf32, #tpu.memory_space<vmem>>, vector<16x32xf32>
    tpu.vector_store %arg10[%c0_83, %c0_84], %281 {strides = array<i32>} : memref<16x32xf32, #tpu.memory_space<vmem>>, vector<16x32xf32>,
    return
  }
}

</mosaic_0001>

<llo_original>
// kernel: tpu_custom_call.1
$region0: #{tpu_custom_call.1}
  #allocation0 [shape = 'u32[]', space=smem, size = 0x4, offset = 0x4, fixed_abs, tag = 'smem constant byte address 0x4 - core index']
  #allocation1 [shape = 'u32[144,128]{1,0:T(1,128)}', space=vmem, size = 0x12000, scoped, tag = 'internal scratch']
  %s0 = inlined_call_operand.hbm [shape: f32[16,32], index: 0, kind: input, shape index: {}]
  %s1 = inlined_call_operand.hbm [shape: f32[16,32], index: 1, kind: input, shape index: {}]
  %s2 = inlined_call_operand.vmem [shape: f32[32,96], index: 2, kind: input, shape index: {}]
  %s3 = inlined_call_operand.vmem [shape: f32[32,32], index: 3, kind: input, shape index: {}]
  %s4 = inlined_call_operand.vmem [shape: f32[32,32], index: 4, kind: input, shape index: {}]
  %s5 = inlined_call_operand.vmem [shape: f32[32,64], index: 5, kind: input, shape index: {}]
  %s6 = inlined_call_operand.vmem [shape: f32[32,32], index: 6, kind: input, shape index: {}]
  %s7 = inlined_call_operand.hbm [shape: f32[32,128], index: 7, kind: input, shape index: {}]
  %s8 = inlined_call_operand.vmem [shape: f32[128,32], index: 8, kind: input, shape index: {}]
  %s9 = inlined_call_operand.vmem [shape: f32[13,128], index: 9, kind: input, shape index: {}]
  %s10 = inlined_call_operand.hbm [shape: f32[16,32], index: 10, kind: output, shape index: {}]
  %s11 = sld [smem:[#allocation0]]
  $region62: #{tpu_custom_call.1} parent=0
    _
  %s13 = ssub.s32 1, %s11
  %s14 = scalar_select 0, %s13, %s11
  $region1: #{tpu_custom_call.1} parent=0
    #allocation2 [shape = 'u8[8192]{0}', space=vmem, size = 0x2000, scoped, tag = 'input window, operand 0, single buffered']
    #allocation3 [shape = 's32[1]{0}', space=sflag, size = 0x4, scoped, tag = 'scoped memory for tpu_custom_call.1']
    #allocation4 [shape = 's32[1]{0}', space=sflag, size = 0x4, scoped, tag = 'scoped memory for tpu_custom_call.1']
    #allocation5 [shape = 'u8[8192]{0}', space=vmem, size = 0x2000, scoped, tag = 'input window, operand 1, single buffered']
    #allocation6 [shape = 's32[1]{0}', space=sflag, size = 0x4, scoped, tag = 'scoped memory for tpu_custom_call.1']
    #allocation7 [shape = 'u8[16384]{0}', space=vmem, size = 0x4000, scoped, tag = 'input window, operand 7, single buffered']
    #allocation8 [shape = 'u8[8192]{0}', space=vmem, size = 0x2000, scoped, tag = 'output window, operand 0, single buffered']
    %15 = vsyncpa [#allocation3], 0
    %16 = vsyncpa [#allocation6], 0
    %17 = vsyncpa [#allocation4], 0
    // Predicated region
    $region2: #{tpu_custom_call.1} parent=1 // pred_check
      _
    $region3: #{tpu_custom_call.1} parent=1 // pred_check_branch
      %19 = sbr.rel (0) target = $region5
    $region4: #{tpu_custom_call.1} parent=1 // pred_region
      %s21 = ssub.s32 256, 256
      %22 = vsyncadd [#allocation3], %s21
      %s23 = sshll.u32 [#allocation2], 4
      %s24 = int_to_ptr.vmem [resolvable:$true] %s23
      %29 = dma.hbm_to_vmem [thread:$0]  %s0, 256, %s24, [#allocation3], 128, 128, 8
    $region5: #{tpu_custom_call.1} parent=1 // pred_fallthru
      _
    // Predicated region
    $region6: #{tpu_custom_call.1} parent=1 // pred_check
      _
    $region7: #{tpu_custom_call.1} parent=1 // pred_check_branch
      %31 = sbr.rel (0) target = $region9
    $region8: #{tpu_custom_call.1} parent=1 // pred_region
      %s33 = ssub.s32 256, 256
      %34 = vsyncadd [#allocation6], %s33
      %s35 = sshll.u32 [#allocation5], 4
      %s36 = int_to_ptr.vmem [resolvable:$true] %s35
      %41 = dma.hbm_to_vmem [thread:$0]  %s1, 256, %s36, [#allocation6], 128, 128, 8
    $region9: #{tpu_custom_call.1} parent=1 // pred_fallthru
      _
    // Predicated region
    $region10: #{tpu_custom_call.1} parent=1 // pred_check
      _
    $region11: #{tpu_custom_call.1} parent=1 // pred_check_branch
      %43 = sbr.rel (0) target = $region13
    $region12: #{tpu_custom_call.1} parent=1 // pred_region
      _
    $region13: #{tpu_custom_call.1} parent=1 // pred_fallthru
      _
    // Predicated region
    $region14: #{tpu_custom_call.1} parent=1 // pred_check
      _
    $region15: #{tpu_custom_call.1} parent=1 // pred_check_branch
      %45 = sbr.rel (0) target = $region17
    $region16: #{tpu_custom_call.1} parent=1 // pred_region
      _
    $region17: #{tpu_custom_call.1} parent=1 // pred_fallthru
      _
    // Predicated region
    $region18: #{tpu_custom_call.1} parent=1 // pred_check
      _
    $region19: #{tpu_custom_call.1} parent=1 // pred_check_branch
      %47 = sbr.rel (0) target = $region21
    $region20: #{tpu_custom_call.1} parent=1 // pred_region
      _
    $region21: #{tpu_custom_call.1} parent=1 // pred_fallthru
      _
    // Predicated region
    $region22: #{tpu_custom_call.1} parent=1 // pred_check
      _
    $region23: #{tpu_custom_call.1} parent=1 // pred_check_branch
      %49 = sbr.rel (0) target = $region25
    $region24: #{tpu_custom_call.1} parent=1 // pred_region
      _
    $region25: #{tpu_custom_call.1} parent=1 // pred_fallthru
      _
    // Predicated region
    $region26: #{tpu_custom_call.1} parent=1 // pred_check
      _
    $region27: #{tpu_custom_call.1} parent=1 // pred_check_branch
      %51 = sbr.rel (0) target = $region29
    $region28: #{tpu_custom_call.1} parent=1 // pred_region
      _
    $region29: #{tpu_custom_call.1} parent=1 // pred_fallthru
      _
    // Predicated region
    $region30: #{tpu_custom_call.1} parent=1 // pred_check
      _
    $region31: #{tpu_custom_call.1} parent=1 // pred_check_branch
      %53 = sbr.rel (0) target = $region33
    $region32: #{tpu_custom_call.1} parent=1 // pred_region
      %s55 = ssub.s32 512, 512
      %56 = vsyncadd [#allocation6], %s55
      %s57 = sshll.u32 [#allocation7], 4
      %s58 = int_to_ptr.vmem [resolvable:$true] %s57
      %63 = dma.hbm_to_vmem [thread:$0]  %s7, 512, %s58, [#allocation6], 128, 128, 8
    $region33: #{tpu_custom_call.1} parent=1 // pred_fallthru
      _
    // Predicated region
    $region34: #{tpu_custom_call.1} parent=1 // pred_check
      _
    $region35: #{tpu_custom_call.1} parent=1 // pred_check_branch
      %65 = sbr.rel (0) target = $region37
    $region36: #{tpu_custom_call.1} parent=1 // pred_region
      _
    $region37: #{tpu_custom_call.1} parent=1 // pred_fallthru
      _
    // Predicated region
    $region38: #{tpu_custom_call.1} parent=1 // pred_check
      _
    $region39: #{tpu_custom_call.1} parent=1 // pred_check_branch
      %67 = sbr.rel (0) target = $region41
    $region40: #{tpu_custom_call.1} parent=1 // pred_region
      _
    $region41: #{tpu_custom_call.1} parent=1 // pred_fallthru
      _
    // Predicated region
    $region42: #{tpu_custom_call.1} parent=1 // pred_check
      _
    $region43: #{tpu_custom_call.1} parent=1 // pred_check_branch
      %69 = sbr.rel (0) target = $region45
    $region44: #{tpu_custom_call.1} parent=1 // pred_region
      %70 = dma.done [#allocation3], 256
    $region45: #{tpu_custom_call.1} parent=1 // pred_fallthru
      _
    // Predicated region
    $region46: #{tpu_custom_call.1} parent=1 // pred_check
      _
    $region47: #{tpu_custom_call.1} parent=1 // pred_check_branch
      %72 = sbr.rel (0) target = $region49
    $region48: #{tpu_custom_call.1} parent=1 // pred_region
      %73 = dma.done [#allocation6], 256
    $region49: #{tpu_custom_call.1} parent=1 // pred_fallthru
      _
    // Predicated region
    $region50: #{tpu_custom_call.1} parent=1 // pred_check
      _
    $region51: #{tpu_custom_call.1} parent=1 // pred_check_branch
      %75 = sbr.rel (0) target = $region53
    $region52: #{tpu_custom_call.1} parent=1 // pred_region
      %76 = dma.done [#allocation6], 512
    $region53: #{tpu_custom_call.1} parent=1 // pred_fallthru
      _
    %v77 = vld [vmem:[#allocation2] sm:$0xff]
    %v78 = vld [vmem:[#allocation2 + $0x8] sm:$0xff]
    %v79 = vld [vmem:[#allocation5] sm:$0xff]
    %v80 = vld [vmem:[#allocation5 + $0x8] sm:$0xff]
    %v81 = vld [vmem:[%s9] sm:$0xff]
    %v82 = vld [vmem:[%s9 + $0x8] sm:$0x1f]
    %v83 = vld [vmem:[%s2] sm:$0xff]
    %v84 = vld [vmem:[%s2 + $0x8] sm:$0xff]
    %v85 = vld [vmem:[%s2 + $0x10] sm:$0xff]
    %v86 = vld [vmem:[%s2 + $0x18] sm:$0xff]
    %v87 = vlaneseq
    %v88 = vshrl.u32 %v87, 7
    %v89 = vsub.s32 0, %v88
    %v90 = vrot.slane %v81, %v89
    %vm91 = vcmask 261120
    %v93 = vsel %vm91, %v77, 0
    %v96 = vsel %vm91, %v78, 0
    %98 = vmatprep.subr.mxu0 0.0
    %99 = vmatpush1.msra.mxu0 %v83
    %100 = vmatprep.subr.mxu0 0.0
    %101 = vmatpush1.msra.mxu0 %v84
    %102 = vmatprep.subr.mxu0 0.0
    %103 = vmatpush1.msra.mxu0 %v85
    %104 = vmatprep.subr.mxu0 0.0
    %105 = vmatpush1.msra.mxu0 %v86
    %106 = vmatprep.subr.mxu0 0.0
    %107 = vmatpush1.msra.mxu0 0.0
    %108 = vmatprep.subr.mxu0 0.0
    %109 = vmatpush1.msra.mxu0 0.0
    %110 = vmatprep.subr.mxu0 0.0
    %111 = vmatpush1.msra.mxu0 0.0
    %112 = vmatprep.subr.mxu0 0.0
    %113 = vmatpush1.msra.mxu0 0.0
    %114 = vmatprep.subr.mxu0 0.0
    %115 = vmatpush1.msra.mxu0 0.0
    %116 = vmatprep.subr.mxu0 0.0
    %117 = vmatpush1.msra.mxu0 0.0
    %118 = vmatprep.subr.mxu0 0.0
    %119 = vmatpush1.msra.mxu0 0.0
    %120 = vmatprep.subr.mxu0 0.0
    %121 = vmatpush1.msra.mxu0 0.0
    %122 = vmatprep.subr.mxu0 0.0
    %123 = vmatpush1.msra.mxu0 0.0
    %124 = vmatprep.subr.mxu0 0.0
    %125 = vmatpush1.msra.mxu0 0.0
    %126 = vmatprep.subr.mxu0 0.0
    %127 = vmatpush1.msra.mxu0 0.0
    %128 = vmatprep.subr.mxu0 0.0
    %129 = vmatpush1.msra.mxu0 0.0
    %130 = vmatprep.subr.mxu0 0.0
    %131 = vmatpush1.msra.mxu0 0.0
    %132 = vmatprep.subr.mxu0 0.0
    %133 = vmatpush1.msra.mxu0 0.0
    %134 = vmatprep.subr.mxu0 0.0
    %135 = vmatpush1.msra.mxu0 0.0
    %136 = vmatprep.subr.mxu0 0.0
    %137 = vmatpush1.msra.mxu0 0.0
    %138 = vmatprep.subr.mxu0 0.0
    %139 = vmatpush1.msra.mxu0 0.0
    %140 = vmatprep.subr.mxu0 0.0
    %141 = vmatpush1.msra.mxu0 0.0
    %142 = vmatprep.subr.mxu0 0.0
    %143 = vmatpush1.msra.mxu0 0.0
    %144 = vmatprep.subr.mxu0 0.0
    %145 = vmatpush1.msra.mxu0 0.0
    %146 = vmatprep.subr.mxu0 0.0
    %147 = vmatpush1.msra.mxu0 0.0
    %148 = vmatprep.subr.mxu0 0.0
    %149 = vmatpush1.msra.mxu0 0.0
    %150 = vmatprep.subr.mxu0 0.0
    %151 = vmatpush1.msra.mxu0 0.0
    %152 = vmatprep.subr.mxu0 0.0
    %153 = vmatpush1.msra.mxu0 0.0
    %154 = vmatprep.subr.mxu0 0.0
    %155 = vmatpush1.msra.mxu0 0.0
    %156 = vmatprep.subr.mxu0 0.0
    %157 = vmatpush1.msra.mxu0 0.0
    %158 = vmatprep.subr.mxu0 0.0
    %159 = vmatpush1.msra.mxu0 0.0
    %160 = vmatprep.subr.mxu0 0.0
    %161 = vmatpush1.msra.mxu0 0.0
    %162 = vmatprep.mubr.f32.mxu0 0.0
    %163 = vmatmul.mubr.f32.gmra.mrb[0].mxu0 %v93
    %v164 = vpop.f32.mrb[0].mxu0
    %v165 = vadd.f32 %v90, %v164
    %v166 = vpop.f32.mrb[0].mxu0
    %167 = vmatprep.mubr.f32.mxu0 0.0
    %168 = vmatmul.mubr.f32.gmra.mrb[0].mxu0 %v96
    %v169 = vpop.f32.mrb[0].mxu0
    %v170 = vadd.f32 %v90, %v169
    %v171 = vpop.f32.mrb[0].mxu0
    %172 = vdwg.mxu0
    %v173 = vld [vmem:[%s3] sm:$0xff]
    %v174 = vld [vmem:[%s3 + $0x8] sm:$0xff]
    %v175 = vld [vmem:[%s3 + $0x10] sm:$0xff]
    %v176 = vld [vmem:[%s3 + $0x18] sm:$0xff]
    %v177 = vmul.f32 %v165, 0.17677669
    %v178 = vmul.f32 %v170, 0.17677669
    %180 = vrot.lane.b32.xlu0 %v165, 96
    %v181 = vpop.permute.xlu0 %180
    %vm182 = vcmask 64512
    %v184 = vsel %vm182, %v177, 0
    %v186 = vsel %vm182, %v181, 0
    %188 = vmatprep.subr.mxu0 0.0
    %189 = vmatpush1.xpose.msra.mxu0 %v186
    %190 = vmatprep.subr.mxu0 0.0
    %191 = vmatpush1.xpose.msra.mxu0 0.0
    %192 = vmatprep.subr.mxu0 0.0
    %193 = vmatpush1.xpose.msra.mxu0 0.0
    %194 = vmatprep.subr.mxu0 0.0
    %195 = vmatpush1.xpose.msra.mxu0 0.0
    %196 = vmatprep.subr.mxu0 0.0
    %197 = vmatpush1.xpose.msra.mxu0 0.0
    %198 = vmatprep.subr.mxu0 0.0
    %199 = vmatpush1.xpose.msra.mxu0 0.0
    %200 = vmatprep.subr.mxu0 0.0
    %201 = vmatpush1.xpose.msra.mxu0 0.0
    %202 = vmatprep.subr.mxu0 0.0
    %203 = vmatpush1.xpose.msra.mxu0 0.0
    %204 = vmatprep.subr.mxu0 0.0
    %205 = vmatpush1.xpose.msra.mxu0 0.0
    %206 = vmatprep.subr.mxu0 0.0
    %207 = vmatpush1.xpose.msra.mxu0 0.0
    %208 = vmatprep.subr.mxu0 0.0
    %209 = vmatpush1.xpose.msra.mxu0 0.0
    %210 = vmatprep.subr.mxu0 0.0
    %211 = vmatpush1.xpose.msra.mxu0 0.0
    %212 = vmatprep.subr.mxu0 0.0
    %213 = vmatpush1.xpose.msra.mxu0 0.0
    %214 = vmatprep.subr.mxu0 0.0
    %215 = vmatpush1.xpose.msra.mxu0 0.0
    %216 = vmatprep.subr.mxu0 0.0
    %217 = vmatpush1.xpose.msra.mxu0 0.0
    %218 = vmatprep.subr.mxu0 0.0
    %219 = vmatpush1.xpose.msra.mxu0 0.0
    %220 = vmatprep.subr.mxu0 0.0
    %221 = vmatpush1.xpose.msra.mxu0 0.0
    %222 = vmatprep.subr.mxu0 0.0
    %223 = vmatpush1.xpose.msra.mxu0 0.0
    %224 = vmatprep.subr.mxu0 0.0
    %225 = vmatpush1.xpose.msra.mxu0 0.0
    %226 = vmatprep.subr.mxu0 0.0
    %227 = vmatpush1.xpose.msra.mxu0 0.0
    %228 = vmatprep.subr.mxu0 0.0
    %229 = vmatpush1.xpose.msra.mxu0 0.0
    %230 = vmatprep.subr.mxu0 0.0
    %231 = vmatpush1.xpose.msra.mxu0 0.0
    %232 = vmatprep.subr.mxu0 0.0
    %233 = vmatpush1.xpose.msra.mxu0 0.0
    %234 = vmatprep.subr.mxu0 0.0
    %235 = vmatpush1.xpose.msra.mxu0 0.0
    %236 = vmatprep.subr.mxu0 0.0
    %237 = vmatpush1.xpose.msra.mxu0 0.0
    %238 = vmatprep.subr.mxu0 0.0
    %239 = vmatpush1.xpose.msra.mxu0 0.0
    %240 = vmatprep.subr.mxu0 0.0
    %241 = vmatpush1.xpose.msra.mxu0 0.0
    %242 = vmatprep.subr.mxu0 0.0
    %243 = vmatpush1.xpose.msra.mxu0 0.0
    %244 = vmatprep.subr.mxu0 0.0
    %245 = vmatpush1.xpose.msra.mxu0 0.0
    %246 = vmatprep.subr.mxu0 0.0
    %247 = vmatpush1.xpose.msra.mxu0 0.0
    %248 = vmatprep.subr.mxu0 0.0
    %249 = vmatpush1.xpose.msra.mxu0 0.0
    %250 = vmatprep.subr.mxu0 0.0
    %251 = vmatpush1.xpose.msra.mxu0 0.0
    %252 = vmatprep.mubr.f32.mxu0 0.0
    %253 = vmatmul.mubr.f32.gmra.mrb[0].mxu0 %v184
    %v254 = vpop.f32.mrb[0].mxu0
    %v255 = vadd.f32 0.0, %v254
    %v256 = vpop.f32.mrb[0].mxu0
    %257 = vdwg.mxu0
    %259 = vrot.lane.b32.xlu0 %v170, 96
    %v260 = vpop.permute.xlu0 %259
    %v262 = vsel %vm182, %v178, 0
    %v264 = vsel %vm182, %v260, 0
    %266 = vmatprep.subr.mxu0 0.0
    %267 = vmatpush1.xpose.msra.mxu0 %v264
    %268 = vmatprep.subr.mxu0 0.0
    %269 = vmatpush1.xpose.msra.mxu0 0.0
    %270 = vmatprep.subr.mxu0 0.0
    %271 = vmatpush1.xpose.msra.mxu0 0.0
    %272 = vmatprep.subr.mxu0 0.0
    %273 = vmatpush1.xpose.msra.mxu0 0.0
    %274 = vmatprep.subr.mxu0 0.0
    %275 = vmatpush1.xpose.msra.mxu0 0.0
    %276 = vmatprep.subr.mxu0 0.0
    %277 = vmatpush1.xpose.msra.mxu0 0.0
    %278 = vmatprep.subr.mxu0 0.0
    %279 = vmatpush1.xpose.msra.mxu0 0.0
    %280 = vmatprep.subr.mxu0 0.0
    %281 = vmatpush1.xpose.msra.mxu0 0.0
    %282 = vmatprep.subr.mxu0 0.0
    %283 = vmatpush1.xpose.msra.mxu0 0.0
    %284 = vmatprep.subr.mxu0 0.0
    %285 = vmatpush1.xpose.msra.mxu0 0.0
    %286 = vmatprep.subr.mxu0 0.0
    %287 = vmatpush1.xpose.msra.mxu0 0.0
    %288 = vmatprep.subr.mxu0 0.0
    %289 = vmatpush1.xpose.msra.mxu0 0.0
    %290 = vmatprep.subr.mxu0 0.0
    %291 = vmatpush1.xpose.msra.mxu0 0.0
    %292 = vmatprep.subr.mxu0 0.0
    %293 = vmatpush1.xpose.msra.mxu0 0.0
    %294 = vmatprep.subr.mxu0 0.0
    %295 = vmatpush1.xpose.msra.mxu0 0.0
    %296 = vmatprep.subr.mxu0 0.0
    %297 = vmatpush1.xpose.msra.mxu0 0.0
    %298 = vmatprep.subr.mxu0 0.0
    %299 = vmatpush1.xpose.msra.mxu0 0.0
    %300 = vmatprep.subr.mxu0 0.0
    %301 = vmatpush1.xpose.msra.mxu0 0.0
    %302 = vmatprep.subr.mxu0 0.0
    %303 = vmatpush1.xpose.msra.mxu0 0.0
    %304 = vmatprep.subr.mxu0 0.0
    %305 = vmatpush1.xpose.msra.mxu0 0.0
    %306 = vmatprep.subr.mxu0 0.0
    %307 = vmatpush1.xpose.msra.mxu0 0.0
    %308 = vmatprep.subr.mxu0 0.0
    %309 = vmatpush1.xpose.msra.mxu0 0.0
    %310 = vmatprep.subr.mxu0 0.0
    %311 = vmatpush1.xpose.msra.mxu0 0.0
    %312 = vmatprep.subr.mxu0 0.0
    %313 = vmatpush1.xpose.msra.mxu0 0.0
    %314 = vmatprep.subr.mxu0 0.0
    %315 = vmatpush1.xpose.msra.mxu0 0.0
    %316 = vmatprep.subr.mxu0 0.0
    %317 = vmatpush1.xpose.msra.mxu0 0.0
    %318 = vmatprep.subr.mxu0 0.0
    %319 = vmatpush1.xpose.msra.mxu0 0.0
    %320 = vmatprep.subr.mxu0 0.0
    %321 = vmatpush1.xpose.msra.mxu0 0.0
    %322 = vmatprep.subr.mxu0 0.0
    %323 = vmatpush1.xpose.msra.mxu0 0.0
    %324 = vmatprep.subr.mxu0 0.0
    %325 = vmatpush1.xpose.msra.mxu0 0.0
    %326 = vmatprep.subr.mxu0 0.0
    %327 = vmatpush1.xpose.msra.mxu0 0.0
    %328 = vmatprep.subr.mxu0 0.0
    %329 = vmatpush1.xpose.msra.mxu0 0.0
    %330 = vmatprep.mubr.f32.mxu0 0.0
    %331 = vmatmul.mubr.f32.gmra.mrb[0].mxu0 %v262
    %v332 = vpop.f32.mrb[0].mxu0
    %v333 = vadd.f32 0.0, %v332
    %v334 = vpop.f32.mrb[0].mxu0
    %335 = vdwg.mxu0
    %v336 = vsel %vm182, %v255, -inf
    %337 = vmax.xlane.f32.xlu0 %v336
    %v338 = vpop.xlane.xlu0 %337
    %v339 = vsel %vm182, %v333, -inf
    %340 = vmax.xlane.f32.xlu0 %v339
    %v341 = vpop.xlane.xlu0 %340
    %v342 = vsub.f32 %v255, %v338
    %v343 = vsub.f32 %v333, %v341
    %v344 = vmul.f32 %v342, 1.442695
    %v345 = vpow.pop %v344
    %v346 = vmul.f32 %v343, 1.442695
    %v347 = vpow.pop %v346
    %v348 = vsel %vm182, %v345, 0.0
    %349 = vadd.xlane.f32.xlu0 %v348
    %v350 = vpop.xlane.xlu0 %349
    %v351 = vsel %vm182, %v347, 0.0
    %352 = vadd.xlane.f32.xlu0 %v351
    %v353 = vpop.xlane.xlu0 %352
    %v354 = vrcp.pop %v350
    %v355 = vrcp.pop %v353
    %v356 = vmul.f32 %v345, %v354
    %v357 = vmul.f32 %v347, %v355
    %358 = vrot.lane.b32.xlu0 %v165, 64
    %v359 = vpop.permute.xlu0 %358
    %v362 = vsel %vm182, %v356, 0
    %364 = vmatprep.subr.mxu0 0.0
    %365 = vmatpush1.msra.mxu0 %v359
    %366 = vmatprep.subr.mxu0 0.0
    %367 = vmatpush1.msra.mxu0 0.0
    %368 = vmatprep.subr.mxu0 0.0
    %369 = vmatpush1.msra.mxu0 0.0
    %370 = vmatprep.subr.mxu0 0.0
    %371 = vmatpush1.msra.mxu0 0.0
    %372 = vmatprep.subr.mxu0 0.0
    %373 = vmatpush1.msra.mxu0 0.0
    %374 = vmatprep.subr.mxu0 0.0
    %375 = vmatpush1.msra.mxu0 0.0
    %376 = vmatprep.subr.mxu0 0.0
    %377 = vmatpush1.msra.mxu0 0.0
    %378 = vmatprep.subr.mxu0 0.0
    %379 = vmatpush1.msra.mxu0 0.0
    %380 = vmatprep.subr.mxu0 0.0
    %381 = vmatpush1.msra.mxu0 0.0
    %382 = vmatprep.subr.mxu0 0.0
    %383 = vmatpush1.msra.mxu0 0.0
    %384 = vmatprep.subr.mxu0 0.0
    %385 = vmatpush1.msra.mxu0 0.0
    %386 = vmatprep.subr.mxu0 0.0
    %387 = vmatpush1.msra.mxu0 0.0
    %388 = vmatprep.subr.mxu0 0.0
    %389 = vmatpush1.msra.mxu0 0.0
    %390 = vmatprep.subr.mxu0 0.0
    %391 = vmatpush1.msra.mxu0 0.0
    %392 = vmatprep.subr.mxu0 0.0
    %393 = vmatpush1.msra.mxu0 0.0
    %394 = vmatprep.subr.mxu0 0.0
    %395 = vmatpush1.msra.mxu0 0.0
    %396 = vmatprep.subr.mxu0 0.0
    %397 = vmatpush1.msra.mxu0 0.0
    %398 = vmatprep.subr.mxu0 0.0
    %399 = vmatpush1.msra.mxu0 0.0
    %400 = vmatprep.subr.mxu0 0.0
    %401 = vmatpush1.msra.mxu0 0.0
    %402 = vmatprep.subr.mxu0 0.0
    %403 = vmatpush1.msra.mxu0 0.0
    %404 = vmatprep.subr.mxu0 0.0
    %405 = vmatpush1.msra.mxu0 0.0
    %406 = vmatprep.subr.mxu0 0.0
    %407 = vmatpush1.msra.mxu0 0.0
    %408 = vmatprep.subr.mxu0 0.0
    %409 = vmatpush1.msra.mxu0 0.0
    %410 = vmatprep.subr.mxu0 0.0
    %411 = vmatpush1.msra.mxu0 0.0
    %412 = vmatprep.subr.mxu0 0.0
    %413 = vmatpush1.msra.mxu0 0.0
    %414 = vmatprep.subr.mxu0 0.0
    %415 = vmatpush1.msra.mxu0 0.0
    %416 = vmatprep.subr.mxu0 0.0
    %417 = vmatpush1.msra.mxu0 0.0
    %418 = vmatprep.subr.mxu0 0.0
    %419 = vmatpush1.msra.mxu0 0.0
    %420 = vmatprep.subr.mxu0 0.0
    %421 = vmatpush1.msra.mxu0 0.0
    %422 = vmatprep.subr.mxu0 0.0
    %423 = vmatpush1.msra.mxu0 0.0
    %424 = vmatprep.subr.mxu0 0.0
    %425 = vmatpush1.msra.mxu0 0.0
    %426 = vmatprep.subr.mxu0 0.0
    %427 = vmatpush1.msra.mxu0 0.0
    %428 = vmatprep.mubr.f32.mxu0 0.0
    %429 = vmatmul.mubr.f32.gmra.mrb[0].mxu0 %v362
    %v430 = vpop.f32.mrb[0].mxu0
    %v431 = vadd.f32 0.0, %v430
    %v432 = vpop.f32.mrb[0].mxu0
    %433 = vdwg.mxu0
    %434 = vrot.lane.b32.xlu0 %v170, 64
    %v435 = vpop.permute.xlu0 %434
    %v438 = vsel %vm182, %v357, 0
    %440 = vmatprep.subr.mxu0 0.0
    %441 = vmatpush1.msra.mxu0 %v435
    %442 = vmatprep.subr.mxu0 0.0
    %443 = vmatpush1.msra.mxu0 0.0
    %444 = vmatprep.subr.mxu0 0.0
    %445 = vmatpush1.msra.mxu0 0.0
    %446 = vmatprep.subr.mxu0 0.0
    %447 = vmatpush1.msra.mxu0 0.0
    %448 = vmatprep.subr.mxu0 0.0
    %449 = vmatpush1.msra.mxu0 0.0
    %450 = vmatprep.subr.mxu0 0.0
    %451 = vmatpush1.msra.mxu0 0.0
    %452 = vmatprep.subr.mxu0 0.0
    %453 = vmatpush1.msra.mxu0 0.0
    %454 = vmatprep.subr.mxu0 0.0
    %455 = vmatpush1.msra.mxu0 0.0
    %456 = vmatprep.subr.mxu0 0.0
    %457 = vmatpush1.msra.mxu0 0.0
    %458 = vmatprep.subr.mxu0 0.0
    %459 = vmatpush1.msra.mxu0 0.0
    %460 = vmatprep.subr.mxu0 0.0
    %461 = vmatpush1.msra.mxu0 0.0
    %462 = vmatprep.subr.mxu0 0.0
    %463 = vmatpush1.msra.mxu0 0.0
    %464 = vmatprep.subr.mxu0 0.0
    %465 = vmatpush1.msra.mxu0 0.0
    %466 = vmatprep.subr.mxu0 0.0
    %467 = vmatpush1.msra.mxu0 0.0
    %468 = vmatprep.subr.mxu0 0.0
    %469 = vmatpush1.msra.mxu0 0.0
    %470 = vmatprep.subr.mxu0 0.0
    %471 = vmatpush1.msra.mxu0 0.0
    %472 = vmatprep.subr.mxu0 0.0
    %473 = vmatpush1.msra.mxu0 0.0
    %474 = vmatprep.subr.mxu0 0.0
    %475 = vmatpush1.msra.mxu0 0.0
    %476 = vmatprep.subr.mxu0 0.0
    %477 = vmatpush1.msra.mxu0 0.0
    %478 = vmatprep.subr.mxu0 0.0
    %479 = vmatpush1.msra.mxu0 0.0
    %480 = vmatprep.subr.mxu0 0.0
    %481 = vmatpush1.msra.mxu0 0.0
    %482 = vmatprep.subr.mxu0 0.0
    %483 = vmatpush1.msra.mxu0 0.0
    %484 = vmatprep.subr.mxu0 0.0
    %485 = vmatpush1.msra.mxu0 0.0
    %486 = vmatprep.subr.mxu0 0.0
    %487 = vmatpush1.msra.mxu0 0.0
    %488 = vmatprep.subr.mxu0 0.0
    %489 = vmatpush1.msra.mxu0 0.0
    %490 = vmatprep.subr.mxu0 0.0
    %491 = vmatpush1.msra.mxu0 0.0
    %492 = vmatprep.subr.mxu0 0.0
    %493 = vmatpush1.msra.mxu0 0.0
    %494 = vmatprep.subr.mxu0 0.0
    %495 = vmatpush1.msra.mxu0 0.0
    %496 = vmatprep.subr.mxu0 0.0
    %497 = vmatpush1.msra.mxu0 0.0
    %498 = vmatprep.subr.mxu0 0.0
    %499 = vmatpush1.msra.mxu0 0.0
    %500 = vmatprep.subr.mxu0 0.0
    %501 = vmatpush1.msra.mxu0 0.0
    %502 = vmatprep.subr.mxu0 0.0
    %503 = vmatpush1.msra.mxu0 0.0
    %504 = vmatprep.mubr.f32.mxu0 0.0
    %505 = vmatmul.mubr.f32.gmra.mrb[0].mxu0 %v438
    %v506 = vpop.f32.mrb[0].mxu0
    %v507 = vadd.f32 0.0, %v506
    %v508 = vpop.f32.mrb[0].mxu0
    %509 = vdwg.mxu0
    %510 = vrot.lane.b32.xlu0 %v177, 120
    %v511 = vpop.permute.xlu0 %510
    %512 = vrot.lane.b32.xlu0 %v165, 88
    %v513 = vpop.permute.xlu0 %512
    %v514 = vsel %vm182, %v511, 0
    %v516 = vsel %vm182, %v513, 0
    %518 = vmatprep.subr.mxu0 0.0
    %519 = vmatpush1.xpose.msra.mxu0 %v516
    %520 = vmatprep.subr.mxu0 0.0
    %521 = vmatpush1.xpose.msra.mxu0 0.0
    %522 = vmatprep.subr.mxu0 0.0
    %523 = vmatpush1.xpose.msra.mxu0 0.0
    %524 = vmatprep.subr.mxu0 0.0
    %525 = vmatpush1.xpose.msra.mxu0 0.0
    %526 = vmatprep.subr.mxu0 0.0
    %527 = vmatpush1.xpose.msra.mxu0 0.0
    %528 = vmatprep.subr.mxu0 0.0
    %529 = vmatpush1.xpose.msra.mxu0 0.0
    %530 = vmatprep.subr.mxu0 0.0
    %531 = vmatpush1.xpose.msra.mxu0 0.0
    %532 = vmatprep.subr.mxu0 0.0
    %533 = vmatpush1.xpose.msra.mxu0 0.0
    %534 = vmatprep.subr.mxu0 0.0
    %535 = vmatpush1.xpose.msra.mxu0 0.0
    %536 = vmatprep.subr.mxu0 0.0
    %537 = vmatpush1.xpose.msra.mxu0 0.0
    %538 = vmatprep.subr.mxu0 0.0
    %539 = vmatpush1.xpose.msra.mxu0 0.0
    %540 = vmatprep.subr.mxu0 0.0
    %541 = vmatpush1.xpose.msra.mxu0 0.0
    %542 = vmatprep.subr.mxu0 0.0
    %543 = vmatpush1.xpose.msra.mxu0 0.0
    %544 = vmatprep.subr.mxu0 0.0
    %545 = vmatpush1.xpose.msra.mxu0 0.0
    %546 = vmatprep.subr.mxu0 0.0
    %547 = vmatpush1.xpose.msra.mxu0 0.0
    %548 = vmatprep.subr.mxu0 0.0
    %549 = vmatpush1.xpose.msra.mxu0 0.0
    %550 = vmatprep.subr.mxu0 0.0
    %551 = vmatpush1.xpose.msra.mxu0 0.0
    %552 = vmatprep.subr.mxu0 0.0
    %553 = vmatpush1.xpose.msra.mxu0 0.0
    %554 = vmatprep.subr.mxu0 0.0
    %555 = vmatpush1.xpose.msra.mxu0 0.0
    %556 = vmatprep.subr.mxu0 0.0
    %557 = vmatpush1.xpose.msra.mxu0 0.0
    %558 = vmatprep.subr.mxu0 0.0
    %559 = vmatpush1.xpose.msra.mxu0 0.0
    %560 = vmatprep.subr.mxu0 0.0
    %561 = vmatpush1.xpose.msra.mxu0 0.0
    %562 = vmatprep.subr.mxu0 0.0
    %563 = vmatpush1.xpose.msra.mxu0 0.0
    %564 = vmatprep.subr.mxu0 0.0
    %565 = vmatpush1.xpose.msra.mxu0 0.0
    %566 = vmatprep.subr.mxu0 0.0
    %567 = vmatpush1.xpose.msra.mxu0 0.0
    %568 = vmatprep.subr.mxu0 0.0
    %569 = vmatpush1.xpose.msra.mxu0 0.0
    %570 = vmatprep.subr.mxu0 0.0
    %571 = vmatpush1.xpose.msra.mxu0 0.0
    %572 = vmatprep.subr.mxu0 0.0
    %573 = vmatpush1.xpose.msra.mxu0 0.0
    %574 = vmatprep.subr.mxu0 0.0
    %575 = vmatpush1.xpose.msra.mxu0 0.0
    %576 = vmatprep.subr.mxu0 0.0
    %577 = vmatpush1.xpose.msra.mxu0 0.0
    %578 = vmatprep.subr.mxu0 0.0
    %579 = vmatpush1.xpose.msra.mxu0 0.0
    %580 = vmatprep.subr.mxu0 0.0
    %581 = vmatpush1.xpose.msra.mxu0 0.0
    %582 = vmatprep.mubr.f32.mxu0 0.0
    %583 = vmatmul.mubr.f32.gmra.mrb[0].mxu0 %v514
    %v584 = vpop.f32.mrb[0].mxu0
    %v585 = vadd.f32 0.0, %v584
    %v586 = vpop.f32.mrb[0].mxu0
    %587 = vdwg.mxu0
    %588 = vrot.lane.b32.xlu0 %v178, 120
    %v589 = vpop.permute.xlu0 %588
    %590 = vrot.lane.b32.xlu0 %v170, 88
    %v591 = vpop.permute.xlu0 %590
    %v592 = vsel %vm182, %v589, 0
    %v594 = vsel %vm182, %v591, 0
    %596 = vmatprep.subr.mxu0 0.0
    %597 = vmatpush1.xpose.msra.mxu0 %v594
    %598 = vmatprep.subr.mxu0 0.0
    %599 = vmatpush1.xpose.msra.mxu0 0.0
    %600 = vmatprep.subr.mxu0 0.0
    %601 = vmatpush1.xpose.msra.mxu0 0.0
    %602 = vmatprep.subr.mxu0 0.0
    %603 = vmatpush1.xpose.msra.mxu0 0.0
    %604 = vmatprep.subr.mxu0 0.0
    %605 = vmatpush1.xpose.msra.mxu0 0.0
    %606 = vmatprep.subr.mxu0 0.0
    %607 = vmatpush1.xpose.msra.mxu0 0.0
    %608 = vmatprep.subr.mxu0 0.0
    %609 = vmatpush1.xpose.msra.mxu0 0.0
    %610 = vmatprep.subr.mxu0 0.0
    %611 = vmatpush1.xpose.msra.mxu0 0.0
    %612 = vmatprep.subr.mxu0 0.0
    %613 = vmatpush1.xpose.msra.mxu0 0.0
    %614 = vmatprep.subr.mxu0 0.0
    %615 = vmatpush1.xpose.msra.mxu0 0.0
    %616 = vmatprep.subr.mxu0 0.0
    %617 = vmatpush1.xpose.msra.mxu0 0.0
    %618 = vmatprep.subr.mxu0 0.0
    %619 = vmatpush1.xpose.msra.mxu0 0.0
    %620 = vmatprep.subr.mxu0 0.0
    %621 = vmatpush1.xpose.msra.mxu0 0.0
    %622 = vmatprep.subr.mxu0 0.0
    %623 = vmatpush1.xpose.msra.mxu0 0.0
    %624 = vmatprep.subr.mxu0 0.0
    %625 = vmatpush1.xpose.msra.mxu0 0.0
    %626 = vmatprep.subr.mxu0 0.0
    %627 = vmatpush1.xpose.msra.mxu0 0.0
    %628 = vmatprep.subr.mxu0 0.0
    %629 = vmatpush1.xpose.msra.mxu0 0.0
    %630 = vmatprep.subr.mxu0 0.0
    %631 = vmatpush1.xpose.msra.mxu0 0.0
    %632 = vmatprep.subr.mxu0 0.0
    %633 = vmatpush1.xpose.msra.mxu0 0.0
    %634 = vmatprep.subr.mxu0 0.0
    %635 = vmatpush1.xpose.msra.mxu0 0.0
    %636 = vmatprep.subr.mxu0 0.0
    %637 = vmatpush1.xpose.msra.mxu0 0.0
    %638 = vmatprep.subr.mxu0 0.0
    %639 = vmatpush1.xpose.msra.mxu0 0.0
    %640 = vmatprep.subr.mxu0 0.0
    %641 = vmatpush1.xpose.msra.mxu0 0.0
    %642 = vmatprep.subr.mxu0 0.0
    %643 = vmatpush1.xpose.msra.mxu0 0.0
    %644 = vmatprep.subr.mxu0 0.0
    %645 = vmatpush1.xpose.msra.mxu0 0.0
    %646 = vmatprep.subr.mxu0 0.0
    %647 = vmatpush1.xpose.msra.mxu0 0.0
    %648 = vmatprep.subr.mxu0 0.0
    %649 = vmatpush1.xpose.msra.mxu0 0.0
    %650 = vmatprep.subr.mxu0 0.0
    %651 = vmatpush1.xpose.msra.mxu0 0.0
    %652 = vmatprep.subr.mxu0 0.0
    %653 = vmatpush1.xpose.msra.mxu0 0.0
    %654 = vmatprep.subr.mxu0 0.0
    %655 = vmatpush1.xpose.msra.mxu0 0.0
    %656 = vmatprep.subr.mxu0 0.0
    %657 = vmatpush1.xpose.msra.mxu0 0.0
    %658 = vmatprep.subr.mxu0 0.0
    %659 = vmatpush1.xpose.msra.mxu0 0.0
    %660 = vmatprep.mubr.f32.mxu0 0.0
    %661 = vmatmul.mubr.f32.gmra.mrb[0].mxu0 %v592
    %v662 = vpop.f32.mrb[0].mxu0
    %v663 = vadd.f32 0.0, %v662
    %v664 = vpop.f32.mrb[0].mxu0
    %665 = vdwg.mxu0
    %v666 = vsel %vm182, %v585, -inf
    %667 = vmax.xlane.f32.xlu0 %v666
    %v668 = vpop.xlane.xlu0 %667
    %v669 = vsel %vm182, %v663, -inf
    %670 = vmax.xlane.f32.xlu0 %v669
    %v671 = vpop.xlane.xlu0 %670
    %v672 = vsub.f32 %v585, %v668
    %v673 = vsub.f32 %v663, %v671
    %v674 = vmul.f32 %v672, 1.442695
    %v675 = vpow.pop %v674
    %v676 = vmul.f32 %v673, 1.442695
    %v677 = vpow.pop %v676
    %v678 = vsel %vm182, %v675, 0.0
    %679 = vadd.xlane.f32.xlu0 %v678
    %v680 = vpop.xlane.xlu0 %679
    %v681 = vsel %vm182, %v677, 0.0
    %682 = vadd.xlane.f32.xlu0 %v681
    %v683 = vpop.xlane.xlu0 %682
    %v684 = vrcp.pop %v680
    %v685 = vrcp.pop %v683
    %v686 = vmul.f32 %v675, %v684
    %v687 = vmul.f32 %v677, %v685
    %688 = vrot.lane.b32.xlu0 %v165, 56
    %v689 = vpop.permute.xlu0 %688
    %v692 = vsel %vm182, %v686, 0
    %694 = vmatprep.subr.mxu0 0.0
    %695 = vmatpush1.msra.mxu0 %v689
    %696 = vmatprep.subr.mxu0 0.0
    %697 = vmatpush1.msra.mxu0 0.0
    %698 = vmatprep.subr.mxu0 0.0
    %699 = vmatpush1.msra.mxu0 0.0
    %700 = vmatprep.subr.mxu0 0.0
    %701 = vmatpush1.msra.mxu0 0.0
    %702 = vmatprep.subr.mxu0 0.0
    %703 = vmatpush1.msra.mxu0 0.0
    %704 = vmatprep.subr.mxu0 0.0
    %705 = vmatpush1.msra.mxu0 0.0
    %706 = vmatprep.subr.mxu0 0.0
    %707 = vmatpush1.msra.mxu0 0.0
    %708 = vmatprep.subr.mxu0 0.0
    %709 = vmatpush1.msra.mxu0 0.0
    %710 = vmatprep.subr.mxu0 0.0
    %711 = vmatpush1.msra.mxu0 0.0
    %712 = vmatprep.subr.mxu0 0.0
    %713 = vmatpush1.msra.mxu0 0.0
    %714 = vmatprep.subr.mxu0 0.0
    %715 = vmatpush1.msra.mxu0 0.0
    %716 = vmatprep.subr.mxu0 0.0
    %717 = vmatpush1.msra.mxu0 0.0
    %718 = vmatprep.subr.mxu0 0.0
    %719 = vmatpush1.msra.mxu0 0.0
    %720 = vmatprep.subr.mxu0 0.0
    %721 = vmatpush1.msra.mxu0 0.0
    %722 = vmatprep.subr.mxu0 0.0
    %723 = vmatpush1.msra.mxu0 0.0
    %724 = vmatprep.subr.mxu0 0.0
    %725 = vmatpush1.msra.mxu0 0.0
    %726 = vmatprep.subr.mxu0 0.0
    %727 = vmatpush1.msra.mxu0 0.0
    %728 = vmatprep.subr.mxu0 0.0
    %729 = vmatpush1.msra.mxu0 0.0
    %730 = vmatprep.subr.mxu0 0.0
    %731 = vmatpush1.msra.mxu0 0.0
    %732 = vmatprep.subr.mxu0 0.0
    %733 = vmatpush1.msra.mxu0 0.0
    %734 = vmatprep.subr.mxu0 0.0
    %735 = vmatpush1.msra.mxu0 0.0
    %736 = vmatprep.subr.mxu0 0.0
    %737 = vmatpush1.msra.mxu0 0.0
    %738 = vmatprep.subr.mxu0 0.0
    %739 = vmatpush1.msra.mxu0 0.0
    %740 = vmatprep.subr.mxu0 0.0
    %741 = vmatpush1.msra.mxu0 0.0
    %742 = vmatprep.subr.mxu0 0.0
    %743 = vmatpush1.msra.mxu0 0.0
    %744 = vmatprep.subr.mxu0 0.0
    %745 = vmatpush1.msra.mxu0 0.0
    %746 = vmatprep.subr.mxu0 0.0
    %747 = vmatpush1.msra.mxu0 0.0
    %748 = vmatprep.subr.mxu0 0.0
    %749 = vmatpush1.msra.mxu0 0.0
    %750 = vmatprep.subr.mxu0 0.0
    %751 = vmatpush1.msra.mxu0 0.0
    %752 = vmatprep.subr.mxu0 0.0
    %753 = vmatpush1.msra.mxu0 0.0
    %754 = vmatprep.subr.mxu0 0.0
    %755 = vmatpush1.msra.mxu0 0.0
    %756 = vmatprep.subr.mxu0 0.0
    %757 = vmatpush1.msra.mxu0 0.0
    %758 = vmatprep.mubr.f32.mxu0 0.0
    %759 = vmatmul.mubr.f32.gmra.mrb[0].mxu0 %v692
    %v760 = vpop.f32.mrb[0].mxu0
    %v761 = vadd.f32 0.0, %v760
    %v762 = vpop.f32.mrb[0].mxu0
    %763 = vdwg.mxu0
    %764 = vrot.lane.b32.xlu0 %v170, 56
    %v765 = vpop.permute.xlu0 %764
    %v768 = vsel %vm182, %v687, 0
    %770 = vmatprep.subr.mxu0 0.0
    %771 = vmatpush1.msra.mxu0 %v765
    %772 = vmatprep.subr.mxu0 0.0
    %773 = vmatpush1.msra.mxu0 0.0
    %774 = vmatprep.subr.mxu0 0.0
    %775 = vmatpush1.msra.mxu0 0.0
    %776 = vmatprep.subr.mxu0 0.0
    %777 = vmatpush1.msra.mxu0 0.0
    %778 = vmatprep.subr.mxu0 0.0
    %779 = vmatpush1.msra.mxu0 0.0
    %780 = vmatprep.subr.mxu0 0.0
    %781 = vmatpush1.msra.mxu0 0.0
    %782 = vmatprep.subr.mxu0 0.0
    %783 = vmatpush1.msra.mxu0 0.0
    %784 = vmatprep.subr.mxu0 0.0
    %785 = vmatpush1.msra.mxu0 0.0
    %786 = vmatprep.subr.mxu0 0.0
    %787 = vmatpush1.msra.mxu0 0.0
    %788 = vmatprep.subr.mxu0 0.0
    %789 = vmatpush1.msra.mxu0 0.0
    %790 = vmatprep.subr.mxu0 0.0
    %791 = vmatpush1.msra.mxu0 0.0
    %792 = vmatprep.subr.mxu0 0.0
    %793 = vmatpush1.msra.mxu0 0.0
    %794 = vmatprep.subr.mxu0 0.0
    %795 = vmatpush1.msra.mxu0 0.0
    %796 = vmatprep.subr.mxu0 0.0
    %797 = vmatpush1.msra.mxu0 0.0
    %798 = vmatprep.subr.mxu0 0.0
    %799 = vmatpush1.msra.mxu0 0.0
    %800 = vmatprep.subr.mxu0 0.0
    %801 = vmatpush1.msra.mxu0 0.0
    %802 = vmatprep.subr.mxu0 0.0
    %803 = vmatpush1.msra.mxu0 0.0
    %804 = vmatprep.subr.mxu0 0.0
    %805 = vmatpush1.msra.mxu0 0.0
    %806 = vmatprep.subr.mxu0 0.0
    %807 = vmatpush1.msra.mxu0 0.0
    %808 = vmatprep.subr.mxu0 0.0
    %809 = vmatpush1.msra.mxu0 0.0
    %810 = vmatprep.subr.mxu0 0.0
    %811 = vmatpush1.msra.mxu0 0.0
    %812 = vmatprep.subr.mxu0 0.0
    %813 = vmatpush1.msra.mxu0 0.0
    %814 = vmatprep.subr.mxu0 0.0
    %815 = vmatpush1.msra.mxu0 0.0
    %816 = vmatprep.subr.mxu0 0.0
    %817 = vmatpush1.msra.mxu0 0.0
    %818 = vmatprep.subr.mxu0 0.0
    %819 = vmatpush1.msra.mxu0 0.0
    %820 = vmatprep.subr.mxu0 0.0
    %821 = vmatpush1.msra.mxu0 0.0
    %822 = vmatprep.subr.mxu0 0.0
    %823 = vmatpush1.msra.mxu0 0.0
    %824 = vmatprep.subr.mxu0 0.0
    %825 = vmatpush1.msra.mxu0 0.0
    %826 = vmatprep.subr.mxu0 0.0
    %827 = vmatpush1.msra.mxu0 0.0
    %828 = vmatprep.subr.mxu0 0.0
    %829 = vmatpush1.msra.mxu0 0.0
    %830 = vmatprep.subr.mxu0 0.0
    %831 = vmatpush1.msra.mxu0 0.0
    %832 = vmatprep.subr.mxu0 0.0
    %833 = vmatpush1.msra.mxu0 0.0
    %834 = vmatprep.mubr.f32.mxu0 0.0
    %835 = vmatmul.mubr.f32.gmra.mrb[0].mxu0 %v768
    %v836 = vpop.f32.mrb[0].mxu0
    %v837 = vadd.f32 0.0, %v836
    %v838 = vpop.f32.mrb[0].mxu0
    %839 = vdwg.mxu0
    %v841 = vsel %vm182, %v761, 0
    %v844 = vsel %vm182, %v837, 0
    %846 = vmatprep.subr.mxu0 0.0
    %847 = vmatpush1.msra.mxu0 %v174
    %848 = vmatprep.subr.mxu0 0.0
    %849 = vmatpush1.msra.mxu0 0.0
    %850 = vmatprep.subr.mxu0 0.0
    %851 = vmatpush1.msra.mxu0 0.0
    %852 = vmatprep.subr.mxu0 0.0
    %853 = vmatpush1.msra.mxu0 0.0
    %854 = vmatprep.subr.mxu0 0.0
    %855 = vmatpush1.msra.mxu0 0.0
    %856 = vmatprep.subr.mxu0 0.0
    %857 = vmatpush1.msra.mxu0 0.0
    %858 = vmatprep.subr.mxu0 0.0
    %859 = vmatpush1.msra.mxu0 0.0
    %860 = vmatprep.subr.mxu0 0.0
    %861 = vmatpush1.msra.mxu0 0.0
    %862 = vmatprep.subr.mxu0 0.0
    %863 = vmatpush1.msra.mxu0 0.0
    %864 = vmatprep.subr.mxu0 0.0
    %865 = vmatpush1.msra.mxu0 0.0
    %866 = vmatprep.subr.mxu0 0.0
    %867 = vmatpush1.msra.mxu0 0.0
    %868 = vmatprep.subr.mxu0 0.0
    %869 = vmatpush1.msra.mxu0 0.0
    %870 = vmatprep.subr.mxu0 0.0
    %871 = vmatpush1.msra.mxu0 0.0
    %872 = vmatprep.subr.mxu0 0.0
    %873 = vmatpush1.msra.mxu0 0.0
    %874 = vmatprep.subr.mxu0 0.0
    %875 = vmatpush1.msra.mxu0 0.0
    %876 = vmatprep.subr.mxu0 0.0
    %877 = vmatpush1.msra.mxu0 0.0
    %878 = vmatprep.subr.mxu0 0.0
    %879 = vmatpush1.msra.mxu0 0.0
    %880 = vmatprep.subr.mxu0 0.0
    %881 = vmatpush1.msra.mxu0 0.0
    %882 = vmatprep.subr.mxu0 0.0
    %883 = vmatpush1.msra.mxu0 0.0
    %884 = vmatprep.subr.mxu0 0.0
    %885 = vmatpush1.msra.mxu0 0.0
    %886 = vmatprep.subr.mxu0 0.0
    %887 = vmatpush1.msra.mxu0 0.0
    %888 = vmatprep.subr.mxu0 0.0
    %889 = vmatpush1.msra.mxu0 0.0
    %890 = vmatprep.subr.mxu0 0.0
    %891 = vmatpush1.msra.mxu0 0.0
    %892 = vmatprep.subr.mxu0 0.0
    %893 = vmatpush1.msra.mxu0 0.0
    %894 = vmatprep.subr.mxu0 0.0
    %895 = vmatpush1.msra.mxu0 0.0
    %896 = vmatprep.subr.mxu0 0.0
    %897 = vmatpush1.msra.mxu0 0.0
    %898 = vmatprep.subr.mxu0 0.0
    %899 = vmatpush1.msra.mxu0 0.0
    %900 = vmatprep.subr.mxu0 0.0
    %901 = vmatpush1.msra.mxu0 0.0
    %902 = vmatprep.subr.mxu0 0.0
    %903 = vmatpush1.msra.mxu0 0.0
    %904 = vmatprep.subr.mxu0 0.0
    %905 = vmatpush1.msra.mxu0 0.0
    %906 = vmatprep.subr.mxu0 0.0
    %907 = vmatpush1.msra.mxu0 0.0
    %908 = vmatprep.subr.mxu0 0.0
    %909 = vmatpush1.msra.mxu0 0.0
    %910 = vmatprep.mubr.f32.mxu0 0.0
    %911 = vmatmul.mubr.f32.gmra.mrb[0].mxu0 %v841
    %v912 = vpop.f32.mrb[0].mxu0
    %v913 = vadd.f32 0.0, %v912
    %v914 = vpop.f32.mrb[0].mxu0
    %915 = vmatprep.mubr.f32.mxu0 0.0
    %916 = vmatmul.mubr.f32.gmra.mrb[0].mxu0 %v844
    %v917 = vpop.f32.mrb[0].mxu0
    %v918 = vadd.f32 0.0, %v917
    %v919 = vpop.f32.mrb[0].mxu0
    %920 = vdwg.mxu0
    %921 = vrot.lane.b32.xlu0 %v177, 112
    %v922 = vpop.permute.xlu0 %921
    %923 = vrot.lane.b32.xlu0 %v165, 80
    %v924 = vpop.permute.xlu0 %923
    %v925 = vsel %vm182, %v922, 0
    %v927 = vsel %vm182, %v924, 0
    %929 = vmatprep.subr.mxu0 0.0
    %930 = vmatpush1.xpose.msra.mxu0 %v927
    %931 = vmatprep.subr.mxu0 0.0
    %932 = vmatpush1.xpose.msra.mxu0 0.0
    %933 = vmatprep.subr.mxu0 0.0
    %934 = vmatpush1.xpose.msra.mxu0 0.0
    %935 = vmatprep.subr.mxu0 0.0
    %936 = vmatpush1.xpose.msra.mxu0 0.0
    %937 = vmatprep.subr.mxu0 0.0
    %938 = vmatpush1.xpose.msra.mxu0 0.0
    %939 = vmatprep.subr.mxu0 0.0
    %940 = vmatpush1.xpose.msra.mxu0 0.0
    %941 = vmatprep.subr.mxu0 0.0
    %942 = vmatpush1.xpose.msra.mxu0 0.0
    %943 = vmatprep.subr.mxu0 0.0
    %944 = vmatpush1.xpose.msra.mxu0 0.0
    %945 = vmatprep.subr.mxu0 0.0
    %946 = vmatpush1.xpose.msra.mxu0 0.0
    %947 = vmatprep.subr.mxu0 0.0
    %948 = vmatpush1.xpose.msra.mxu0 0.0
    %949 = vmatprep.subr.mxu0 0.0
    %950 = vmatpush1.xpose.msra.mxu0 0.0
    %951 = vmatprep.subr.mxu0 0.0
    %952 = vmatpush1.xpose.msra.mxu0 0.0
    %953 = vmatprep.subr.mxu0 0.0
    %954 = vmatpush1.xpose.msra.mxu0 0.0
    %955 = vmatprep.subr.mxu0 0.0
    %956 = vmatpush1.xpose.msra.mxu0 0.0
    %957 = vmatprep.subr.mxu0 0.0
    %958 = vmatpush1.xpose.msra.mxu0 0.0
    %959 = vmatprep.subr.mxu0 0.0
    %960 = vmatpush1.xpose.msra.mxu0 0.0
    %961 = vmatprep.subr.mxu0 0.0
    %962 = vmatpush1.xpose.msra.mxu0 0.0
    %963 = vmatprep.subr.mxu0 0.0
    %964 = vmatpush1.xpose.msra.mxu0 0.0
    %965 = vmatprep.subr.mxu0 0.0
    %966 = vmatpush1.xpose.msra.mxu0 0.0
    %967 = vmatprep.subr.mxu0 0.0
    %968 = vmatpush1.xpose.msra.mxu0 0.0
    %969 = vmatprep.subr.mxu0 0.0
    %970 = vmatpush1.xpose.msra.mxu0 0.0
    %971 = vmatprep.subr.mxu0 0.0
    %972 = vmatpush1.xpose.msra.mxu0 0.0
    %973 = vmatprep.subr.mxu0 0.0
    %974 = vmatpush1.xpose.msra.mxu0 0.0
    %975 = vmatprep.subr.mxu0 0.0
    %976 = vmatpush1.xpose.msra.mxu0 0.0
    %977 = vmatprep.subr.mxu0 0.0
    %978 = vmatpush1.xpose.msra.mxu0 0.0
    %979 = vmatprep.subr.mxu0 0.0
    %980 = vmatpush1.xpose.msra.mxu0 0.0
    %981 = vmatprep.subr.mxu0 0.0
    %982 = vmatpush1.xpose.msra.mxu0 0.0
    %983 = vmatprep.subr.mxu0 0.0
    %984 = vmatpush1.xpose.msra.mxu0 0.0
    %985 = vmatprep.subr.mxu0 0.0
    %986 = vmatpush1.xpose.msra.mxu0 0.0
    %987 = vmatprep.subr.mxu0 0.0
    %988 = vmatpush1.xpose.msra.mxu0 0.0
    %989 = vmatprep.subr.mxu0 0.0
    %990 = vmatpush1.xpose.msra.mxu0 0.0
    %991 = vmatprep.subr.mxu0 0.0
    %992 = vmatpush1.xpose.msra.mxu0 0.0
    %993 = vmatprep.mubr.f32.mxu0 0.0
    %994 = vmatmul.mubr.f32.gmra.mrb[0].mxu0 %v925
    %v995 = vpop.f32.mrb[0].mxu0
    %v996 = vadd.f32 0.0, %v995
    %v997 = vpop.f32.mrb[0].mxu0
    %998 = vdwg.mxu0
    %999 = vrot.lane.b32.xlu0 %v178, 112
    %v1000 = vpop.permute.xlu0 %999
    %1001 = vrot.lane.b32.xlu0 %v170, 80
    %v1002 = vpop.permute.xlu0 %1001
    %v1003 = vsel %vm182, %v1000, 0
    %v1005 = vsel %vm182, %v1002, 0
    %1007 = vmatprep.subr.mxu0 0.0
    %1008 = vmatpush1.xpose.msra.mxu0 %v1005
    %1009 = vmatprep.subr.mxu0 0.0
    %1010 = vmatpush1.xpose.msra.mxu0 0.0
    %1011 = vmatprep.subr.mxu0 0.0
    %1012 = vmatpush1.xpose.msra.mxu0 0.0
    %1013 = vmatprep.subr.mxu0 0.0
    %1014 = vmatpush1.xpose.msra.mxu0 0.0
    %1015 = vmatprep.subr.mxu0 0.0
    %1016 = vmatpush1.xpose.msra.mxu0 0.0
    %1017 = vmatprep.subr.mxu0 0.0
    %1018 = vmatpush1.xpose.msra.mxu0 0.0
    %1019 = vmatprep.subr.mxu0 0.0
    %1020 = vmatpush1.xpose.msra.mxu0 0.0
    %1021 = vmatprep.subr.mxu0 0.0
    %1022 = vmatpush1.xpose.msra.mxu0 0.0
    %1023 = vmatprep.subr.mxu0 0.0
    %1024 = vmatpush1.xpose.msra.mxu0 0.0
    %1025 = vmatprep.subr.mxu0 0.0
    %1026 = vmatpush1.xpose.msra.mxu0 0.0
    %1027 = vmatprep.subr.mxu0 0.0
    %1028 = vmatpush1.xpose.msra.mxu0 0.0
    %1029 = vmatprep.subr.mxu0 0.0
    %1030 = vmatpush1.xpose.msra.mxu0 0.0
    %1031 = vmatprep.subr.mxu0 0.0
    %1032 = vmatpush1.xpose.msra.mxu0 0.0
    %1033 = vmatprep.subr.mxu0 0.0
    %1034 = vmatpush1.xpose.msra.mxu0 0.0
    %1035 = vmatprep.subr.mxu0 0.0
    %1036 = vmatpush1.xpose.msra.mxu0 0.0
    %1037 = vmatprep.subr.mxu0 0.0
    %1038 = vmatpush1.xpose.msra.mxu0 0.0
    %1039 = vmatprep.subr.mxu0 0.0
    %1040 = vmatpush1.xpose.msra.mxu0 0.0
    %1041 = vmatprep.subr.mxu0 0.0
    %1042 = vmatpush1.xpose.msra.mxu0 0.0
    %1043 = vmatprep.subr.mxu0 0.0
    %1044 = vmatpush1.xpose.msra.mxu0 0.0
    %1045 = vmatprep.subr.mxu0 0.0
    %1046 = vmatpush1.xpose.msra.mxu0 0.0
    %1047 = vmatprep.subr.mxu0 0.0
    %1048 = vmatpush1.xpose.msra.mxu0 0.0
    %1049 = vmatprep.subr.mxu0 0.0
    %1050 = vmatpush1.xpose.msra.mxu0 0.0
    %1051 = vmatprep.subr.mxu0 0.0
    %1052 = vmatpush1.xpose.msra.mxu0 0.0
    %1053 = vmatprep.subr.mxu0 0.0
    %1054 = vmatpush1.xpose.msra.mxu0 0.0
    %1055 = vmatprep.subr.mxu0 0.0
    %1056 = vmatpush1.xpose.msra.mxu0 0.0
    %1057 = vmatprep.subr.mxu0 0.0
    %1058 = vmatpush1.xpose.msra.mxu0 0.0
    %1059 = vmatprep.subr.mxu0 0.0
    %1060 = vmatpush1.xpose.msra.mxu0 0.0
    %1061 = vmatprep.subr.mxu0 0.0
    %1062 = vmatpush1.xpose.msra.mxu0 0.0
    %1063 = vmatprep.subr.mxu0 0.0
    %1064 = vmatpush1.xpose.msra.mxu0 0.0
    %1065 = vmatprep.subr.mxu0 0.0
    %1066 = vmatpush1.xpose.msra.mxu0 0.0
    %1067 = vmatprep.subr.mxu0 0.0
    %1068 = vmatpush1.xpose.msra.mxu0 0.0
    %1069 = vmatprep.subr.mxu0 0.0
    %1070 = vmatpush1.xpose.msra.mxu0 0.0
    %1071 = vmatprep.mubr.f32.mxu0 0.0
    %1072 = vmatmul.mubr.f32.gmra.mrb[0].mxu0 %v1003
    %v1073 = vpop.f32.mrb[0].mxu0
    %v1074 = vadd.f32 0.0, %v1073
    %v1075 = vpop.f32.mrb[0].mxu0
    %1076 = vdwg.mxu0
    %v1077 = vsel %vm182, %v996, -inf
    %1078 = vmax.xlane.f32.xlu0 %v1077
    %v1079 = vpop.xlane.xlu0 %1078
    %v1080 = vsel %vm182, %v1074, -inf
    %1081 = vmax.xlane.f32.xlu0 %v1080
    %v1082 = vpop.xlane.xlu0 %1081
    %v1083 = vsub.f32 %v996, %v1079
    %v1084 = vsub.f32 %v1074, %v1082
    %v1085 = vmul.f32 %v1083, 1.442695
    %v1086 = vpow.pop %v1085
    %v1087 = vmul.f32 %v1084, 1.442695
    %v1088 = vpow.pop %v1087
    %v1089 = vsel %vm182, %v1086, 0.0
    %1090 = vadd.xlane.f32.xlu0 %v1089
    %v1091 = vpop.xlane.xlu0 %1090
    %v1092 = vsel %vm182, %v1088, 0.0
    %1093 = vadd.xlane.f32.xlu0 %v1092
    %v1094 = vpop.xlane.xlu0 %1093
    %v1095 = vrcp.pop %v1091
    %v1096 = vrcp.pop %v1094
    %v1097 = vmul.f32 %v1086, %v1095
    %v1098 = vmul.f32 %v1088, %v1096
    %1099 = vrot.lane.b32.xlu0 %v165, 48
    %v1100 = vpop.permute.xlu0 %1099
    %v1103 = vsel %vm182, %v1097, 0
    %1105 = vmatprep.subr.mxu0 0.0
    %1106 = vmatpush1.msra.mxu0 %v1100
    %1107 = vmatprep.subr.mxu0 0.0
    %1108 = vmatpush1.msra.mxu0 0.0
    %1109 = vmatprep.subr.mxu0 0.0
    %1110 = vmatpush1.msra.mxu0 0.0
    %1111 = vmatprep.subr.mxu0 0.0
    %1112 = vmatpush1.msra.mxu0 0.0
    %1113 = vmatprep.subr.mxu0 0.0
    %1114 = vmatpush1.msra.mxu0 0.0
    %1115 = vmatprep.subr.mxu0 0.0
    %1116 = vmatpush1.msra.mxu0 0.0
    %1117 = vmatprep.subr.mxu0 0.0
    %1118 = vmatpush1.msra.mxu0 0.0
    %1119 = vmatprep.subr.mxu0 0.0
    %1120 = vmatpush1.msra.mxu0 0.0
    %1121 = vmatprep.subr.mxu0 0.0
    %1122 = vmatpush1.msra.mxu0 0.0
    %1123 = vmatprep.subr.mxu0 0.0
    %1124 = vmatpush1.msra.mxu0 0.0
    %1125 = vmatprep.subr.mxu0 0.0
    %1126 = vmatpush1.msra.mxu0 0.0
    %1127 = vmatprep.subr.mxu0 0.0
    %1128 = vmatpush1.msra.mxu0 0.0
    %1129 = vmatprep.subr.mxu0 0.0
    %1130 = vmatpush1.msra.mxu0 0.0
    %1131 = vmatprep.subr.mxu0 0.0
    %1132 = vmatpush1.msra.mxu0 0.0
    %1133 = vmatprep.subr.mxu0 0.0
    %1134 = vmatpush1.msra.mxu0 0.0
    %1135 = vmatprep.subr.mxu0 0.0
    %1136 = vmatpush1.msra.mxu0 0.0
    %1137 = vmatprep.subr.mxu0 0.0
    %1138 = vmatpush1.msra.mxu0 0.0
    %1139 = vmatprep.subr.mxu0 0.0
    %1140 = vmatpush1.msra.mxu0 0.0
    %1141 = vmatprep.subr.mxu0 0.0
    %1142 = vmatpush1.msra.mxu0 0.0
    %1143 = vmatprep.subr.mxu0 0.0
    %1144 = vmatpush1.msra.mxu0 0.0
    %1145 = vmatprep.subr.mxu0 0.0
    %1146 = vmatpush1.msra.mxu0 0.0
    %1147 = vmatprep.subr.mxu0 0.0
    %1148 = vmatpush1.msra.mxu0 0.0
    %1149 = vmatprep.subr.mxu0 0.0
    %1150 = vmatpush1.msra.mxu0 0.0
    %1151 = vmatprep.subr.mxu0 0.0
    %1152 = vmatpush1.msra.mxu0 0.0
    %1153 = vmatprep.subr.mxu0 0.0
    %1154 = vmatpush1.msra.mxu0 0.0
    %1155 = vmatprep.subr.mxu0 0.0
    %1156 = vmatpush1.msra.mxu0 0.0
    %1157 = vmatprep.subr.mxu0 0.0
    %1158 = vmatpush1.msra.mxu0 0.0
    %1159 = vmatprep.subr.mxu0 0.0
    %1160 = vmatpush1.msra.mxu0 0.0
    %1161 = vmatprep.subr.mxu0 0.0
    %1162 = vmatpush1.msra.mxu0 0.0
    %1163 = vmatprep.subr.mxu0 0.0
    %1164 = vmatpush1.msra.mxu0 0.0
    %1165 = vmatprep.subr.mxu0 0.0
    %1166 = vmatpush1.msra.mxu0 0.0
    %1167 = vmatprep.subr.mxu0 0.0
    %1168 = vmatpush1.msra.mxu0 0.0
    %1169 = vmatprep.mubr.f32.mxu0 0.0
    %1170 = vmatmul.mubr.f32.gmra.mrb[0].mxu0 %v1103
    %v1171 = vpop.f32.mrb[0].mxu0
    %v1172 = vadd.f32 0.0, %v1171
    %v1173 = vpop.f32.mrb[0].mxu0
    %1174 = vdwg.mxu0
    %1175 = vrot.lane.b32.xlu0 %v170, 48
    %v1176 = vpop.permute.xlu0 %1175
    %v1179 = vsel %vm182, %v1098, 0
    %1181 = vmatprep.subr.mxu0 0.0
    %1182 = vmatpush1.msra.mxu0 %v1176
    %1183 = vmatprep.subr.mxu0 0.0
    %1184 = vmatpush1.msra.mxu0 0.0
    %1185 = vmatprep.subr.mxu0 0.0
    %1186 = vmatpush1.msra.mxu0 0.0
    %1187 = vmatprep.subr.mxu0 0.0
    %1188 = vmatpush1.msra.mxu0 0.0
    %1189 = vmatprep.subr.mxu0 0.0
    %1190 = vmatpush1.msra.mxu0 0.0
    %1191 = vmatprep.subr.mxu0 0.0
    %1192 = vmatpush1.msra.mxu0 0.0
    %1193 = vmatprep.subr.mxu0 0.0
    %1194 = vmatpush1.msra.mxu0 0.0
    %1195 = vmatprep.subr.mxu0 0.0
    %1196 = vmatpush1.msra.mxu0 0.0
    %1197 = vmatprep.subr.mxu0 0.0
    %1198 = vmatpush1.msra.mxu0 0.0
    %1199 = vmatprep.subr.mxu0 0.0
    %1200 = vmatpush1.msra.mxu0 0.0
    %1201 = vmatprep.subr.mxu0 0.0
    %1202 = vmatpush1.msra.mxu0 0.0
    %1203 = vmatprep.subr.mxu0 0.0
    %1204 = vmatpush1.msra.mxu0 0.0
    %1205 = vmatprep.subr.mxu0 0.0
    %1206 = vmatpush1.msra.mxu0 0.0
    %1207 = vmatprep.subr.mxu0 0.0
    %1208 = vmatpush1.msra.mxu0 0.0
    %1209 = vmatprep.subr.mxu0 0.0
    %1210 = vmatpush1.msra.mxu0 0.0
    %1211 = vmatprep.subr.mxu0 0.0
    %1212 = vmatpush1.msra.mxu0 0.0
    %1213 = vmatprep.subr.mxu0 0.0
    %1214 = vmatpush1.msra.mxu0 0.0
    %1215 = vmatprep.subr.mxu0 0.0
    %1216 = vmatpush1.msra.mxu0 0.0
    %1217 = vmatprep.subr.mxu0 0.0
    %1218 = vmatpush1.msra.mxu0 0.0
    %1219 = vmatprep.subr.mxu0 0.0
    %1220 = vmatpush1.msra.mxu0 0.0
    %1221 = vmatprep.subr.mxu0 0.0
    %1222 = vmatpush1.msra.mxu0 0.0
    %1223 = vmatprep.subr.mxu0 0.0
    %1224 = vmatpush1.msra.mxu0 0.0
    %1225 = vmatprep.subr.mxu0 0.0
    %1226 = vmatpush1.msra.mxu0 0.0
    %1227 = vmatprep.subr.mxu0 0.0
    %1228 = vmatpush1.msra.mxu0 0.0
    %1229 = vmatprep.subr.mxu0 0.0
    %1230 = vmatpush1.msra.mxu0 0.0
    %1231 = vmatprep.subr.mxu0 0.0
    %1232 = vmatpush1.msra.mxu0 0.0
    %1233 = vmatprep.subr.mxu0 0.0
    %1234 = vmatpush1.msra.mxu0 0.0
    %1235 = vmatprep.subr.mxu0 0.0
    %1236 = vmatpush1.msra.mxu0 0.0
    %1237 = vmatprep.subr.mxu0 0.0
    %1238 = vmatpush1.msra.mxu0 0.0
    %1239 = vmatprep.subr.mxu0 0.0
    %1240 = vmatpush1.msra.mxu0 0.0
    %1241 = vmatprep.subr.mxu0 0.0
    %1242 = vmatpush1.msra.mxu0 0.0
    %1243 = vmatprep.subr.mxu0 0.0
    %1244 = vmatpush1.msra.mxu0 0.0
    %1245 = vmatprep.mubr.f32.mxu0 0.0
    %1246 = vmatmul.mubr.f32.gmra.mrb[0].mxu0 %v1179
    %v1247 = vpop.f32.mrb[0].mxu0
    %v1248 = vadd.f32 0.0, %v1247
    %v1249 = vpop.f32.mrb[0].mxu0
    %1250 = vdwg.mxu0
    %v1252 = vsel %vm182, %v1172, 0
    %v1255 = vsel %vm182, %v1248, 0
    %1257 = vmatprep.subr.mxu0 0.0
    %1258 = vmatpush1.msra.mxu0 %v175
    %1259 = vmatprep.subr.mxu0 0.0
    %1260 = vmatpush1.msra.mxu0 0.0
    %1261 = vmatprep.subr.mxu0 0.0
    %1262 = vmatpush1.msra.mxu0 0.0
    %1263 = vmatprep.subr.mxu0 0.0
    %1264 = vmatpush1.msra.mxu0 0.0
    %1265 = vmatprep.subr.mxu0 0.0
    %1266 = vmatpush1.msra.mxu0 0.0
    %1267 = vmatprep.subr.mxu0 0.0
    %1268 = vmatpush1.msra.mxu0 0.0
    %1269 = vmatprep.subr.mxu0 0.0
    %1270 = vmatpush1.msra.mxu0 0.0
    %1271 = vmatprep.subr.mxu0 0.0
    %1272 = vmatpush1.msra.mxu0 0.0
    %1273 = vmatprep.subr.mxu0 0.0
    %1274 = vmatpush1.msra.mxu0 0.0
    %1275 = vmatprep.subr.mxu0 0.0
    %1276 = vmatpush1.msra.mxu0 0.0
    %1277 = vmatprep.subr.mxu0 0.0
    %1278 = vmatpush1.msra.mxu0 0.0
    %1279 = vmatprep.subr.mxu0 0.0
    %1280 = vmatpush1.msra.mxu0 0.0
    %1281 = vmatprep.subr.mxu0 0.0
    %1282 = vmatpush1.msra.mxu0 0.0
    %1283 = vmatprep.subr.mxu0 0.0
    %1284 = vmatpush1.msra.mxu0 0.0
    %1285 = vmatprep.subr.mxu0 0.0
    %1286 = vmatpush1.msra.mxu0 0.0
    %1287 = vmatprep.subr.mxu0 0.0
    %1288 = vmatpush1.msra.mxu0 0.0
    %1289 = vmatprep.subr.mxu0 0.0
    %1290 = vmatpush1.msra.mxu0 0.0
    %1291 = vmatprep.subr.mxu0 0.0
    %1292 = vmatpush1.msra.mxu0 0.0
    %1293 = vmatprep.subr.mxu0 0.0
    %1294 = vmatpush1.msra.mxu0 0.0
    %1295 = vmatprep.subr.mxu0 0.0
    %1296 = vmatpush1.msra.mxu0 0.0
    %1297 = vmatprep.subr.mxu0 0.0
    %1298 = vmatpush1.msra.mxu0 0.0
    %1299 = vmatprep.subr.mxu0 0.0
    %1300 = vmatpush1.msra.mxu0 0.0
    %1301 = vmatprep.subr.mxu0 0.0
    %1302 = vmatpush1.msra.mxu0 0.0
    %1303 = vmatprep.subr.mxu0 0.0
    %1304 = vmatpush1.msra.mxu0 0.0
    %1305 = vmatprep.subr.mxu0 0.0
    %1306 = vmatpush1.msra.mxu0 0.0
    %1307 = vmatprep.subr.mxu0 0.0
    %1308 = vmatpush1.msra.mxu0 0.0
    %1309 = vmatprep.subr.mxu0 0.0
    %1310 = vmatpush1.msra.mxu0 0.0
    %1311 = vmatprep.subr.mxu0 0.0
    %1312 = vmatpush1.msra.mxu0 0.0
    %1313 = vmatprep.subr.mxu0 0.0
    %1314 = vmatpush1.msra.mxu0 0.0
    %1315 = vmatprep.subr.mxu0 0.0
    %1316 = vmatpush1.msra.mxu0 0.0
    %1317 = vmatprep.subr.mxu0 0.0
    %1318 = vmatpush1.msra.mxu0 0.0
    %1319 = vmatprep.subr.mxu0 0.0
    %1320 = vmatpush1.msra.mxu0 0.0
    %1321 = vmatprep.mubr.f32.mxu0 0.0
    %1322 = vmatmul.mubr.f32.gmra.mrb[0].mxu0 %v1252
    %v1323 = vpop.f32.mrb[0].mxu0
    %v1324 = vadd.f32 0.0, %v1323
    %v1325 = vpop.f32.mrb[0].mxu0
    %1326 = vmatprep.mubr.f32.mxu0 0.0
    %1327 = vmatmul.mubr.f32.gmra.mrb[0].mxu0 %v1255
    %v1328 = vpop.f32.mrb[0].mxu0
    %v1329 = vadd.f32 0.0, %v1328
    %v1330 = vpop.f32.mrb[0].mxu0
    %1331 = vdwg.mxu0
    %1332 = vrot.lane.b32.xlu0 %v177, 104
    %v1333 = vpop.permute.xlu0 %1332
    %1334 = vrot.lane.b32.xlu0 %v165, 72
    %v1335 = vpop.permute.xlu0 %1334
    %v1336 = vsel %vm182, %v1333, 0
    %v1338 = vsel %vm182, %v1335, 0
    %1340 = vmatprep.subr.mxu0 0.0
    %1341 = vmatpush1.xpose.msra.mxu0 %v1338
    %1342 = vmatprep.subr.mxu0 0.0
    %1343 = vmatpush1.xpose.msra.mxu0 0.0
    %1344 = vmatprep.subr.mxu0 0.0
    %1345 = vmatpush1.xpose.msra.mxu0 0.0
    %1346 = vmatprep.subr.mxu0 0.0
    %1347 = vmatpush1.xpose.msra.mxu0 0.0
    %1348 = vmatprep.subr.mxu0 0.0
    %1349 = vmatpush1.xpose.msra.mxu0 0.0
    %1350 = vmatprep.subr.mxu0 0.0
    %1351 = vmatpush1.xpose.msra.mxu0 0.0
    %1352 = vmatprep.subr.mxu0 0.0
    %1353 = vmatpush1.xpose.msra.mxu0 0.0
    %1354 = vmatprep.subr.mxu0 0.0
    %1355 = vmatpush1.xpose.msra.mxu0 0.0
    %1356 = vmatprep.subr.mxu0 0.0
    %1357 = vmatpush1.xpose.msra.mxu0 0.0
    %1358 = vmatprep.subr.mxu0 0.0
    %1359 = vmatpush1.xpose.msra.mxu0 0.0
    %1360 = vmatprep.subr.mxu0 0.0
    %1361 = vmatpush1.xpose.msra.mxu0 0.0
    %1362 = vmatprep.subr.mxu0 0.0
    %1363 = vmatpush1.xpose.msra.mxu0 0.0
    %1364 = vmatprep.subr.mxu0 0.0
    %1365 = vmatpush1.xpose.msra.mxu0 0.0
    %1366 = vmatprep.subr.mxu0 0.0
    %1367 = vmatpush1.xpose.msra.mxu0 0.0
    %1368 = vmatprep.subr.mxu0 0.0
    %1369 = vmatpush1.xpose.msra.mxu0 0.0
    %1370 = vmatprep.subr.mxu0 0.0
    %1371 = vmatpush1.xpose.msra.mxu0 0.0
    %1372 = vmatprep.subr.mxu0 0.0
    %1373 = vmatpush1.xpose.msra.mxu0 0.0
    %1374 = vmatprep.subr.mxu0 0.0
    %1375 = vmatpush1.xpose.msra.mxu0 0.0
    %1376 = vmatprep.subr.mxu0 0.0
    %1377 = vmatpush1.xpose.msra.mxu0 0.0
    %1378 = vmatprep.subr.mxu0 0.0
    %1379 = vmatpush1.xpose.msra.mxu0 0.0
    %1380 = vmatprep.subr.mxu0 0.0
    %1381 = vmatpush1.xpose.msra.mxu0 0.0
    %1382 = vmatprep.subr.mxu0 0.0
    %1383 = vmatpush1.xpose.msra.mxu0 0.0
    %1384 = vmatprep.subr.mxu0 0.0
    %1385 = vmatpush1.xpose.msra.mxu0 0.0
    %1386 = vmatprep.subr.mxu0 0.0
    %1387 = vmatpush1.xpose.msra.mxu0 0.0
    %1388 = vmatprep.subr.mxu0 0.0
    %1389 = vmatpush1.xpose.msra.mxu0 0.0
    %1390 = vmatprep.subr.mxu0 0.0
    %1391 = vmatpush1.xpose.msra.mxu0 0.0
    %1392 = vmatprep.subr.mxu0 0.0
    %1393 = vmatpush1.xpose.msra.mxu0 0.0
    %1394 = vmatprep.subr.mxu0 0.0
    %1395 = vmatpush1.xpose.msra.mxu0 0.0
    %1396 = vmatprep.subr.mxu0 0.0
    %1397 = vmatpush1.xpose.msra.mxu0 0.0
    %1398 = vmatprep.subr.mxu0 0.0
    %1399 = vmatpush1.xpose.msra.mxu0 0.0
    %1400 = vmatprep.subr.mxu0 0.0
    %1401 = vmatpush1.xpose.msra.mxu0 0.0
    %1402 = vmatprep.subr.mxu0 0.0
    %1403 = vmatpush1.xpose.msra.mxu0 0.0
    %1404 = vmatprep.mubr.f32.mxu0 0.0
    %1405 = vmatmul.mubr.f32.gmra.mrb[0].mxu0 %v1336
    %v1406 = vpop.f32.mrb[0].mxu0
    %v1407 = vadd.f32 0.0, %v1406
    %v1408 = vpop.f32.mrb[0].mxu0
    %1409 = vdwg.mxu0
    %1410 = vrot.lane.b32.xlu0 %v178, 104
    %v1411 = vpop.permute.xlu0 %1410
    %1412 = vrot.lane.b32.xlu0 %v170, 72
    %v1413 = vpop.permute.xlu0 %1412
    %v1414 = vsel %vm182, %v1411, 0
    %v1416 = vsel %vm182, %v1413, 0
    %1418 = vmatprep.subr.mxu0 0.0
    %1419 = vmatpush1.xpose.msra.mxu0 %v1416
    %1420 = vmatprep.subr.mxu0 0.0
    %1421 = vmatpush1.xpose.msra.mxu0 0.0
    %1422 = vmatprep.subr.mxu0 0.0
    %1423 = vmatpush1.xpose.msra.mxu0 0.0
    %1424 = vmatprep.subr.mxu0 0.0
    %1425 = vmatpush1.xpose.msra.mxu0 0.0
    %1426 = vmatprep.subr.mxu0 0.0
    %1427 = vmatpush1.xpose.msra.mxu0 0.0
    %1428 = vmatprep.subr.mxu0 0.0
    %1429 = vmatpush1.xpose.msra.mxu0 0.0
    %1430 = vmatprep.subr.mxu0 0.0
    %1431 = vmatpush1.xpose.msra.mxu0 0.0
    %1432 = vmatprep.subr.mxu0 0.0
    %1433 = vmatpush1.xpose.msra.mxu0 0.0
    %1434 = vmatprep.subr.mxu0 0.0
    %1435 = vmatpush1.xpose.msra.mxu0 0.0
    %1436 = vmatprep.subr.mxu0 0.0
    %1437 = vmatpush1.xpose.msra.mxu0 0.0
    %1438 = vmatprep.subr.mxu0 0.0
    %1439 = vmatpush1.xpose.msra.mxu0 0.0
    %1440 = vmatprep.subr.mxu0 0.0
    %1441 = vmatpush1.xpose.msra.mxu0 0.0
    %1442 = vmatprep.subr.mxu0 0.0
    %1443 = vmatpush1.xpose.msra.mxu0 0.0
    %1444 = vmatprep.subr.mxu0 0.0
    %1445 = vmatpush1.xpose.msra.mxu0 0.0
    %1446 = vmatprep.subr.mxu0 0.0
    %1447 = vmatpush1.xpose.msra.mxu0 0.0
    %1448 = vmatprep.subr.mxu0 0.0
    %1449 = vmatpush1.xpose.msra.mxu0 0.0
    %1450 = vmatprep.subr.mxu0 0.0
    %1451 = vmatpush1.xpose.msra.mxu0 0.0
    %1452 = vmatprep.subr.mxu0 0.0
    %1453 = vmatpush1.xpose.msra.mxu0 0.0
    %1454 = vmatprep.subr.mxu0 0.0
    %1455 = vmatpush1.xpose.msra.mxu0 0.0
    %1456 = vmatprep.subr.mxu0 0.0
    %1457 = vmatpush1.xpose.msra.mxu0 0.0
    %1458 = vmatprep.subr.mxu0 0.0
    %1459 = vmatpush1.xpose.msra.mxu0 0.0
    %1460 = vmatprep.subr.mxu0 0.0
    %1461 = vmatpush1.xpose.msra.mxu0 0.0
    %1462 = vmatprep.subr.mxu0 0.0
    %1463 = vmatpush1.xpose.msra.mxu0 0.0
    %1464 = vmatprep.subr.mxu0 0.0
    %1465 = vmatpush1.xpose.msra.mxu0 0.0
    %1466 = vmatprep.subr.mxu0 0.0
    %1467 = vmatpush1.xpose.msra.mxu0 0.0
    %1468 = vmatprep.subr.mxu0 0.0
    %1469 = vmatpush1.xpose.msra.mxu0 0.0
    %1470 = vmatprep.subr.mxu0 0.0
    %1471 = vmatpush1.xpose.msra.mxu0 0.0
    %1472 = vmatprep.subr.mxu0 0.0
    %1473 = vmatpush1.xpose.msra.mxu0 0.0
    %1474 = vmatprep.subr.mxu0 0.0
    %1475 = vmatpush1.xpose.msra.mxu0 0.0
    %1476 = vmatprep.subr.mxu0 0.0
    %1477 = vmatpush1.xpose.msra.mxu0 0.0
    %1478 = vmatprep.subr.mxu0 0.0
    %1479 = vmatpush1.xpose.msra.mxu0 0.0
    %1480 = vmatprep.subr.mxu0 0.0
    %1481 = vmatpush1.xpose.msra.mxu0 0.0
    %1482 = vmatprep.mubr.f32.mxu0 0.0
    %1483 = vmatmul.mubr.f32.gmra.mrb[0].mxu0 %v1414
    %v1484 = vpop.f32.mrb[0].mxu0
    %v1485 = vadd.f32 0.0, %v1484
    %v1486 = vpop.f32.mrb[0].mxu0
    %1487 = vdwg.mxu0
    %v1488 = vsel %vm182, %v1407, -inf
    %1489 = vmax.xlane.f32.xlu0 %v1488
    %v1490 = vpop.xlane.xlu0 %1489
    %v1491 = vsel %vm182, %v1485, -inf
    %1492 = vmax.xlane.f32.xlu0 %v1491
    %v1493 = vpop.xlane.xlu0 %1492
    %v1494 = vsub.f32 %v1407, %v1490
    %v1495 = vsub.f32 %v1485, %v1493
    %v1496 = vmul.f32 %v1494, 1.442695
    %v1497 = vpow.pop %v1496
    %v1498 = vmul.f32 %v1495, 1.442695
    %v1499 = vpow.pop %v1498
    %v1500 = vsel %vm182, %v1497, 0.0
    %1501 = vadd.xlane.f32.xlu0 %v1500
    %v1502 = vpop.xlane.xlu0 %1501
    %v1503 = vsel %vm182, %v1499, 0.0
    %1504 = vadd.xlane.f32.xlu0 %v1503
    %v1505 = vpop.xlane.xlu0 %1504
    %v1506 = vrcp.pop %v1502
    %v1507 = vrcp.pop %v1505
    %v1508 = vmul.f32 %v1497, %v1506
    %v1509 = vmul.f32 %v1499, %v1507
    %1510 = vrot.lane.b32.xlu0 %v165, 40
    %v1511 = vpop.permute.xlu0 %1510
    %v1514 = vsel %vm182, %v1508, 0
    %1516 = vmatprep.subr.mxu0 0.0
    %1517 = vmatpush1.msra.mxu0 %v1511
    %1518 = vmatprep.subr.mxu0 0.0
    %1519 = vmatpush1.msra.mxu0 0.0
    %1520 = vmatprep.subr.mxu0 0.0
    %1521 = vmatpush1.msra.mxu0 0.0
    %1522 = vmatprep.subr.mxu0 0.0
    %1523 = vmatpush1.msra.mxu0 0.0
    %1524 = vmatprep.subr.mxu0 0.0
    %1525 = vmatpush1.msra.mxu0 0.0
    %1526 = vmatprep.subr.mxu0 0.0
    %1527 = vmatpush1.msra.mxu0 0.0
    %1528 = vmatprep.subr.mxu0 0.0
    %1529 = vmatpush1.msra.mxu0 0.0
    %1530 = vmatprep.subr.mxu0 0.0
    %1531 = vmatpush1.msra.mxu0 0.0
    %1532 = vmatprep.subr.mxu0 0.0
    %1533 = vmatpush1.msra.mxu0 0.0
    %1534 = vmatprep.subr.mxu0 0.0
    %1535 = vmatpush1.msra.mxu0 0.0
    %1536 = vmatprep.subr.mxu0 0.0
    %1537 = vmatpush1.msra.mxu0 0.0
    %1538 = vmatprep.subr.mxu0 0.0
    %1539 = vmatpush1.msra.mxu0 0.0
    %1540 = vmatprep.subr.mxu0 0.0
    %1541 = vmatpush1.msra.mxu0 0.0
    %1542 = vmatprep.subr.mxu0 0.0
    %1543 = vmatpush1.msra.mxu0 0.0
    %1544 = vmatprep.subr.mxu0 0.0
    %1545 = vmatpush1.msra.mxu0 0.0
    %1546 = vmatprep.subr.mxu0 0.0
    %1547 = vmatpush1.msra.mxu0 0.0
    %1548 = vmatprep.subr.mxu0 0.0
    %1549 = vmatpush1.msra.mxu0 0.0
    %1550 = vmatprep.subr.mxu0 0.0
    %1551 = vmatpush1.msra.mxu0 0.0
    %1552 = vmatprep.subr.mxu0 0.0
    %1553 = vmatpush1.msra.mxu0 0.0
    %1554 = vmatprep.subr.mxu0 0.0
    %1555 = vmatpush1.msra.mxu0 0.0
    %1556 = vmatprep.subr.mxu0 0.0
    %1557 = vmatpush1.msra.mxu0 0.0
    %1558 = vmatprep.subr.mxu0 0.0
    %1559 = vmatpush1.msra.mxu0 0.0
    %1560 = vmatprep.subr.mxu0 0.0
    %1561 = vmatpush1.msra.mxu0 0.0
    %1562 = vmatprep.subr.mxu0 0.0
    %1563 = vmatpush1.msra.mxu0 0.0
    %1564 = vmatprep.subr.mxu0 0.0
    %1565 = vmatpush1.msra.mxu0 0.0
    %1566 = vmatprep.subr.mxu0 0.0
    %1567 = vmatpush1.msra.mxu0 0.0
    %1568 = vmatprep.subr.mxu0 0.0
    %1569 = vmatpush1.msra.mxu0 0.0
    %1570 = vmatprep.subr.mxu0 0.0
    %1571 = vmatpush1.msra.mxu0 0.0
    %1572 = vmatprep.subr.mxu0 0.0
    %1573 = vmatpush1.msra.mxu0 0.0
    %1574 = vmatprep.subr.mxu0 0.0
    %1575 = vmatpush1.msra.mxu0 0.0
    %1576 = vmatprep.subr.mxu0 0.0
    %1577 = vmatpush1.msra.mxu0 0.0
    %1578 = vmatprep.subr.mxu0 0.0
    %1579 = vmatpush1.msra.mxu0 0.0
    %1580 = vmatprep.mubr.f32.mxu0 0.0
    %1581 = vmatmul.mubr.f32.gmra.mrb[0].mxu0 %v1514
    %v1582 = vpop.f32.mrb[0].mxu0
    %v1583 = vadd.f32 0.0, %v1582
    %v1584 = vpop.f32.mrb[0].mxu0
    %1585 = vdwg.mxu0
    %1586 = vrot.lane.b32.xlu0 %v170, 40
    %v1587 = vpop.permute.xlu0 %1586
    %v1590 = vsel %vm182, %v1509, 0
    %1592 = vmatprep.subr.mxu0 0.0
    %1593 = vmatpush1.msra.mxu0 %v1587
    %1594 = vmatprep.subr.mxu0 0.0
    %1595 = vmatpush1.msra.mxu0 0.0
    %1596 = vmatprep.subr.mxu0 0.0
    %1597 = vmatpush1.msra.mxu0 0.0
    %1598 = vmatprep.subr.mxu0 0.0
    %1599 = vmatpush1.msra.mxu0 0.0
    %1600 = vmatprep.subr.mxu0 0.0
    %1601 = vmatpush1.msra.mxu0 0.0
    %1602 = vmatprep.subr.mxu0 0.0
    %1603 = vmatpush1.msra.mxu0 0.0
    %1604 = vmatprep.subr.mxu0 0.0
    %1605 = vmatpush1.msra.mxu0 0.0
    %1606 = vmatprep.subr.mxu0 0.0
    %1607 = vmatpush1.msra.mxu0 0.0
    %1608 = vmatprep.subr.mxu0 0.0
    %1609 = vmatpush1.msra.mxu0 0.0
    %1610 = vmatprep.subr.mxu0 0.0
    %1611 = vmatpush1.msra.mxu0 0.0
    %1612 = vmatprep.subr.mxu0 0.0
    %1613 = vmatpush1.msra.mxu0 0.0
    %1614 = vmatprep.subr.mxu0 0.0
    %1615 = vmatpush1.msra.mxu0 0.0
    %1616 = vmatprep.subr.mxu0 0.0
    %1617 = vmatpush1.msra.mxu0 0.0
    %1618 = vmatprep.subr.mxu0 0.0
    %1619 = vmatpush1.msra.mxu0 0.0
    %1620 = vmatprep.subr.mxu0 0.0
    %1621 = vmatpush1.msra.mxu0 0.0
    %1622 = vmatprep.subr.mxu0 0.0
    %1623 = vmatpush1.msra.mxu0 0.0
    %1624 = vmatprep.subr.mxu0 0.0
    %1625 = vmatpush1.msra.mxu0 0.0
    %1626 = vmatprep.subr.mxu0 0.0
    %1627 = vmatpush1.msra.mxu0 0.0
    %1628 = vmatprep.subr.mxu0 0.0
    %1629 = vmatpush1.msra.mxu0 0.0
    %1630 = vmatprep.subr.mxu0 0.0
    %1631 = vmatpush1.msra.mxu0 0.0
    %1632 = vmatprep.subr.mxu0 0.0
    %1633 = vmatpush1.msra.mxu0 0.0
    %1634 = vmatprep.subr.mxu0 0.0
    %1635 = vmatpush1.msra.mxu0 0.0
    %1636 = vmatprep.subr.mxu0 0.0
    %1637 = vmatpush1.msra.mxu0 0.0
    %1638 = vmatprep.subr.mxu0 0.0
    %1639 = vmatpush1.msra.mxu0 0.0
    %1640 = vmatprep.subr.mxu0 0.0
    %1641 = vmatpush1.msra.mxu0 0.0
    %1642 = vmatprep.subr.mxu0 0.0
    %1643 = vmatpush1.msra.mxu0 0.0
    %1644 = vmatprep.subr.mxu0 0.0
    %1645 = vmatpush1.msra.mxu0 0.0
    %1646 = vmatprep.subr.mxu0 0.0
    %1647 = vmatpush1.msra.mxu0 0.0
    %1648 = vmatprep.subr.mxu0 0.0
    %1649 = vmatpush1.msra.mxu0 0.0
    %1650 = vmatprep.subr.mxu0 0.0
    %1651 = vmatpush1.msra.mxu0 0.0
    %1652 = vmatprep.subr.mxu0 0.0
    %1653 = vmatpush1.msra.mxu0 0.0
    %1654 = vmatprep.subr.mxu0 0.0
    %1655 = vmatpush1.msra.mxu0 0.0
    %1656 = vmatprep.mubr.f32.mxu0 0.0
    %1657 = vmatmul.mubr.f32.gmra.mrb[0].mxu0 %v1590
    %v1658 = vpop.f32.mrb[0].mxu0
    %v1659 = vadd.f32 0.0, %v1658
    %v1660 = vpop.f32.mrb[0].mxu0
    %1661 = vdwg.mxu0
    %v1663 = vsel %vm182, %v1583, 0
    %v1666 = vsel %vm182, %v1659, 0
    %1668 = vmatprep.subr.mxu0 0.0
    %1669 = vmatpush1.msra.mxu0 %v176
    %1670 = vmatprep.subr.mxu0 0.0
    %1671 = vmatpush1.msra.mxu0 0.0
    %1672 = vmatprep.subr.mxu0 0.0
    %1673 = vmatpush1.msra.mxu0 0.0
    %1674 = vmatprep.subr.mxu0 0.0
    %1675 = vmatpush1.msra.mxu0 0.0
    %1676 = vmatprep.subr.mxu0 0.0
    %1677 = vmatpush1.msra.mxu0 0.0
    %1678 = vmatprep.subr.mxu0 0.0
    %1679 = vmatpush1.msra.mxu0 0.0
    %1680 = vmatprep.subr.mxu0 0.0
    %1681 = vmatpush1.msra.mxu0 0.0
    %1682 = vmatprep.subr.mxu0 0.0
    %1683 = vmatpush1.msra.mxu0 0.0
    %1684 = vmatprep.subr.mxu0 0.0
    %1685 = vmatpush1.msra.mxu0 0.0
    %1686 = vmatprep.subr.mxu0 0.0
    %1687 = vmatpush1.msra.mxu0 0.0
    %1688 = vmatprep.subr.mxu0 0.0
    %1689 = vmatpush1.msra.mxu0 0.0
    %1690 = vmatprep.subr.mxu0 0.0
    %1691 = vmatpush1.msra.mxu0 0.0
    %1692 = vmatprep.subr.mxu0 0.0
    %1693 = vmatpush1.msra.mxu0 0.0
    %1694 = vmatprep.subr.mxu0 0.0
    %1695 = vmatpush1.msra.mxu0 0.0
    %1696 = vmatprep.subr.mxu0 0.0
    %1697 = vmatpush1.msra.mxu0 0.0
    %1698 = vmatprep.subr.mxu0 0.0
    %1699 = vmatpush1.msra.mxu0 0.0
    %1700 = vmatprep.subr.mxu0 0.0
    %1701 = vmatpush1.msra.mxu0 0.0
    %1702 = vmatprep.subr.mxu0 0.0
    %1703 = vmatpush1.msra.mxu0 0.0
    %1704 = vmatprep.subr.mxu0 0.0
    %1705 = vmatpush1.msra.mxu0 0.0
    %1706 = vmatprep.subr.mxu0 0.0
    %1707 = vmatpush1.msra.mxu0 0.0
    %1708 = vmatprep.subr.mxu0 0.0
    %1709 = vmatpush1.msra.mxu0 0.0
    %1710 = vmatprep.subr.mxu0 0.0
    %1711 = vmatpush1.msra.mxu0 0.0
    %1712 = vmatprep.subr.mxu0 0.0
    %1713 = vmatpush1.msra.mxu0 0.0
    %1714 = vmatprep.subr.mxu0 0.0
    %1715 = vmatpush1.msra.mxu0 0.0
    %1716 = vmatprep.subr.mxu0 0.0
    %1717 = vmatpush1.msra.mxu0 0.0
    %1718 = vmatprep.subr.mxu0 0.0
    %1719 = vmatpush1.msra.mxu0 0.0
    %1720 = vmatprep.subr.mxu0 0.0
    %1721 = vmatpush1.msra.mxu0 0.0
    %1722 = vmatprep.subr.mxu0 0.0
    %1723 = vmatpush1.msra.mxu0 0.0
    %1724 = vmatprep.subr.mxu0 0.0
    %1725 = vmatpush1.msra.mxu0 0.0
    %1726 = vmatprep.subr.mxu0 0.0
    %1727 = vmatpush1.msra.mxu0 0.0
    %1728 = vmatprep.subr.mxu0 0.0
    %1729 = vmatpush1.msra.mxu0 0.0
    %1730 = vmatprep.subr.mxu0 0.0
    %1731 = vmatpush1.msra.mxu0 0.0
    %1732 = vmatprep.mubr.f32.mxu0 0.0
    %1733 = vmatmul.mubr.f32.gmra.mrb[0].mxu0 %v1663
    %v1734 = vpop.f32.mrb[0].mxu0
    %v1735 = vadd.f32 0.0, %v1734
    %v1736 = vpop.f32.mrb[0].mxu0
    %1737 = vmatprep.mubr.f32.mxu0 0.0
    %1738 = vmatmul.mubr.f32.gmra.mrb[0].mxu0 %v1666
    %v1739 = vpop.f32.mrb[0].mxu0
    %v1740 = vadd.f32 0.0, %v1739
    %v1741 = vpop.f32.mrb[0].mxu0
    %1742 = vdwg.mxu0
    %v1744 = vsel %vm182, %v431, 0
    %v1747 = vsel %vm182, %v507, 0
    %1749 = vmatprep.subr.mxu0 0.0
    %1750 = vmatpush1.msra.mxu0 %v173
    %1751 = vmatprep.subr.mxu0 0.0
    %1752 = vmatpush1.msra.mxu0 0.0
    %1753 = vmatprep.subr.mxu0 0.0
    %1754 = vmatpush1.msra.mxu0 0.0
    %1755 = vmatprep.subr.mxu0 0.0
    %1756 = vmatpush1.msra.mxu0 0.0
    %1757 = vmatprep.subr.mxu0 0.0
    %1758 = vmatpush1.msra.mxu0 0.0
    %1759 = vmatprep.subr.mxu0 0.0
    %1760 = vmatpush1.msra.mxu0 0.0
    %1761 = vmatprep.subr.mxu0 0.0
    %1762 = vmatpush1.msra.mxu0 0.0
    %1763 = vmatprep.subr.mxu0 0.0
    %1764 = vmatpush1.msra.mxu0 0.0
    %1765 = vmatprep.subr.mxu0 0.0
    %1766 = vmatpush1.msra.mxu0 0.0
    %1767 = vmatprep.subr.mxu0 0.0
    %1768 = vmatpush1.msra.mxu0 0.0
    %1769 = vmatprep.subr.mxu0 0.0
    %1770 = vmatpush1.msra.mxu0 0.0
    %1771 = vmatprep.subr.mxu0 0.0
    %1772 = vmatpush1.msra.mxu0 0.0
    %1773 = vmatprep.subr.mxu0 0.0
    %1774 = vmatpush1.msra.mxu0 0.0
    %1775 = vmatprep.subr.mxu0 0.0
    %1776 = vmatpush1.msra.mxu0 0.0
    %1777 = vmatprep.subr.mxu0 0.0
    %1778 = vmatpush1.msra.mxu0 0.0
    %1779 = vmatprep.subr.mxu0 0.0
    %1780 = vmatpush1.msra.mxu0 0.0
    %1781 = vmatprep.subr.mxu0 0.0
    %1782 = vmatpush1.msra.mxu0 0.0
    %1783 = vmatprep.subr.mxu0 0.0
    %1784 = vmatpush1.msra.mxu0 0.0
    %1785 = vmatprep.subr.mxu0 0.0
    %1786 = vmatpush1.msra.mxu0 0.0
    %1787 = vmatprep.subr.mxu0 0.0
    %1788 = vmatpush1.msra.mxu0 0.0
    %1789 = vmatprep.subr.mxu0 0.0
    %1790 = vmatpush1.msra.mxu0 0.0
    %1791 = vmatprep.subr.mxu0 0.0
    %1792 = vmatpush1.msra.mxu0 0.0
    %1793 = vmatprep.subr.mxu0 0.0
    %1794 = vmatpush1.msra.mxu0 0.0
    %1795 = vmatprep.subr.mxu0 0.0
    %1796 = vmatpush1.msra.mxu0 0.0
    %1797 = vmatprep.subr.mxu0 0.0
    %1798 = vmatpush1.msra.mxu0 0.0
    %1799 = vmatprep.subr.mxu0 0.0
    %1800 = vmatpush1.msra.mxu0 0.0
    %1801 = vmatprep.subr.mxu0 0.0
    %1802 = vmatpush1.msra.mxu0 0.0
    %1803 = vmatprep.subr.mxu0 0.0
    %1804 = vmatpush1.msra.mxu0 0.0
    %1805 = vmatprep.subr.mxu0 0.0
    %1806 = vmatpush1.msra.mxu0 0.0
    %1807 = vmatprep.subr.mxu0 0.0
    %1808 = vmatpush1.msra.mxu0 0.0
    %1809 = vmatprep.subr.mxu0 0.0
    %1810 = vmatpush1.msra.mxu0 0.0
    %1811 = vmatprep.subr.mxu0 0.0
    %1812 = vmatpush1.msra.mxu0 0.0
    %1813 = vmatprep.mubr.f32.mxu0 0.0
    %1814 = vmatmul.mubr.f32.gmra.mrb[0].mxu0 %v1744
    %v1815 = vpop.f32.mrb[0].mxu0
    %v1816 = vadd.f32 %v913, %v1815
    %v1817 = vpop.f32.mrb[0].mxu0
    %1818 = vmatprep.mubr.f32.mxu0 0.0
    %1819 = vmatmul.mubr.f32.gmra.mrb[0].mxu0 %v1747
    %v1820 = vpop.f32.mrb[0].mxu0
    %v1821 = vadd.f32 %v918, %v1820
    %v1822 = vpop.f32.mrb[0].mxu0
    %1823 = vdwg.mxu0
    %v1824 = vadd.f32 %v1816, %v1324
    %v1825 = vadd.f32 %v1821, %v1329
    %v1826 = vadd.f32 %v1824, %v1735
    %v1827 = vadd.f32 %v1825, %v1740
    %v1828 = vlaneseq
    %v1829 = vshrl.u32 %v1828, 7
    %v1830 = vsub.s32 1, %v1829
    %v1831 = vrot.slane %v81, %v1830
    %v1832 = vadd.f32 %v1826, %v1831
    %v1833 = vadd.f32 %v1827, %v1831
    %v1834 = vadd.f32 %v1832, %v77
    %v1835 = vadd.f32 %v1833, %v78
    %v1836 = vsel %vm91, %v1834, 0.0
    %1837 = vadd.xlane.f32.xlu0 %v1836
    %v1838 = vpop.xlane.xlu0 %1837
    %v1839 = vsel %vm91, %v1835, 0.0
    %1840 = vadd.xlane.f32.xlu0 %v1839
    %v1841 = vpop.xlane.xlu0 %1840
    %v1842 = vrcp.pop 32.0
    %v1843 = vmul.f32 %v1838, %v1842
    %v1844 = vmul.f32 %v1841, %v1842
    %v1845 = vsub.f32 %v1834, %v1843
    %v1846 = vsub.f32 %v1835, %v1844
    %v1847 = vmul.f32 %v1845, %v1845
    %v1848 = vmul.f32 %v1846, %v1846
    %v1849 = vsel %vm91, %v1847, 0.0
    %1850 = vadd.xlane.f32.xlu0 %v1849
    %v1851 = vpop.xlane.xlu0 %1850
    %v1852 = vsel %vm91, %v1848, 0.0
    %1853 = vadd.xlane.f32.xlu0 %v1852
    %v1854 = vpop.xlane.xlu0 %1853
    %v1855 = vmul.f32 %v1851, %v1842
    %v1856 = vmul.f32 %v1854, %v1842
    %v1857 = vadd.f32 %v1855, 1e-05
    %v1858 = vadd.f32 %v1856, 1e-05
    %v1859 = vrsqrt.pop %v1857
    %v1860 = vrsqrt.pop %v1858
    %v1861 = vmul.f32 %v1845, %v1859
    %v1862 = vmul.f32 %v1846, %v1860
    %v1863 = vlaneseq
    %v1864 = vshrl.u32 %v1863, 7
    %v1865 = vsub.s32 5, %v1864
    %v1866 = vrot.slane %v81, %v1865
    %v1867 = vmul.f32 %v1861, %v1866
    %v1868 = vmul.f32 %v1862, %v1866
    %v1869 = vlaneseq
    %v1870 = vshrl.u32 %v1869, 7
    %v1871 = vsub.s32 6, %v1870
    %v1872 = vrot.slane %v81, %v1871
    %v1873 = vadd.f32 %v1867, %v1872
    %v1874 = vadd.f32 %v1868, %v1872
    %v1875 = vld [vmem:[%s4] sm:$0xff]
    %v1876 = vld [vmem:[%s4 + $0x8] sm:$0xff]
    %v1877 = vld [vmem:[%s4 + $0x10] sm:$0xff]
    %v1878 = vld [vmem:[%s4 + $0x18] sm:$0xff]
    %v1879 = vlaneseq
    %v1880 = vshrl.u32 %v1879, 7
    %v1881 = vsub.s32 2, %v1880
    %v1882 = vrot.slane %v81, %v1881
    %v1884 = vsel %vm91, %v1873, 0
    %v1887 = vsel %vm91, %v1874, 0
    %1889 = vmatprep.subr.mxu0 0.0
    %1890 = vmatpush1.msra.mxu0 %v1875
    %1891 = vmatprep.subr.mxu0 0.0
    %1892 = vmatpush1.msra.mxu0 %v1876
    %1893 = vmatprep.subr.mxu0 0.0
    %1894 = vmatpush1.msra.mxu0 %v1877
    %1895 = vmatprep.subr.mxu0 0.0
    %1896 = vmatpush1.msra.mxu0 %v1878
    %1897 = vmatprep.subr.mxu0 0.0
    %1898 = vmatpush1.msra.mxu0 0.0
    %1899 = vmatprep.subr.mxu0 0.0
    %1900 = vmatpush1.msra.mxu0 0.0
    %1901 = vmatprep.subr.mxu0 0.0
    %1902 = vmatpush1.msra.mxu0 0.0
    %1903 = vmatprep.subr.mxu0 0.0
    %1904 = vmatpush1.msra.mxu0 0.0
    %1905 = vmatprep.subr.mxu0 0.0
    %1906 = vmatpush1.msra.mxu0 0.0
    %1907 = vmatprep.subr.mxu0 0.0
    %1908 = vmatpush1.msra.mxu0 0.0
    %1909 = vmatprep.subr.mxu0 0.0
    %1910 = vmatpush1.msra.mxu0 0.0
    %1911 = vmatprep.subr.mxu0 0.0
    %1912 = vmatpush1.msra.mxu0 0.0
    %1913 = vmatprep.subr.mxu0 0.0
    %1914 = vmatpush1.msra.mxu0 0.0
    %1915 = vmatprep.subr.mxu0 0.0
    %1916 = vmatpush1.msra.mxu0 0.0
    %1917 = vmatprep.subr.mxu0 0.0
    %1918 = vmatpush1.msra.mxu0 0.0
    %1919 = vmatprep.subr.mxu0 0.0
    %1920 = vmatpush1.msra.mxu0 0.0
    %1921 = vmatprep.subr.mxu0 0.0
    %1922 = vmatpush1.msra.mxu0 0.0
    %1923 = vmatprep.subr.mxu0 0.0
    %1924 = vmatpush1.msra.mxu0 0.0
    %1925 = vmatprep.subr.mxu0 0.0
    %1926 = vmatpush1.msra.mxu0 0.0
    %1927 = vmatprep.subr.mxu0 0.0
    %1928 = vmatpush1.msra.mxu0 0.0
    %1929 = vmatprep.subr.mxu0 0.0
    %1930 = vmatpush1.msra.mxu0 0.0
    %1931 = vmatprep.subr.mxu0 0.0
    %1932 = vmatpush1.msra.mxu0 0.0
    %1933 = vmatprep.subr.mxu0 0.0
    %1934 = vmatpush1.msra.mxu0 0.0
    %1935 = vmatprep.subr.mxu0 0.0
    %1936 = vmatpush1.msra.mxu0 0.0
    %1937 = vmatprep.subr.mxu0 0.0
    %1938 = vmatpush1.msra.mxu0 0.0
    %1939 = vmatprep.subr.mxu0 0.0
    %1940 = vmatpush1.msra.mxu0 0.0
    %1941 = vmatprep.subr.mxu0 0.0
    %1942 = vmatpush1.msra.mxu0 0.0
    %1943 = vmatprep.subr.mxu0 0.0
    %1944 = vmatpush1.msra.mxu0 0.0
    %1945 = vmatprep.subr.mxu0 0.0
    %1946 = vmatpush1.msra.mxu0 0.0
    %1947 = vmatprep.subr.mxu0 0.0
    %1948 = vmatpush1.msra.mxu0 0.0
    %1949 = vmatprep.subr.mxu0 0.0
    %1950 = vmatpush1.msra.mxu0 0.0
    %1951 = vmatprep.subr.mxu0 0.0
    %1952 = vmatpush1.msra.mxu0 0.0
    %1953 = vmatprep.mubr.f32.mxu0 0.0
    %1954 = vmatmul.mubr.f32.gmra.mrb[0].mxu0 %v1884
    %v1955 = vpop.f32.mrb[0].mxu0
    %v1956 = vadd.f32 %v1882, %v1955
    %v1957 = vpop.f32.mrb[0].mxu0
    %1958 = vmatprep.mubr.f32.mxu0 0.0
    %1959 = vmatmul.mubr.f32.gmra.mrb[0].mxu0 %v1887
    %v1960 = vpop.f32.mrb[0].mxu0
    %v1961 = vadd.f32 %v1882, %v1960
    %v1962 = vpop.f32.mrb[0].mxu0
    %1963 = vdwg.mxu0
    %v1964 = vld [vmem:[%s5] sm:$0xff]
    %v1965 = vld [vmem:[%s5 + $0x8] sm:$0xff]
    %v1966 = vld [vmem:[%s5 + $0x10] sm:$0xff]
    %v1967 = vld [vmem:[%s5 + $0x18] sm:$0xff]
    %v1968 = vlaneseq
    %v1969 = vshrl.u32 %v1968, 7
    %v1970 = vsub.s32 3, %v1969
    %v1971 = vrot.slane %v81, %v1970
    %v1973 = vsel %vm91, %v79, 0
    %v1976 = vsel %vm91, %v80, 0
    %1978 = vmatprep.subr.mxu0 0.0
    %1979 = vmatpush1.msra.mxu0 %v1964
    %1980 = vmatprep.subr.mxu0 0.0
    %1981 = vmatpush1.msra.mxu0 %v1965
    %1982 = vmatprep.subr.mxu0 0.0
    %1983 = vmatpush1.msra.mxu0 %v1966
    %1984 = vmatprep.subr.mxu0 0.0
    %1985 = vmatpush1.msra.mxu0 %v1967
    %1986 = vmatprep.subr.mxu0 0.0
    %1987 = vmatpush1.msra.mxu0 0.0
    %1988 = vmatprep.subr.mxu0 0.0
    %1989 = vmatpush1.msra.mxu0 0.0
    %1990 = vmatprep.subr.mxu0 0.0
    %1991 = vmatpush1.msra.mxu0 0.0
    %1992 = vmatprep.subr.mxu0 0.0
    %1993 = vmatpush1.msra.mxu0 0.0
    %1994 = vmatprep.subr.mxu0 0.0
    %1995 = vmatpush1.msra.mxu0 0.0
    %1996 = vmatprep.subr.mxu0 0.0
    %1997 = vmatpush1.msra.mxu0 0.0
    %1998 = vmatprep.subr.mxu0 0.0
    %1999 = vmatpush1.msra.mxu0 0.0
    %2000 = vmatprep.subr.mxu0 0.0
    %2001 = vmatpush1.msra.mxu0 0.0
    %2002 = vmatprep.subr.mxu0 0.0
    %2003 = vmatpush1.msra.mxu0 0.0
    %2004 = vmatprep.subr.mxu0 0.0
    %2005 = vmatpush1.msra.mxu0 0.0
    %2006 = vmatprep.subr.mxu0 0.0
    %2007 = vmatpush1.msra.mxu0 0.0
    %2008 = vmatprep.subr.mxu0 0.0
    %2009 = vmatpush1.msra.mxu0 0.0
    %2010 = vmatprep.subr.mxu0 0.0
    %2011 = vmatpush1.msra.mxu0 0.0
    %2012 = vmatprep.subr.mxu0 0.0
    %2013 = vmatpush1.msra.mxu0 0.0
    %2014 = vmatprep.subr.mxu0 0.0
    %2015 = vmatpush1.msra.mxu0 0.0
    %2016 = vmatprep.subr.mxu0 0.0
    %2017 = vmatpush1.msra.mxu0 0.0
    %2018 = vmatprep.subr.mxu0 0.0
    %2019 = vmatpush1.msra.mxu0 0.0
    %2020 = vmatprep.subr.mxu0 0.0
    %2021 = vmatpush1.msra.mxu0 0.0
    %2022 = vmatprep.subr.mxu0 0.0
    %2023 = vmatpush1.msra.mxu0 0.0
    %2024 = vmatprep.subr.mxu0 0.0
    %2025 = vmatpush1.msra.mxu0 0.0
    %2026 = vmatprep.subr.mxu0 0.0
    %2027 = vmatpush1.msra.mxu0 0.0
    %2028 = vmatprep.subr.mxu0 0.0
    %2029 = vmatpush1.msra.mxu0 0.0
    %2030 = vmatprep.subr.mxu0 0.0
    %2031 = vmatpush1.msra.mxu0 0.0
    %2032 = vmatprep.subr.mxu0 0.0
    %2033 = vmatpush1.msra.mxu0 0.0
    %2034 = vmatprep.subr.mxu0 0.0
    %2035 = vmatpush1.msra.mxu0 0.0
    %2036 = vmatprep.subr.mxu0 0.0
    %2037 = vmatpush1.msra.mxu0 0.0
    %2038 = vmatprep.subr.mxu0 0.0
    %2039 = vmatpush1.msra.mxu0 0.0
    %2040 = vmatprep.subr.mxu0 0.0
    %2041 = vmatpush1.msra.mxu0 0.0
    %2042 = vmatprep.mubr.f32.mxu0 0.0
    %2043 = vmatmul.mubr.f32.gmra.mrb[0].mxu0 %v1973
    %v2044 = vpop.f32.mrb[0].mxu0
    %v2045 = vadd.f32 %v1971, %v2044
    %v2046 = vpop.f32.mrb[0].mxu0
    %2047 = vmatprep.mubr.f32.mxu0 0.0
    %2048 = vmatmul.mubr.f32.gmra.mrb[0].mxu0 %v1976
    %v2049 = vpop.f32.mrb[0].mxu0
    %v2050 = vadd.f32 %v1971, %v2049
    %v2051 = vpop.f32.mrb[0].mxu0
    %2052 = vdwg.mxu0
    %v2053 = vld [vmem:[%s6] sm:$0xff]
    %v2054 = vld [vmem:[%s6 + $0x8] sm:$0xff]
    %v2055 = vld [vmem:[%s6 + $0x10] sm:$0xff]
    %v2056 = vld [vmem:[%s6 + $0x18] sm:$0xff]
    %v2057 = vmul.f32 %v1956, 0.17677669
    %v2058 = vmul.f32 %v1961, 0.17677669
    %v2060 = vsel %vm182, %v2057, 0
    %v2063 = vsel %vm182, %v2045, 0
    %2065 = vmatprep.subr.mxu0 0.0
    %2066 = vmatpush1.xpose.msra.mxu0 %v2063
    %2067 = vmatprep.subr.mxu0 0.0
    %2068 = vmatpush1.xpose.msra.mxu0 0.0
    %2069 = vmatprep.subr.mxu0 0.0
    %2070 = vmatpush1.xpose.msra.mxu0 0.0
    %2071 = vmatprep.subr.mxu0 0.0
    %2072 = vmatpush1.xpose.msra.mxu0 0.0
    %2073 = vmatprep.subr.mxu0 0.0
    %2074 = vmatpush1.xpose.msra.mxu0 0.0
    %2075 = vmatprep.subr.mxu0 0.0
    %2076 = vmatpush1.xpose.msra.mxu0 0.0
    %2077 = vmatprep.subr.mxu0 0.0
    %2078 = vmatpush1.xpose.msra.mxu0 0.0
    %2079 = vmatprep.subr.mxu0 0.0
    %2080 = vmatpush1.xpose.msra.mxu0 0.0
    %2081 = vmatprep.subr.mxu0 0.0
    %2082 = vmatpush1.xpose.msra.mxu0 0.0
    %2083 = vmatprep.subr.mxu0 0.0
    %2084 = vmatpush1.xpose.msra.mxu0 0.0
    %2085 = vmatprep.subr.mxu0 0.0
    %2086 = vmatpush1.xpose.msra.mxu0 0.0
    %2087 = vmatprep.subr.mxu0 0.0
    %2088 = vmatpush1.xpose.msra.mxu0 0.0
    %2089 = vmatprep.subr.mxu0 0.0
    %2090 = vmatpush1.xpose.msra.mxu0 0.0
    %2091 = vmatprep.subr.mxu0 0.0
    %2092 = vmatpush1.xpose.msra.mxu0 0.0
    %2093 = vmatprep.subr.mxu0 0.0
    %2094 = vmatpush1.xpose.msra.mxu0 0.0
    %2095 = vmatprep.subr.mxu0 0.0
    %2096 = vmatpush1.xpose.msra.mxu0 0.0
    %2097 = vmatprep.subr.mxu0 0.0
    %2098 = vmatpush1.xpose.msra.mxu0 0.0
    %2099 = vmatprep.subr.mxu0 0.0
    %2100 = vmatpush1.xpose.msra.mxu0 0.0
    %2101 = vmatprep.subr.mxu0 0.0
    %2102 = vmatpush1.xpose.msra.mxu0 0.0
    %2103 = vmatprep.subr.mxu0 0.0
    %2104 = vmatpush1.xpose.msra.mxu0 0.0
    %2105 = vmatprep.subr.mxu0 0.0
    %2106 = vmatpush1.xpose.msra.mxu0 0.0
    %2107 = vmatprep.subr.mxu0 0.0
    %2108 = vmatpush1.xpose.msra.mxu0 0.0
    %2109 = vmatprep.subr.mxu0 0.0
    %2110 = vmatpush1.xpose.msra.mxu0 0.0
    %2111 = vmatprep.subr.mxu0 0.0
    %2112 = vmatpush1.xpose.msra.mxu0 0.0
    %2113 = vmatprep.subr.mxu0 0.0
    %2114 = vmatpush1.xpose.msra.mxu0 0.0
    %2115 = vmatprep.subr.mxu0 0.0
    %2116 = vmatpush1.xpose.msra.mxu0 0.0
    %2117 = vmatprep.subr.mxu0 0.0
    %2118 = vmatpush1.xpose.msra.mxu0 0.0
    %2119 = vmatprep.subr.mxu0 0.0
    %2120 = vmatpush1.xpose.msra.mxu0 0.0
    %2121 = vmatprep.subr.mxu0 0.0
    %2122 = vmatpush1.xpose.msra.mxu0 0.0
    %2123 = vmatprep.subr.mxu0 0.0
    %2124 = vmatpush1.xpose.msra.mxu0 0.0
    %2125 = vmatprep.subr.mxu0 0.0
    %2126 = vmatpush1.xpose.msra.mxu0 0.0
    %2127 = vmatprep.subr.mxu0 0.0
    %2128 = vmatpush1.xpose.msra.mxu0 0.0
    %2129 = vmatprep.mubr.f32.mxu0 0.0
    %2130 = vmatmul.mubr.f32.gmra.mrb[0].mxu0 %v2060
    %v2131 = vpop.f32.mrb[0].mxu0
    %v2132 = vadd.f32 0.0, %v2131
    %v2133 = vpop.f32.mrb[0].mxu0
    %2134 = vdwg.mxu0
    %v2136 = vsel %vm182, %v2058, 0
    %v2139 = vsel %vm182, %v2050, 0
    %2141 = vmatprep.subr.mxu0 0.0
    %2142 = vmatpush1.xpose.msra.mxu0 %v2139
    %2143 = vmatprep.subr.mxu0 0.0
    %2144 = vmatpush1.xpose.msra.mxu0 0.0
    %2145 = vmatprep.subr.mxu0 0.0
    %2146 = vmatpush1.xpose.msra.mxu0 0.0
    %2147 = vmatprep.subr.mxu0 0.0
    %2148 = vmatpush1.xpose.msra.mxu0 0.0
    %2149 = vmatprep.subr.mxu0 0.0
    %2150 = vmatpush1.xpose.msra.mxu0 0.0
    %2151 = vmatprep.subr.mxu0 0.0
    %2152 = vmatpush1.xpose.msra.mxu0 0.0
    %2153 = vmatprep.subr.mxu0 0.0
    %2154 = vmatpush1.xpose.msra.mxu0 0.0
    %2155 = vmatprep.subr.mxu0 0.0
    %2156 = vmatpush1.xpose.msra.mxu0 0.0
    %2157 = vmatprep.subr.mxu0 0.0
    %2158 = vmatpush1.xpose.msra.mxu0 0.0
    %2159 = vmatprep.subr.mxu0 0.0
    %2160 = vmatpush1.xpose.msra.mxu0 0.0
    %2161 = vmatprep.subr.mxu0 0.0
    %2162 = vmatpush1.xpose.msra.mxu0 0.0
    %2163 = vmatprep.subr.mxu0 0.0
    %2164 = vmatpush1.xpose.msra.mxu0 0.0
    %2165 = vmatprep.subr.mxu0 0.0
    %2166 = vmatpush1.xpose.msra.mxu0 0.0
    %2167 = vmatprep.subr.mxu0 0.0
    %2168 = vmatpush1.xpose.msra.mxu0 0.0
    %2169 = vmatprep.subr.mxu0 0.0
    %2170 = vmatpush1.xpose.msra.mxu0 0.0
    %2171 = vmatprep.subr.mxu0 0.0
    %2172 = vmatpush1.xpose.msra.mxu0 0.0
    %2173 = vmatprep.subr.mxu0 0.0
    %2174 = vmatpush1.xpose.msra.mxu0 0.0
    %2175 = vmatprep.subr.mxu0 0.0
    %2176 = vmatpush1.xpose.msra.mxu0 0.0
    %2177 = vmatprep.subr.mxu0 0.0
    %2178 = vmatpush1.xpose.msra.mxu0 0.0
    %2179 = vmatprep.subr.mxu0 0.0
    %2180 = vmatpush1.xpose.msra.mxu0 0.0
    %2181 = vmatprep.subr.mxu0 0.0
    %2182 = vmatpush1.xpose.msra.mxu0 0.0
    %2183 = vmatprep.subr.mxu0 0.0
    %2184 = vmatpush1.xpose.msra.mxu0 0.0
    %2185 = vmatprep.subr.mxu0 0.0
    %2186 = vmatpush1.xpose.msra.mxu0 0.0
    %2187 = vmatprep.subr.mxu0 0.0
    %2188 = vmatpush1.xpose.msra.mxu0 0.0
    %2189 = vmatprep.subr.mxu0 0.0
    %2190 = vmatpush1.xpose.msra.mxu0 0.0
    %2191 = vmatprep.subr.mxu0 0.0
    %2192 = vmatpush1.xpose.msra.mxu0 0.0
    %2193 = vmatprep.subr.mxu0 0.0
    %2194 = vmatpush1.xpose.msra.mxu0 0.0
    %2195 = vmatprep.subr.mxu0 0.0
    %2196 = vmatpush1.xpose.msra.mxu0 0.0
    %2197 = vmatprep.subr.mxu0 0.0
    %2198 = vmatpush1.xpose.msra.mxu0 0.0
    %2199 = vmatprep.subr.mxu0 0.0
    %2200 = vmatpush1.xpose.msra.mxu0 0.0
    %2201 = vmatprep.subr.mxu0 0.0
    %2202 = vmatpush1.xpose.msra.mxu0 0.0
    %2203 = vmatprep.subr.mxu0 0.0
    %2204 = vmatpush1.xpose.msra.mxu0 0.0
    %2205 = vmatprep.mubr.f32.mxu0 0.0
    %2206 = vmatmul.mubr.f32.gmra.mrb[0].mxu0 %v2136
    %v2207 = vpop.f32.mrb[0].mxu0
    %v2208 = vadd.f32 0.0, %v2207
    %v2209 = vpop.f32.mrb[0].mxu0
    %2210 = vdwg.mxu0
    %v2211 = vsel %vm182, %v2132, -inf
    %2212 = vmax.xlane.f32.xlu0 %v2211
    %v2213 = vpop.xlane.xlu0 %2212
    %v2214 = vsel %vm182, %v2208, -inf
    %2215 = vmax.xlane.f32.xlu0 %v2214
    %v2216 = vpop.xlane.xlu0 %2215
    %v2217 = vsub.f32 %v2132, %v2213
    %v2218 = vsub.f32 %v2208, %v2216
    %v2219 = vmul.f32 %v2217, 1.442695
    %v2220 = vpow.pop %v2219
    %v2221 = vmul.f32 %v2218, 1.442695
    %v2222 = vpow.pop %v2221
    %v2223 = vsel %vm182, %v2220, 0.0
    %2224 = vadd.xlane.f32.xlu0 %v2223
    %v2225 = vpop.xlane.xlu0 %2224
    %v2226 = vsel %vm182, %v2222, 0.0
    %2227 = vadd.xlane.f32.xlu0 %v2226
    %v2228 = vpop.xlane.xlu0 %2227
    %v2229 = vrcp.pop %v2225
    %v2230 = vrcp.pop %v2228
    %v2231 = vmul.f32 %v2220, %v2229
    %v2232 = vmul.f32 %v2222, %v2230
    %2233 = vrot.lane.b32.xlu0 %v2045, 96
    %v2234 = vpop.permute.xlu0 %2233
    %v2237 = vsel %vm182, %v2231, 0
    %2239 = vmatprep.subr.mxu0 0.0
    %2240 = vmatpush1.msra.mxu0 %v2234
    %2241 = vmatprep.subr.mxu0 0.0
    %2242 = vmatpush1.msra.mxu0 0.0
    %2243 = vmatprep.subr.mxu0 0.0
    %2244 = vmatpush1.msra.mxu0 0.0
    %2245 = vmatprep.subr.mxu0 0.0
    %2246 = vmatpush1.msra.mxu0 0.0
    %2247 = vmatprep.subr.mxu0 0.0
    %2248 = vmatpush1.msra.mxu0 0.0
    %2249 = vmatprep.subr.mxu0 0.0
    %2250 = vmatpush1.msra.mxu0 0.0
    %2251 = vmatprep.subr.mxu0 0.0
    %2252 = vmatpush1.msra.mxu0 0.0
    %2253 = vmatprep.subr.mxu0 0.0
    %2254 = vmatpush1.msra.mxu0 0.0
    %2255 = vmatprep.subr.mxu0 0.0
    %2256 = vmatpush1.msra.mxu0 0.0
    %2257 = vmatprep.subr.mxu0 0.0
    %2258 = vmatpush1.msra.mxu0 0.0
    %2259 = vmatprep.subr.mxu0 0.0
    %2260 = vmatpush1.msra.mxu0 0.0
    %2261 = vmatprep.subr.mxu0 0.0
    %2262 = vmatpush1.msra.mxu0 0.0
    %2263 = vmatprep.subr.mxu0 0.0
    %2264 = vmatpush1.msra.mxu0 0.0
    %2265 = vmatprep.subr.mxu0 0.0
    %2266 = vmatpush1.msra.mxu0 0.0
    %2267 = vmatprep.subr.mxu0 0.0
    %2268 = vmatpush1.msra.mxu0 0.0
    %2269 = vmatprep.subr.mxu0 0.0
    %2270 = vmatpush1.msra.mxu0 0.0
    %2271 = vmatprep.subr.mxu0 0.0
    %2272 = vmatpush1.msra.mxu0 0.0
    %2273 = vmatprep.subr.mxu0 0.0
    %2274 = vmatpush1.msra.mxu0 0.0
    %2275 = vmatprep.subr.mxu0 0.0
    %2276 = vmatpush1.msra.mxu0 0.0
    %2277 = vmatprep.subr.mxu0 0.0
    %2278 = vmatpush1.msra.mxu0 0.0
    %2279 = vmatprep.subr.mxu0 0.0
    %2280 = vmatpush1.msra.mxu0 0.0
    %2281 = vmatprep.subr.mxu0 0.0
    %2282 = vmatpush1.msra.mxu0 0.0
    %2283 = vmatprep.subr.mxu0 0.0
    %2284 = vmatpush1.msra.mxu0 0.0
    %2285 = vmatprep.subr.mxu0 0.0
    %2286 = vmatpush1.msra.mxu0 0.0
    %2287 = vmatprep.subr.mxu0 0.0
    %2288 = vmatpush1.msra.mxu0 0.0
    %2289 = vmatprep.subr.mxu0 0.0
    %2290 = vmatpush1.msra.mxu0 0.0
    %2291 = vmatprep.subr.mxu0 0.0
    %2292 = vmatpush1.msra.mxu0 0.0
    %2293 = vmatprep.subr.mxu0 0.0
    %2294 = vmatpush1.msra.mxu0 0.0
    %2295 = vmatprep.subr.mxu0 0.0
    %2296 = vmatpush1.msra.mxu0 0.0
    %2297 = vmatprep.subr.mxu0 0.0
    %2298 = vmatpush1.msra.mxu0 0.0
    %2299 = vmatprep.subr.mxu0 0.0
    %2300 = vmatpush1.msra.mxu0 0.0
    %2301 = vmatprep.subr.mxu0 0.0
    %2302 = vmatpush1.msra.mxu0 0.0
    %2303 = vmatprep.mubr.f32.mxu0 0.0
    %2304 = vmatmul.mubr.f32.gmra.mrb[0].mxu0 %v2237
    %v2305 = vpop.f32.mrb[0].mxu0
    %v2306 = vadd.f32 0.0, %v2305
    %v2307 = vpop.f32.mrb[0].mxu0
    %2308 = vdwg.mxu0
    %2309 = vrot.lane.b32.xlu0 %v2050, 96
    %v2310 = vpop.permute.xlu0 %2309
    %v2313 = vsel %vm182, %v2232, 0
    %2315 = vmatprep.subr.mxu0 0.0
    %2316 = vmatpush1.msra.mxu0 %v2310
    %2317 = vmatprep.subr.mxu0 0.0
    %2318 = vmatpush1.msra.mxu0 0.0
    %2319 = vmatprep.subr.mxu0 0.0
    %2320 = vmatpush1.msra.mxu0 0.0
    %2321 = vmatprep.subr.mxu0 0.0
    %2322 = vmatpush1.msra.mxu0 0.0
    %2323 = vmatprep.subr.mxu0 0.0
    %2324 = vmatpush1.msra.mxu0 0.0
    %2325 = vmatprep.subr.mxu0 0.0
    %2326 = vmatpush1.msra.mxu0 0.0
    %2327 = vmatprep.subr.mxu0 0.0
    %2328 = vmatpush1.msra.mxu0 0.0
    %2329 = vmatprep.subr.mxu0 0.0
    %2330 = vmatpush1.msra.mxu0 0.0
    %2331 = vmatprep.subr.mxu0 0.0
    %2332 = vmatpush1.msra.mxu0 0.0
    %2333 = vmatprep.subr.mxu0 0.0
    %2334 = vmatpush1.msra.mxu0 0.0
    %2335 = vmatprep.subr.mxu0 0.0
    %2336 = vmatpush1.msra.mxu0 0.0
    %2337 = vmatprep.subr.mxu0 0.0
    %2338 = vmatpush1.msra.mxu0 0.0
    %2339 = vmatprep.subr.mxu0 0.0
    %2340 = vmatpush1.msra.mxu0 0.0
    %2341 = vmatprep.subr.mxu0 0.0
    %2342 = vmatpush1.msra.mxu0 0.0
    %2343 = vmatprep.subr.mxu0 0.0
    %2344 = vmatpush1.msra.mxu0 0.0
    %2345 = vmatprep.subr.mxu0 0.0
    %2346 = vmatpush1.msra.mxu0 0.0
    %2347 = vmatprep.subr.mxu0 0.0
    %2348 = vmatpush1.msra.mxu0 0.0
    %2349 = vmatprep.subr.mxu0 0.0
    %2350 = vmatpush1.msra.mxu0 0.0
    %2351 = vmatprep.subr.mxu0 0.0
    %2352 = vmatpush1.msra.mxu0 0.0
    %2353 = vmatprep.subr.mxu0 0.0
    %2354 = vmatpush1.msra.mxu0 0.0
    %2355 = vmatprep.subr.mxu0 0.0
    %2356 = vmatpush1.msra.mxu0 0.0
    %2357 = vmatprep.subr.mxu0 0.0
    %2358 = vmatpush1.msra.mxu0 0.0
    %2359 = vmatprep.subr.mxu0 0.0
    %2360 = vmatpush1.msra.mxu0 0.0
    %2361 = vmatprep.subr.mxu0 0.0
    %2362 = vmatpush1.msra.mxu0 0.0
    %2363 = vmatprep.subr.mxu0 0.0
    %2364 = vmatpush1.msra.mxu0 0.0
    %2365 = vmatprep.subr.mxu0 0.0
    %2366 = vmatpush1.msra.mxu0 0.0
    %2367 = vmatprep.subr.mxu0 0.0
    %2368 = vmatpush1.msra.mxu0 0.0
    %2369 = vmatprep.subr.mxu0 0.0
    %2370 = vmatpush1.msra.mxu0 0.0
    %2371 = vmatprep.subr.mxu0 0.0
    %2372 = vmatpush1.msra.mxu0 0.0
    %2373 = vmatprep.subr.mxu0 0.0
    %2374 = vmatpush1.msra.mxu0 0.0
    %2375 = vmatprep.subr.mxu0 0.0
    %2376 = vmatpush1.msra.mxu0 0.0
    %2377 = vmatprep.subr.mxu0 0.0
    %2378 = vmatpush1.msra.mxu0 0.0
    %2379 = vmatprep.mubr.f32.mxu0 0.0
    %2380 = vmatmul.mubr.f32.gmra.mrb[0].mxu0 %v2313
    %v2381 = vpop.f32.mrb[0].mxu0
    %v2382 = vadd.f32 0.0, %v2381
    %v2383 = vpop.f32.mrb[0].mxu0
    %2384 = vdwg.mxu0
    %2385 = vrot.lane.b32.xlu0 %v2057, 120
    %v2386 = vpop.permute.xlu0 %2385
    %2387 = vrot.lane.b32.xlu0 %v2045, 120
    %v2388 = vpop.permute.xlu0 %2387
    %v2389 = vsel %vm182, %v2386, 0
    %v2391 = vsel %vm182, %v2388, 0
    %2393 = vmatprep.subr.mxu0 0.0
    %2394 = vmatpush1.xpose.msra.mxu0 %v2391
    %2395 = vmatprep.subr.mxu0 0.0
    %2396 = vmatpush1.xpose.msra.mxu0 0.0
    %2397 = vmatprep.subr.mxu0 0.0
    %2398 = vmatpush1.xpose.msra.mxu0 0.0
    %2399 = vmatprep.subr.mxu0 0.0
    %2400 = vmatpush1.xpose.msra.mxu0 0.0
    %2401 = vmatprep.subr.mxu0 0.0
    %2402 = vmatpush1.xpose.msra.mxu0 0.0
    %2403 = vmatprep.subr.mxu0 0.0
    %2404 = vmatpush1.xpose.msra.mxu0 0.0
    %2405 = vmatprep.subr.mxu0 0.0
    %2406 = vmatpush1.xpose.msra.mxu0 0.0
    %2407 = vmatprep.subr.mxu0 0.0
    %2408 = vmatpush1.xpose.msra.mxu0 0.0
    %2409 = vmatprep.subr.mxu0 0.0
    %2410 = vmatpush1.xpose.msra.mxu0 0.0
    %2411 = vmatprep.subr.mxu0 0.0
    %2412 = vmatpush1.xpose.msra.mxu0 0.0
    %2413 = vmatprep.subr.mxu0 0.0
    %2414 = vmatpush1.xpose.msra.mxu0 0.0
    %2415 = vmatprep.subr.mxu0 0.0
    %2416 = vmatpush1.xpose.msra.mxu0 0.0
    %2417 = vmatprep.subr.mxu0 0.0
    %2418 = vmatpush1.xpose.msra.mxu0 0.0
    %2419 = vmatprep.subr.mxu0 0.0
    %2420 = vmatpush1.xpose.msra.mxu0 0.0
    %2421 = vmatprep.subr.mxu0 0.0
    %2422 = vmatpush1.xpose.msra.mxu0 0.0
    %2423 = vmatprep.subr.mxu0 0.0
    %2424 = vmatpush1.xpose.msra.mxu0 0.0
    %2425 = vmatprep.subr.mxu0 0.0
    %2426 = vmatpush1.xpose.msra.mxu0 0.0
    %2427 = vmatprep.subr.mxu0 0.0
    %2428 = vmatpush1.xpose.msra.mxu0 0.0
    %2429 = vmatprep.subr.mxu0 0.0
    %2430 = vmatpush1.xpose.msra.mxu0 0.0
    %2431 = vmatprep.subr.mxu0 0.0
    %2432 = vmatpush1.xpose.msra.mxu0 0.0
    %2433 = vmatprep.subr.mxu0 0.0
    %2434 = vmatpush1.xpose.msra.mxu0 0.0
    %2435 = vmatprep.subr.mxu0 0.0
    %2436 = vmatpush1.xpose.msra.mxu0 0.0
    %2437 = vmatprep.subr.mxu0 0.0
    %2438 = vmatpush1.xpose.msra.mxu0 0.0
    %2439 = vmatprep.subr.mxu0 0.0
    %2440 = vmatpush1.xpose.msra.mxu0 0.0
    %2441 = vmatprep.subr.mxu0 0.0
    %2442 = vmatpush1.xpose.msra.mxu0 0.0
    %2443 = vmatprep.subr.mxu0 0.0
    %2444 = vmatpush1.xpose.msra.mxu0 0.0
    %2445 = vmatprep.subr.mxu0 0.0
    %2446 = vmatpush1.xpose.msra.mxu0 0.0
    %2447 = vmatprep.subr.mxu0 0.0
    %2448 = vmatpush1.xpose.msra.mxu0 0.0
    %2449 = vmatprep.subr.mxu0 0.0
    %2450 = vmatpush1.xpose.msra.mxu0 0.0
    %2451 = vmatprep.subr.mxu0 0.0
    %2452 = vmatpush1.xpose.msra.mxu0 0.0
    %2453 = vmatprep.subr.mxu0 0.0
    %2454 = vmatpush1.xpose.msra.mxu0 0.0
    %2455 = vmatprep.subr.mxu0 0.0
    %2456 = vmatpush1.xpose.msra.mxu0 0.0
    %2457 = vmatprep.mubr.f32.mxu0 0.0
    %2458 = vmatmul.mubr.f32.gmra.mrb[0].mxu0 %v2389
    %v2459 = vpop.f32.mrb[0].mxu0
    %v2460 = vadd.f32 0.0, %v2459
    %v2461 = vpop.f32.mrb[0].mxu0
    %2462 = vdwg.mxu0
    %2463 = vrot.lane.b32.xlu0 %v2058, 120
    %v2464 = vpop.permute.xlu0 %2463
    %2465 = vrot.lane.b32.xlu0 %v2050, 120
    %v2466 = vpop.permute.xlu0 %2465
    %v2467 = vsel %vm182, %v2464, 0
    %v2469 = vsel %vm182, %v2466, 0
    %2471 = vmatprep.subr.mxu0 0.0
    %2472 = vmatpush1.xpose.msra.mxu0 %v2469
    %2473 = vmatprep.subr.mxu0 0.0
    %2474 = vmatpush1.xpose.msra.mxu0 0.0
    %2475 = vmatprep.subr.mxu0 0.0
    %2476 = vmatpush1.xpose.msra.mxu0 0.0
    %2477 = vmatprep.subr.mxu0 0.0
    %2478 = vmatpush1.xpose.msra.mxu0 0.0
    %2479 = vmatprep.subr.mxu0 0.0
    %2480 = vmatpush1.xpose.msra.mxu0 0.0
    %2481 = vmatprep.subr.mxu0 0.0
    %2482 = vmatpush1.xpose.msra.mxu0 0.0
    %2483 = vmatprep.subr.mxu0 0.0
    %2484 = vmatpush1.xpose.msra.mxu0 0.0
    %2485 = vmatprep.subr.mxu0 0.0
    %2486 = vmatpush1.xpose.msra.mxu0 0.0
    %2487 = vmatprep.subr.mxu0 0.0
    %2488 = vmatpush1.xpose.msra.mxu0 0.0
    %2489 = vmatprep.subr.mxu0 0.0
    %2490 = vmatpush1.xpose.msra.mxu0 0.0
    %2491 = vmatprep.subr.mxu0 0.0
    %2492 = vmatpush1.xpose.msra.mxu0 0.0
    %2493 = vmatprep.subr.mxu0 0.0
    %2494 = vmatpush1.xpose.msra.mxu0 0.0
    %2495 = vmatprep.subr.mxu0 0.0
    %2496 = vmatpush1.xpose.msra.mxu0 0.0
    %2497 = vmatprep.subr.mxu0 0.0
    %2498 = vmatpush1.xpose.msra.mxu0 0.0
    %2499 = vmatprep.subr.mxu0 0.0
    %2500 = vmatpush1.xpose.msra.mxu0 0.0
    %2501 = vmatprep.subr.mxu0 0.0
    %2502 = vmatpush1.xpose.msra.mxu0 0.0
    %2503 = vmatprep.subr.mxu0 0.0
    %2504 = vmatpush1.xpose.msra.mxu0 0.0
    %2505 = vmatprep.subr.mxu0 0.0
    %2506 = vmatpush1.xpose.msra.mxu0 0.0
    %2507 = vmatprep.subr.mxu0 0.0
    %2508 = vmatpush1.xpose.msra.mxu0 0.0
    %2509 = vmatprep.subr.mxu0 0.0
    %2510 = vmatpush1.xpose.msra.mxu0 0.0
    %2511 = vmatprep.subr.mxu0 0.0
    %2512 = vmatpush1.xpose.msra.mxu0 0.0
    %2513 = vmatprep.subr.mxu0 0.0
    %2514 = vmatpush1.xpose.msra.mxu0 0.0
    %2515 = vmatprep.subr.mxu0 0.0
    %2516 = vmatpush1.xpose.msra.mxu0 0.0
    %2517 = vmatprep.subr.mxu0 0.0
    %2518 = vmatpush1.xpose.msra.mxu0 0.0
    %2519 = vmatprep.subr.mxu0 0.0
    %2520 = vmatpush1.xpose.msra.mxu0 0.0
    %2521 = vmatprep.subr.mxu0 0.0
    %2522 = vmatpush1.xpose.msra.mxu0 0.0
    %2523 = vmatprep.subr.mxu0 0.0
    %2524 = vmatpush1.xpose.msra.mxu0 0.0
    %2525 = vmatprep.subr.mxu0 0.0
    %2526 = vmatpush1.xpose.msra.mxu0 0.0
    %2527 = vmatprep.subr.mxu0 0.0
    %2528 = vmatpush1.xpose.msra.mxu0 0.0
    %2529 = vmatprep.subr.mxu0 0.0
    %2530 = vmatpush1.xpose.msra.mxu0 0.0
    %2531 = vmatprep.subr.mxu0 0.0
    %2532 = vmatpush1.xpose.msra.mxu0 0.0
    %2533 = vmatprep.subr.mxu0 0.0
    %2534 = vmatpush1.xpose.msra.mxu0 0.0
    %2535 = vmatprep.mubr.f32.mxu0 0.0
    %2536 = vmatmul.mubr.f32.gmra.mrb[0].mxu0 %v2467
    %v2537 = vpop.f32.mrb[0].mxu0
    %v2538 = vadd.f32 0.0, %v2537
    %v2539 = vpop.f32.mrb[0].mxu0
    %2540 = vdwg.mxu0
    %v2541 = vsel %vm182, %v2460, -inf
    %2542 = vmax.xlane.f32.xlu0 %v2541
    %v2543 = vpop.xlane.xlu0 %2542
    %v2544 = vsel %vm182, %v2538, -inf
    %2545 = vmax.xlane.f32.xlu0 %v2544
    %v2546 = vpop.xlane.xlu0 %2545
    %v2547 = vsub.f32 %v2460, %v2543
    %v2548 = vsub.f32 %v2538, %v2546
    %v2549 = vmul.f32 %v2547, 1.442695
    %v2550 = vpow.pop %v2549
    %v2551 = vmul.f32 %v2548, 1.442695
    %v2552 = vpow.pop %v2551
    %v2553 = vsel %vm182, %v2550, 0.0
    %2554 = vadd.xlane.f32.xlu0 %v2553
    %v2555 = vpop.xlane.xlu0 %2554
    %v2556 = vsel %vm182, %v2552, 0.0
    %2557 = vadd.xlane.f32.xlu0 %v2556
    %v2558 = vpop.xlane.xlu0 %2557
    %v2559 = vrcp.pop %v2555
    %v2560 = vrcp.pop %v2558
    %v2561 = vmul.f32 %v2550, %v2559
    %v2562 = vmul.f32 %v2552, %v2560
    %2563 = vrot.lane.b32.xlu0 %v2045, 88
    %v2564 = vpop.permute.xlu0 %2563
    %v2567 = vsel %vm182, %v2561, 0
    %2569 = vmatprep.subr.mxu0 0.0
    %2570 = vmatpush1.msra.mxu0 %v2564
    %2571 = vmatprep.subr.mxu0 0.0
    %2572 = vmatpush1.msra.mxu0 0.0
    %2573 = vmatprep.subr.mxu0 0.0
    %2574 = vmatpush1.msra.mxu0 0.0
    %2575 = vmatprep.subr.mxu0 0.0
    %2576 = vmatpush1.msra.mxu0 0.0
    %2577 = vmatprep.subr.mxu0 0.0
    %2578 = vmatpush1.msra.mxu0 0.0
    %2579 = vmatprep.subr.mxu0 0.0
    %2580 = vmatpush1.msra.mxu0 0.0
    %2581 = vmatprep.subr.mxu0 0.0
    %2582 = vmatpush1.msra.mxu0 0.0
    %2583 = vmatprep.subr.mxu0 0.0
    %2584 = vmatpush1.msra.mxu0 0.0
    %2585 = vmatprep.subr.mxu0 0.0
    %2586 = vmatpush1.msra.mxu0 0.0
    %2587 = vmatprep.subr.mxu0 0.0
    %2588 = vmatpush1.msra.mxu0 0.0
    %2589 = vmatprep.subr.mxu0 0.0
    %2590 = vmatpush1.msra.mxu0 0.0
    %2591 = vmatprep.subr.mxu0 0.0
    %2592 = vmatpush1.msra.mxu0 0.0
    %2593 = vmatprep.subr.mxu0 0.0
    %2594 = vmatpush1.msra.mxu0 0.0
    %2595 = vmatprep.subr.mxu0 0.0
    %2596 = vmatpush1.msra.mxu0 0.0
    %2597 = vmatprep.subr.mxu0 0.0
    %2598 = vmatpush1.msra.mxu0 0.0
    %2599 = vmatprep.subr.mxu0 0.0
    %2600 = vmatpush1.msra.mxu0 0.0
    %2601 = vmatprep.subr.mxu0 0.0
    %2602 = vmatpush1.msra.mxu0 0.0
    %2603 = vmatprep.subr.mxu0 0.0
    %2604 = vmatpush1.msra.mxu0 0.0
    %2605 = vmatprep.subr.mxu0 0.0
    %2606 = vmatpush1.msra.mxu0 0.0
    %2607 = vmatprep.subr.mxu0 0.0
    %2608 = vmatpush1.msra.mxu0 0.0
    %2609 = vmatprep.subr.mxu0 0.0
    %2610 = vmatpush1.msra.mxu0 0.0
    %2611 = vmatprep.subr.mxu0 0.0
    %2612 = vmatpush1.msra.mxu0 0.0
    %2613 = vmatprep.subr.mxu0 0.0
    %2614 = vmatpush1.msra.mxu0 0.0
    %2615 = vmatprep.subr.mxu0 0.0
    %2616 = vmatpush1.msra.mxu0 0.0
    %2617 = vmatprep.subr.mxu0 0.0
    %2618 = vmatpush1.msra.mxu0 0.0
    %2619 = vmatprep.subr.mxu0 0.0
    %2620 = vmatpush1.msra.mxu0 0.0
    %2621 = vmatprep.subr.mxu0 0.0
    %2622 = vmatpush1.msra.mxu0 0.0
    %2623 = vmatprep.subr.mxu0 0.0
    %2624 = vmatpush1.msra.mxu0 0.0
    %2625 = vmatprep.subr.mxu0 0.0
    %2626 = vmatpush1.msra.mxu0 0.0
    %2627 = vmatprep.subr.mxu0 0.0
    %2628 = vmatpush1.msra.mxu0 0.0
    %2629 = vmatprep.subr.mxu0 0.0
    %2630 = vmatpush1.msra.mxu0 0.0
    %2631 = vmatprep.subr.mxu0 0.0
    %2632 = vmatpush1.msra.mxu0 0.0
    %2633 = vmatprep.mubr.f32.mxu0 0.0
    %2634 = vmatmul.mubr.f32.gmra.mrb[0].mxu0 %v2567
    %v2635 = vpop.f32.mrb[0].mxu0
    %v2636 = vadd.f32 0.0, %v2635
    %v2637 = vpop.f32.mrb[0].mxu0
    %2638 = vdwg.mxu0
    %2639 = vrot.lane.b32.xlu0 %v2050, 88
    %v2640 = vpop.permute.xlu0 %2639
    %v2643 = vsel %vm182, %v2562, 0
    %2645 = vmatprep.subr.mxu0 0.0
    %2646 = vmatpush1.msra.mxu0 %v2640
    %2647 = vmatprep.subr.mxu0 0.0
    %2648 = vmatpush1.msra.mxu0 0.0
    %2649 = vmatprep.subr.mxu0 0.0
    %2650 = vmatpush1.msra.mxu0 0.0
    %2651 = vmatprep.subr.mxu0 0.0
    %2652 = vmatpush1.msra.mxu0 0.0
    %2653 = vmatprep.subr.mxu0 0.0
    %2654 = vmatpush1.msra.mxu0 0.0
    %2655 = vmatprep.subr.mxu0 0.0
    %2656 = vmatpush1.msra.mxu0 0.0
    %2657 = vmatprep.subr.mxu0 0.0
    %2658 = vmatpush1.msra.mxu0 0.0
    %2659 = vmatprep.subr.mxu0 0.0
    %2660 = vmatpush1.msra.mxu0 0.0
    %2661 = vmatprep.subr.mxu0 0.0
    %2662 = vmatpush1.msra.mxu0 0.0
    %2663 = vmatprep.subr.mxu0 0.0
    %2664 = vmatpush1.msra.mxu0 0.0
    %2665 = vmatprep.subr.mxu0 0.0
    %2666 = vmatpush1.msra.mxu0 0.0
    %2667 = vmatprep.subr.mxu0 0.0
    %2668 = vmatpush1.msra.mxu0 0.0
    %2669 = vmatprep.subr.mxu0 0.0
    %2670 = vmatpush1.msra.mxu0 0.0
    %2671 = vmatprep.subr.mxu0 0.0
    %2672 = vmatpush1.msra.mxu0 0.0
    %2673 = vmatprep.subr.mxu0 0.0
    %2674 = vmatpush1.msra.mxu0 0.0
    %2675 = vmatprep.subr.mxu0 0.0
    %2676 = vmatpush1.msra.mxu0 0.0
    %2677 = vmatprep.subr.mxu0 0.0
    %2678 = vmatpush1.msra.mxu0 0.0
    %2679 = vmatprep.subr.mxu0 0.0
    %2680 = vmatpush1.msra.mxu0 0.0
    %2681 = vmatprep.subr.mxu0 0.0
    %2682 = vmatpush1.msra.mxu0 0.0
    %2683 = vmatprep.subr.mxu0 0.0
    %2684 = vmatpush1.msra.mxu0 0.0
    %2685 = vmatprep.subr.mxu0 0.0
    %2686 = vmatpush1.msra.mxu0 0.0
    %2687 = vmatprep.subr.mxu0 0.0
    %2688 = vmatpush1.msra.mxu0 0.0
    %2689 = vmatprep.subr.mxu0 0.0
    %2690 = vmatpush1.msra.mxu0 0.0
    %2691 = vmatprep.subr.mxu0 0.0
    %2692 = vmatpush1.msra.mxu0 0.0
    %2693 = vmatprep.subr.mxu0 0.0
    %2694 = vmatpush1.msra.mxu0 0.0
    %2695 = vmatprep.subr.mxu0 0.0
    %2696 = vmatpush1.msra.mxu0 0.0
    %2697 = vmatprep.subr.mxu0 0.0
    %2698 = vmatpush1.msra.mxu0 0.0
    %2699 = vmatprep.subr.mxu0 0.0
    %2700 = vmatpush1.msra.mxu0 0.0
    %2701 = vmatprep.subr.mxu0 0.0
    %2702 = vmatpush1.msra.mxu0 0.0
    %2703 = vmatprep.subr.mxu0 0.0
    %2704 = vmatpush1.msra.mxu0 0.0
    %2705 = vmatprep.subr.mxu0 0.0
    %2706 = vmatpush1.msra.mxu0 0.0
    %2707 = vmatprep.subr.mxu0 0.0
    %2708 = vmatpush1.msra.mxu0 0.0
    %2709 = vmatprep.mubr.f32.mxu0 0.0
    %2710 = vmatmul.mubr.f32.gmra.mrb[0].mxu0 %v2643
    %v2711 = vpop.f32.mrb[0].mxu0
    %v2712 = vadd.f32 0.0, %v2711
    %v2713 = vpop.f32.mrb[0].mxu0
    %2714 = vdwg.mxu0
    %v2716 = vsel %vm182, %v2636, 0
    %v2719 = vsel %vm182, %v2712, 0
    %2721 = vmatprep.subr.mxu0 0.0
    %2722 = vmatpush1.msra.mxu0 %v2054
    %2723 = vmatprep.subr.mxu0 0.0
    %2724 = vmatpush1.msra.mxu0 0.0
    %2725 = vmatprep.subr.mxu0 0.0
    %2726 = vmatpush1.msra.mxu0 0.0
    %2727 = vmatprep.subr.mxu0 0.0
    %2728 = vmatpush1.msra.mxu0 0.0
    %2729 = vmatprep.subr.mxu0 0.0
    %2730 = vmatpush1.msra.mxu0 0.0
    %2731 = vmatprep.subr.mxu0 0.0
    %2732 = vmatpush1.msra.mxu0 0.0
    %2733 = vmatprep.subr.mxu0 0.0
    %2734 = vmatpush1.msra.mxu0 0.0
    %2735 = vmatprep.subr.mxu0 0.0
    %2736 = vmatpush1.msra.mxu0 0.0
    %2737 = vmatprep.subr.mxu0 0.0
    %2738 = vmatpush1.msra.mxu0 0.0
    %2739 = vmatprep.subr.mxu0 0.0
    %2740 = vmatpush1.msra.mxu0 0.0
    %2741 = vmatprep.subr.mxu0 0.0
    %2742 = vmatpush1.msra.mxu0 0.0
    %2743 = vmatprep.subr.mxu0 0.0
    %2744 = vmatpush1.msra.mxu0 0.0
    %2745 = vmatprep.subr.mxu0 0.0
    %2746 = vmatpush1.msra.mxu0 0.0
    %2747 = vmatprep.subr.mxu0 0.0
    %2748 = vmatpush1.msra.mxu0 0.0
    %2749 = vmatprep.subr.mxu0 0.0
    %2750 = vmatpush1.msra.mxu0 0.0
    %2751 = vmatprep.subr.mxu0 0.0
    %2752 = vmatpush1.msra.mxu0 0.0
    %2753 = vmatprep.subr.mxu0 0.0
    %2754 = vmatpush1.msra.mxu0 0.0
    %2755 = vmatprep.subr.mxu0 0.0
    %2756 = vmatpush1.msra.mxu0 0.0
    %2757 = vmatprep.subr.mxu0 0.0
    %2758 = vmatpush1.msra.mxu0 0.0
    %2759 = vmatprep.subr.mxu0 0.0
    %2760 = vmatpush1.msra.mxu0 0.0
    %2761 = vmatprep.subr.mxu0 0.0
    %2762 = vmatpush1.msra.mxu0 0.0
    %2763 = vmatprep.subr.mxu0 0.0
    %2764 = vmatpush1.msra.mxu0 0.0
    %2765 = vmatprep.subr.mxu0 0.0
    %2766 = vmatpush1.msra.mxu0 0.0
    %2767 = vmatprep.subr.mxu0 0.0
    %2768 = vmatpush1.msra.mxu0 0.0
    %2769 = vmatprep.subr.mxu0 0.0
    %2770 = vmatpush1.msra.mxu0 0.0
    %2771 = vmatprep.subr.mxu0 0.0
    %2772 = vmatpush1.msra.mxu0 0.0
    %2773 = vmatprep.subr.mxu0 0.0
    %2774 = vmatpush1.msra.mxu0 0.0
    %2775 = vmatprep.subr.mxu0 0.0
    %2776 = vmatpush1.msra.mxu0 0.0
    %2777 = vmatprep.subr.mxu0 0.0
    %2778 = vmatpush1.msra.mxu0 0.0
    %2779 = vmatprep.subr.mxu0 0.0
    %2780 = vmatpush1.msra.mxu0 0.0
    %2781 = vmatprep.subr.mxu0 0.0
    %2782 = vmatpush1.msra.mxu0 0.0
    %2783 = vmatprep.subr.mxu0 0.0
    %2784 = vmatpush1.msra.mxu0 0.0
    %2785 = vmatprep.mubr.f32.mxu0 0.0
    %2786 = vmatmul.mubr.f32.gmra.mrb[0].mxu0 %v2716
    %v2787 = vpop.f32.mrb[0].mxu0
    %v2788 = vadd.f32 0.0, %v2787
    %v2789 = vpop.f32.mrb[0].mxu0
    %2790 = vmatprep.mubr.f32.mxu0 0.0
    %2791 = vmatmul.mubr.f32.gmra.mrb[0].mxu0 %v2719
    %v2792 = vpop.f32.mrb[0].mxu0
    %v2793 = vadd.f32 0.0, %v2792
    %v2794 = vpop.f32.mrb[0].mxu0
    %2795 = vdwg.mxu0
    %2796 = vrot.lane.b32.xlu0 %v2057, 112
    %v2797 = vpop.permute.xlu0 %2796
    %2798 = vrot.lane.b32.xlu0 %v2045, 112
    %v2799 = vpop.permute.xlu0 %2798
    %v2800 = vsel %vm182, %v2797, 0
    %v2802 = vsel %vm182, %v2799, 0
    %2804 = vmatprep.subr.mxu0 0.0
    %2805 = vmatpush1.xpose.msra.mxu0 %v2802
    %2806 = vmatprep.subr.mxu0 0.0
    %2807 = vmatpush1.xpose.msra.mxu0 0.0
    %2808 = vmatprep.subr.mxu0 0.0
    %2809 = vmatpush1.xpose.msra.mxu0 0.0
    %2810 = vmatprep.subr.mxu0 0.0
    %2811 = vmatpush1.xpose.msra.mxu0 0.0
    %2812 = vmatprep.subr.mxu0 0.0
    %2813 = vmatpush1.xpose.msra.mxu0 0.0
    %2814 = vmatprep.subr.mxu0 0.0
    %2815 = vmatpush1.xpose.msra.mxu0 0.0
    %2816 = vmatprep.subr.mxu0 0.0
    %2817 = vmatpush1.xpose.msra.mxu0 0.0
    %2818 = vmatprep.subr.mxu0 0.0
    %2819 = vmatpush1.xpose.msra.mxu0 0.0
    %2820 = vmatprep.subr.mxu0 0.0
    %2821 = vmatpush1.xpose.msra.mxu0 0.0
    %2822 = vmatprep.subr.mxu0 0.0
    %2823 = vmatpush1.xpose.msra.mxu0 0.0
    %2824 = vmatprep.subr.mxu0 0.0
    %2825 = vmatpush1.xpose.msra.mxu0 0.0
    %2826 = vmatprep.subr.mxu0 0.0
    %2827 = vmatpush1.xpose.msra.mxu0 0.0
    %2828 = vmatprep.subr.mxu0 0.0
    %2829 = vmatpush1.xpose.msra.mxu0 0.0
    %2830 = vmatprep.subr.mxu0 0.0
    %2831 = vmatpush1.xpose.msra.mxu0 0.0
    %2832 = vmatprep.subr.mxu0 0.0
    %2833 = vmatpush1.xpose.msra.mxu0 0.0
    %2834 = vmatprep.subr.mxu0 0.0
    %2835 = vmatpush1.xpose.msra.mxu0 0.0
    %2836 = vmatprep.subr.mxu0 0.0
    %2837 = vmatpush1.xpose.msra.mxu0 0.0
    %2838 = vmatprep.subr.mxu0 0.0
    %2839 = vmatpush1.xpose.msra.mxu0 0.0
    %2840 = vmatprep.subr.mxu0 0.0
    %2841 = vmatpush1.xpose.msra.mxu0 0.0
    %2842 = vmatprep.subr.mxu0 0.0
    %2843 = vmatpush1.xpose.msra.mxu0 0.0
    %2844 = vmatprep.subr.mxu0 0.0
    %2845 = vmatpush1.xpose.msra.mxu0 0.0
    %2846 = vmatprep.subr.mxu0 0.0
    %2847 = vmatpush1.xpose.msra.mxu0 0.0
    %2848 = vmatprep.subr.mxu0 0.0
    %2849 = vmatpush1.xpose.msra.mxu0 0.0
    %2850 = vmatprep.subr.mxu0 0.0
    %2851 = vmatpush1.xpose.msra.mxu0 0.0
    %2852 = vmatprep.subr.mxu0 0.0
    %2853 = vmatpush1.xpose.msra.mxu0 0.0
    %2854 = vmatprep.subr.mxu0 0.0
    %2855 = vmatpush1.xpose.msra.mxu0 0.0
    %2856 = vmatprep.subr.mxu0 0.0
    %2857 = vmatpush1.xpose.msra.mxu0 0.0
    %2858 = vmatprep.subr.mxu0 0.0
    %2859 = vmatpush1.xpose.msra.mxu0 0.0
    %2860 = vmatprep.subr.mxu0 0.0
    %2861 = vmatpush1.xpose.msra.mxu0 0.0
    %2862 = vmatprep.subr.mxu0 0.0
    %2863 = vmatpush1.xpose.msra.mxu0 0.0
    %2864 = vmatprep.subr.mxu0 0.0
    %2865 = vmatpush1.xpose.msra.mxu0 0.0
    %2866 = vmatprep.subr.mxu0 0.0
    %2867 = vmatpush1.xpose.msra.mxu0 0.0
    %2868 = vmatprep.mubr.f32.mxu0 0.0
    %2869 = vmatmul.mubr.f32.gmra.mrb[0].mxu0 %v2800
    %v2870 = vpop.f32.mrb[0].mxu0
    %v2871 = vadd.f32 0.0, %v2870
    %v2872 = vpop.f32.mrb[0].mxu0
    %2873 = vdwg.mxu0
    %2874 = vrot.lane.b32.xlu0 %v2058, 112
    %v2875 = vpop.permute.xlu0 %2874
    %2876 = vrot.lane.b32.xlu0 %v2050, 112
    %v2877 = vpop.permute.xlu0 %2876
    %v2878 = vsel %vm182, %v2875, 0
    %v2880 = vsel %vm182, %v2877, 0
    %2882 = vmatprep.subr.mxu0 0.0
    %2883 = vmatpush1.xpose.msra.mxu0 %v2880
    %2884 = vmatprep.subr.mxu0 0.0
    %2885 = vmatpush1.xpose.msra.mxu0 0.0
    %2886 = vmatprep.subr.mxu0 0.0
    %2887 = vmatpush1.xpose.msra.mxu0 0.0
    %2888 = vmatprep.subr.mxu0 0.0
    %2889 = vmatpush1.xpose.msra.mxu0 0.0
    %2890 = vmatprep.subr.mxu0 0.0
    %2891 = vmatpush1.xpose.msra.mxu0 0.0
    %2892 = vmatprep.subr.mxu0 0.0
    %2893 = vmatpush1.xpose.msra.mxu0 0.0
    %2894 = vmatprep.subr.mxu0 0.0
    %2895 = vmatpush1.xpose.msra.mxu0 0.0
    %2896 = vmatprep.subr.mxu0 0.0
    %2897 = vmatpush1.xpose.msra.mxu0 0.0
    %2898 = vmatprep.subr.mxu0 0.0
    %2899 = vmatpush1.xpose.msra.mxu0 0.0
    %2900 = vmatprep.subr.mxu0 0.0
    %2901 = vmatpush1.xpose.msra.mxu0 0.0
    %2902 = vmatprep.subr.mxu0 0.0
    %2903 = vmatpush1.xpose.msra.mxu0 0.0
    %2904 = vmatprep.subr.mxu0 0.0
    %2905 = vmatpush1.xpose.msra.mxu0 0.0
    %2906 = vmatprep.subr.mxu0 0.0
    %2907 = vmatpush1.xpose.msra.mxu0 0.0
    %2908 = vmatprep.subr.mxu0 0.0
    %2909 = vmatpush1.xpose.msra.mxu0 0.0
    %2910 = vmatprep.subr.mxu0 0.0
    %2911 = vmatpush1.xpose.msra.mxu0 0.0
    %2912 = vmatprep.subr.mxu0 0.0
    %2913 = vmatpush1.xpose.msra.mxu0 0.0
    %2914 = vmatprep.subr.mxu0 0.0
    %2915 = vmatpush1.xpose.msra.mxu0 0.0
    %2916 = vmatprep.subr.mxu0 0.0
    %2917 = vmatpush1.xpose.msra.mxu0 0.0
    %2918 = vmatprep.subr.mxu0 0.0
    %2919 = vmatpush1.xpose.msra.mxu0 0.0
    %2920 = vmatprep.subr.mxu0 0.0
    %2921 = vmatpush1.xpose.msra.mxu0 0.0
    %2922 = vmatprep.subr.mxu0 0.0
    %2923 = vmatpush1.xpose.msra.mxu0 0.0
    %2924 = vmatprep.subr.mxu0 0.0
    %2925 = vmatpush1.xpose.msra.mxu0 0.0
    %2926 = vmatprep.subr.mxu0 0.0
    %2927 = vmatpush1.xpose.msra.mxu0 0.0
    %2928 = vmatprep.subr.mxu0 0.0
    %2929 = vmatpush1.xpose.msra.mxu0 0.0
    %2930 = vmatprep.subr.mxu0 0.0
    %2931 = vmatpush1.xpose.msra.mxu0 0.0
    %2932 = vmatprep.subr.mxu0 0.0
    %2933 = vmatpush1.xpose.msra.mxu0 0.0
    %2934 = vmatprep.subr.mxu0 0.0
    %2935 = vmatpush1.xpose.msra.mxu0 0.0
    %2936 = vmatprep.subr.mxu0 0.0
    %2937 = vmatpush1.xpose.msra.mxu0 0.0
    %2938 = vmatprep.subr.mxu0 0.0
    %2939 = vmatpush1.xpose.msra.mxu0 0.0
    %2940 = vmatprep.subr.mxu0 0.0
    %2941 = vmatpush1.xpose.msra.mxu0 0.0
    %2942 = vmatprep.subr.mxu0 0.0
    %2943 = vmatpush1.xpose.msra.mxu0 0.0
    %2944 = vmatprep.subr.mxu0 0.0
    %2945 = vmatpush1.xpose.msra.mxu0 0.0
    %2946 = vmatprep.mubr.f32.mxu0 0.0
    %2947 = vmatmul.mubr.f32.gmra.mrb[0].mxu0 %v2878
    %v2948 = vpop.f32.mrb[0].mxu0
    %v2949 = vadd.f32 0.0, %v2948
    %v2950 = vpop.f32.mrb[0].mxu0
    %2951 = vdwg.mxu0
    %v2952 = vsel %vm182, %v2871, -inf
    %2953 = vmax.xlane.f32.xlu0 %v2952
    %v2954 = vpop.xlane.xlu0 %2953
    %v2955 = vsel %vm182, %v2949, -inf
    %2956 = vmax.xlane.f32.xlu0 %v2955
    %v2957 = vpop.xlane.xlu0 %2956
    %v2958 = vsub.f32 %v2871, %v2954
    %v2959 = vsub.f32 %v2949, %v2957
    %v2960 = vmul.f32 %v2958, 1.442695
    %v2961 = vpow.pop %v2960
    %v2962 = vmul.f32 %v2959, 1.442695
    %v2963 = vpow.pop %v2962
    %v2964 = vsel %vm182, %v2961, 0.0
    %2965 = vadd.xlane.f32.xlu0 %v2964
    %v2966 = vpop.xlane.xlu0 %2965
    %v2967 = vsel %vm182, %v2963, 0.0
    %2968 = vadd.xlane.f32.xlu0 %v2967
    %v2969 = vpop.xlane.xlu0 %2968
    %v2970 = vrcp.pop %v2966
    %v2971 = vrcp.pop %v2969
    %v2972 = vmul.f32 %v2961, %v2970
    %v2973 = vmul.f32 %v2963, %v2971
    %2974 = vrot.lane.b32.xlu0 %v2045, 80
    %v2975 = vpop.permute.xlu0 %2974
    %v2978 = vsel %vm182, %v2972, 0
    %2980 = vmatprep.subr.mxu0 0.0
    %2981 = vmatpush1.msra.mxu0 %v2975
    %2982 = vmatprep.subr.mxu0 0.0
    %2983 = vmatpush1.msra.mxu0 0.0
    %2984 = vmatprep.subr.mxu0 0.0
    %2985 = vmatpush1.msra.mxu0 0.0
    %2986 = vmatprep.subr.mxu0 0.0
    %2987 = vmatpush1.msra.mxu0 0.0
    %2988 = vmatprep.subr.mxu0 0.0
    %2989 = vmatpush1.msra.mxu0 0.0
    %2990 = vmatprep.subr.mxu0 0.0
    %2991 = vmatpush1.msra.mxu0 0.0
    %2992 = vmatprep.subr.mxu0 0.0
    %2993 = vmatpush1.msra.mxu0 0.0
    %2994 = vmatprep.subr.mxu0 0.0
    %2995 = vmatpush1.msra.mxu0 0.0
    %2996 = vmatprep.subr.mxu0 0.0
    %2997 = vmatpush1.msra.mxu0 0.0
    %2998 = vmatprep.subr.mxu0 0.0
    %2999 = vmatpush1.msra.mxu0 0.0
    %3000 = vmatprep.subr.mxu0 0.0
    %3001 = vmatpush1.msra.mxu0 0.0
    %3002 = vmatprep.subr.mxu0 0.0
    %3003 = vmatpush1.msra.mxu0 0.0
    %3004 = vmatprep.subr.mxu0 0.0
    %3005 = vmatpush1.msra.mxu0 0.0
    %3006 = vmatprep.subr.mxu0 0.0
    %3007 = vmatpush1.msra.mxu0 0.0
    %3008 = vmatprep.subr.mxu0 0.0
    %3009 = vmatpush1.msra.mxu0 0.0
    %3010 = vmatprep.subr.mxu0 0.0
    %3011 = vmatpush1.msra.mxu0 0.0
    %3012 = vmatprep.subr.mxu0 0.0
    %3013 = vmatpush1.msra.mxu0 0.0
    %3014 = vmatprep.subr.mxu0 0.0
    %3015 = vmatpush1.msra.mxu0 0.0
    %3016 = vmatprep.subr.mxu0 0.0
    %3017 = vmatpush1.msra.mxu0 0.0
    %3018 = vmatprep.subr.mxu0 0.0
    %3019 = vmatpush1.msra.mxu0 0.0
    %3020 = vmatprep.subr.mxu0 0.0
    %3021 = vmatpush1.msra.mxu0 0.0
    %3022 = vmatprep.subr.mxu0 0.0
    %3023 = vmatpush1.msra.mxu0 0.0
    %3024 = vmatprep.subr.mxu0 0.0
    %3025 = vmatpush1.msra.mxu0 0.0
    %3026 = vmatprep.subr.mxu0 0.0
    %3027 = vmatpush1.msra.mxu0 0.0
    %3028 = vmatprep.subr.mxu0 0.0
    %3029 = vmatpush1.msra.mxu0 0.0
    %3030 = vmatprep.subr.mxu0 0.0
    %3031 = vmatpush1.msra.mxu0 0.0
    %3032 = vmatprep.subr.mxu0 0.0
    %3033 = vmatpush1.msra.mxu0 0.0
    %3034 = vmatprep.subr.mxu0 0.0
    %3035 = vmatpush1.msra.mxu0 0.0
    %3036 = vmatprep.subr.mxu0 0.0
    %3037 = vmatpush1.msra.mxu0 0.0
    %3038 = vmatprep.subr.mxu0 0.0
    %3039 = vmatpush1.msra.mxu0 0.0
    %3040 = vmatprep.subr.mxu0 0.0
    %3041 = vmatpush1.msra.mxu0 0.0
    %3042 = vmatprep.subr.mxu0 0.0
    %3043 = vmatpush1.msra.mxu0 0.0
    %3044 = vmatprep.mubr.f32.mxu0 0.0
    %3045 = vmatmul.mubr.f32.gmra.mrb[0].mxu0 %v2978
    %v3046 = vpop.f32.mrb[0].mxu0
    %v3047 = vadd.f32 0.0, %v3046
    %v3048 = vpop.f32.mrb[0].mxu0
    %3049 = vdwg.mxu0
    %3050 = vrot.lane.b32.xlu0 %v2050, 80
    %v3051 = vpop.permute.xlu0 %3050
    %v3054 = vsel %vm182, %v2973, 0
    %3056 = vmatprep.subr.mxu0 0.0
    %3057 = vmatpush1.msra.mxu0 %v3051
    %3058 = vmatprep.subr.mxu0 0.0
    %3059 = vmatpush1.msra.mxu0 0.0
    %3060 = vmatprep.subr.mxu0 0.0
    %3061 = vmatpush1.msra.mxu0 0.0
    %3062 = vmatprep.subr.mxu0 0.0
    %3063 = vmatpush1.msra.mxu0 0.0
    %3064 = vmatprep.subr.mxu0 0.0
    %3065 = vmatpush1.msra.mxu0 0.0
    %3066 = vmatprep.subr.mxu0 0.0
    %3067 = vmatpush1.msra.mxu0 0.0
    %3068 = vmatprep.subr.mxu0 0.0
    %3069 = vmatpush1.msra.mxu0 0.0
    %3070 = vmatprep.subr.mxu0 0.0
    %3071 = vmatpush1.msra.mxu0 0.0
    %3072 = vmatprep.subr.mxu0 0.0
    %3073 = vmatpush1.msra.mxu0 0.0
    %3074 = vmatprep.subr.mxu0 0.0
    %3075 = vmatpush1.msra.mxu0 0.0
    %3076 = vmatprep.subr.mxu0 0.0
    %3077 = vmatpush1.msra.mxu0 0.0
    %3078 = vmatprep.subr.mxu0 0.0
    %3079 = vmatpush1.msra.mxu0 0.0
    %3080 = vmatprep.subr.mxu0 0.0
    %3081 = vmatpush1.msra.mxu0 0.0
    %3082 = vmatprep.subr.mxu0 0.0
    %3083 = vmatpush1.msra.mxu0 0.0
    %3084 = vmatprep.subr.mxu0 0.0
    %3085 = vmatpush1.msra.mxu0 0.0
    %3086 = vmatprep.subr.mxu0 0.0
    %3087 = vmatpush1.msra.mxu0 0.0
    %3088 = vmatprep.subr.mxu0 0.0
    %3089 = vmatpush1.msra.mxu0 0.0
    %3090 = vmatprep.subr.mxu0 0.0
    %3091 = vmatpush1.msra.mxu0 0.0
    %3092 = vmatprep.subr.mxu0 0.0
    %3093 = vmatpush1.msra.mxu0 0.0
    %3094 = vmatprep.subr.mxu0 0.0
    %3095 = vmatpush1.msra.mxu0 0.0
    %3096 = vmatprep.subr.mxu0 0.0
    %3097 = vmatpush1.msra.mxu0 0.0
    %3098 = vmatprep.subr.mxu0 0.0
    %3099 = vmatpush1.msra.mxu0 0.0
    %3100 = vmatprep.subr.mxu0 0.0
    %3101 = vmatpush1.msra.mxu0 0.0
    %3102 = vmatprep.subr.mxu0 0.0
    %3103 = vmatpush1.msra.mxu0 0.0
    %3104 = vmatprep.subr.mxu0 0.0
    %3105 = vmatpush1.msra.mxu0 0.0
    %3106 = vmatprep.subr.mxu0 0.0
    %3107 = vmatpush1.msra.mxu0 0.0
    %3108 = vmatprep.subr.mxu0 0.0
    %3109 = vmatpush1.msra.mxu0 0.0
    %3110 = vmatprep.subr.mxu0 0.0
    %3111 = vmatpush1.msra.mxu0 0.0
    %3112 = vmatprep.subr.mxu0 0.0
    %3113 = vmatpush1.msra.mxu0 0.0
    %3114 = vmatprep.subr.mxu0 0.0
    %3115 = vmatpush1.msra.mxu0 0.0
    %3116 = vmatprep.subr.mxu0 0.0
    %3117 = vmatpush1.msra.mxu0 0.0
    %3118 = vmatprep.subr.mxu0 0.0
    %3119 = vmatpush1.msra.mxu0 0.0
    %3120 = vmatprep.mubr.f32.mxu0 0.0
    %3121 = vmatmul.mubr.f32.gmra.mrb[0].mxu0 %v3054
    %v3122 = vpop.f32.mrb[0].mxu0
    %v3123 = vadd.f32 0.0, %v3122
    %v3124 = vpop.f32.mrb[0].mxu0
    %3125 = vdwg.mxu0
    %v3127 = vsel %vm182, %v3047, 0
    %v3130 = vsel %vm182, %v3123, 0
    %3132 = vmatprep.subr.mxu0 0.0
    %3133 = vmatpush1.msra.mxu0 %v2055
    %3134 = vmatprep.subr.mxu0 0.0
    %3135 = vmatpush1.msra.mxu0 0.0
    %3136 = vmatprep.subr.mxu0 0.0
    %3137 = vmatpush1.msra.mxu0 0.0
    %3138 = vmatprep.subr.mxu0 0.0
    %3139 = vmatpush1.msra.mxu0 0.0
    %3140 = vmatprep.subr.mxu0 0.0
    %3141 = vmatpush1.msra.mxu0 0.0
    %3142 = vmatprep.subr.mxu0 0.0
    %3143 = vmatpush1.msra.mxu0 0.0
    %3144 = vmatprep.subr.mxu0 0.0
    %3145 = vmatpush1.msra.mxu0 0.0
    %3146 = vmatprep.subr.mxu0 0.0
    %3147 = vmatpush1.msra.mxu0 0.0
    %3148 = vmatprep.subr.mxu0 0.0
    %3149 = vmatpush1.msra.mxu0 0.0
    %3150 = vmatprep.subr.mxu0 0.0
    %3151 = vmatpush1.msra.mxu0 0.0
    %3152 = vmatprep.subr.mxu0 0.0
    %3153 = vmatpush1.msra.mxu0 0.0
    %3154 = vmatprep.subr.mxu0 0.0
    %3155 = vmatpush1.msra.mxu0 0.0
    %3156 = vmatprep.subr.mxu0 0.0
    %3157 = vmatpush1.msra.mxu0 0.0
    %3158 = vmatprep.subr.mxu0 0.0
    %3159 = vmatpush1.msra.mxu0 0.0
    %3160 = vmatprep.subr.mxu0 0.0
    %3161 = vmatpush1.msra.mxu0 0.0
    %3162 = vmatprep.subr.mxu0 0.0
    %3163 = vmatpush1.msra.mxu0 0.0
    %3164 = vmatprep.subr.mxu0 0.0
    %3165 = vmatpush1.msra.mxu0 0.0
    %3166 = vmatprep.subr.mxu0 0.0
    %3167 = vmatpush1.msra.mxu0 0.0
    %3168 = vmatprep.subr.mxu0 0.0
    %3169 = vmatpush1.msra.mxu0 0.0
    %3170 = vmatprep.subr.mxu0 0.0
    %3171 = vmatpush1.msra.mxu0 0.0
    %3172 = vmatprep.subr.mxu0 0.0
    %3173 = vmatpush1.msra.mxu0 0.0
    %3174 = vmatprep.subr.mxu0 0.0
    %3175 = vmatpush1.msra.mxu0 0.0
    %3176 = vmatprep.subr.mxu0 0.0
    %3177 = vmatpush1.msra.mxu0 0.0
    %3178 = vmatprep.subr.mxu0 0.0
    %3179 = vmatpush1.msra.mxu0 0.0
    %3180 = vmatprep.subr.mxu0 0.0
    %3181 = vmatpush1.msra.mxu0 0.0
    %3182 = vmatprep.subr.mxu0 0.0
    %3183 = vmatpush1.msra.mxu0 0.0
    %3184 = vmatprep.subr.mxu0 0.0
    %3185 = vmatpush1.msra.mxu0 0.0
    %3186 = vmatprep.subr.mxu0 0.0
    %3187 = vmatpush1.msra.mxu0 0.0
    %3188 = vmatprep.subr.mxu0 0.0
    %3189 = vmatpush1.msra.mxu0 0.0
    %3190 = vmatprep.subr.mxu0 0.0
    %3191 = vmatpush1.msra.mxu0 0.0
    %3192 = vmatprep.subr.mxu0 0.0
    %3193 = vmatpush1.msra.mxu0 0.0
    %3194 = vmatprep.subr.mxu0 0.0
    %3195 = vmatpush1.msra.mxu0 0.0
    %3196 = vmatprep.mubr.f32.mxu0 0.0
    %3197 = vmatmul.mubr.f32.gmra.mrb[0].mxu0 %v3127
    %v3198 = vpop.f32.mrb[0].mxu0
    %v3199 = vadd.f32 0.0, %v3198
    %v3200 = vpop.f32.mrb[0].mxu0
    %3201 = vmatprep.mubr.f32.mxu0 0.0
    %3202 = vmatmul.mubr.f32.gmra.mrb[0].mxu0 %v3130
    %v3203 = vpop.f32.mrb[0].mxu0
    %v3204 = vadd.f32 0.0, %v3203
    %v3205 = vpop.f32.mrb[0].mxu0
    %3206 = vdwg.mxu0
    %3207 = vrot.lane.b32.xlu0 %v2057, 104
    %v3208 = vpop.permute.xlu0 %3207
    %3209 = vrot.lane.b32.xlu0 %v2045, 104
    %v3210 = vpop.permute.xlu0 %3209
    %v3211 = vsel %vm182, %v3208, 0
    %v3213 = vsel %vm182, %v3210, 0
    %3215 = vmatprep.subr.mxu0 0.0
    %3216 = vmatpush1.xpose.msra.mxu0 %v3213
    %3217 = vmatprep.subr.mxu0 0.0
    %3218 = vmatpush1.xpose.msra.mxu0 0.0
    %3219 = vmatprep.subr.mxu0 0.0
    %3220 = vmatpush1.xpose.msra.mxu0 0.0
    %3221 = vmatprep.subr.mxu0 0.0
    %3222 = vmatpush1.xpose.msra.mxu0 0.0
    %3223 = vmatprep.subr.mxu0 0.0
    %3224 = vmatpush1.xpose.msra.mxu0 0.0
    %3225 = vmatprep.subr.mxu0 0.0
    %3226 = vmatpush1.xpose.msra.mxu0 0.0
    %3227 = vmatprep.subr.mxu0 0.0
    %3228 = vmatpush1.xpose.msra.mxu0 0.0
    %3229 = vmatprep.subr.mxu0 0.0
    %3230 = vmatpush1.xpose.msra.mxu0 0.0
    %3231 = vmatprep.subr.mxu0 0.0
    %3232 = vmatpush1.xpose.msra.mxu0 0.0
    %3233 = vmatprep.subr.mxu0 0.0
    %3234 = vmatpush1.xpose.msra.mxu0 0.0
    %3235 = vmatprep.subr.mxu0 0.0
    %3236 = vmatpush1.xpose.msra.mxu0 0.0
    %3237 = vmatprep.subr.mxu0 0.0
    %3238 = vmatpush1.xpose.msra.mxu0 0.0
    %3239 = vmatprep.subr.mxu0 0.0
    %3240 = vmatpush1.xpose.msra.mxu0 0.0
    %3241 = vmatprep.subr.mxu0 0.0
    %3242 = vmatpush1.xpose.msra.mxu0 0.0
    %3243 = vmatprep.subr.mxu0 0.0
    %3244 = vmatpush1.xpose.msra.mxu0 0.0
    %3245 = vmatprep.subr.mxu0 0.0
    %3246 = vmatpush1.xpose.msra.mxu0 0.0
    %3247 = vmatprep.subr.mxu0 0.0
    %3248 = vmatpush1.xpose.msra.mxu0 0.0
    %3249 = vmatprep.subr.mxu0 0.0
    %3250 = vmatpush1.xpose.msra.mxu0 0.0
    %3251 = vmatprep.subr.mxu0 0.0
    %3252 = vmatpush1.xpose.msra.mxu0 0.0
    %3253 = vmatprep.subr.mxu0 0.0
    %3254 = vmatpush1.xpose.msra.mxu0 0.0
    %3255 = vmatprep.subr.mxu0 0.0
    %3256 = vmatpush1.xpose.msra.mxu0 0.0
    %3257 = vmatprep.subr.mxu0 0.0
    %3258 = vmatpush1.xpose.msra.mxu0 0.0
    %3259 = vmatprep.subr.mxu0 0.0
    %3260 = vmatpush1.xpose.msra.mxu0 0.0
    %3261 = vmatprep.subr.mxu0 0.0
    %3262 = vmatpush1.xpose.msra.mxu0 0.0
    %3263 = vmatprep.subr.mxu0 0.0
    %3264 = vmatpush1.xpose.msra.mxu0 0.0
    %3265 = vmatprep.subr.mxu0 0.0
    %3266 = vmatpush1.xpose.msra.mxu0 0.0
    %3267 = vmatprep.subr.mxu0 0.0
    %3268 = vmatpush1.xpose.msra.mxu0 0.0
    %3269 = vmatprep.subr.mxu0 0.0
    %3270 = vmatpush1.xpose.msra.mxu0 0.0
    %3271 = vmatprep.subr.mxu0 0.0
    %3272 = vmatpush1.xpose.msra.mxu0 0.0
    %3273 = vmatprep.subr.mxu0 0.0
    %3274 = vmatpush1.xpose.msra.mxu0 0.0
    %3275 = vmatprep.subr.mxu0 0.0
    %3276 = vmatpush1.xpose.msra.mxu0 0.0
    %3277 = vmatprep.subr.mxu0 0.0
    %3278 = vmatpush1.xpose.msra.mxu0 0.0
    %3279 = vmatprep.mubr.f32.mxu0 0.0
    %3280 = vmatmul.mubr.f32.gmra.mrb[0].mxu0 %v3211
    %v3281 = vpop.f32.mrb[0].mxu0
    %v3282 = vadd.f32 0.0, %v3281
    %v3283 = vpop.f32.mrb[0].mxu0
    %3284 = vdwg.mxu0
    %3285 = vrot.lane.b32.xlu0 %v2058, 104
    %v3286 = vpop.permute.xlu0 %3285
    %3287 = vrot.lane.b32.xlu0 %v2050, 104
    %v3288 = vpop.permute.xlu0 %3287
    %v3289 = vsel %vm182, %v3286, 0
    %v3291 = vsel %vm182, %v3288, 0
    %3293 = vmatprep.subr.mxu0 0.0
    %3294 = vmatpush1.xpose.msra.mxu0 %v3291
    %3295 = vmatprep.subr.mxu0 0.0
    %3296 = vmatpush1.xpose.msra.mxu0 0.0
    %3297 = vmatprep.subr.mxu0 0.0
    %3298 = vmatpush1.xpose.msra.mxu0 0.0
    %3299 = vmatprep.subr.mxu0 0.0
    %3300 = vmatpush1.xpose.msra.mxu0 0.0
    %3301 = vmatprep.subr.mxu0 0.0
    %3302 = vmatpush1.xpose.msra.mxu0 0.0
    %3303 = vmatprep.subr.mxu0 0.0
    %3304 = vmatpush1.xpose.msra.mxu0 0.0
    %3305 = vmatprep.subr.mxu0 0.0
    %3306 = vmatpush1.xpose.msra.mxu0 0.0
    %3307 = vmatprep.subr.mxu0 0.0
    %3308 = vmatpush1.xpose.msra.mxu0 0.0
    %3309 = vmatprep.subr.mxu0 0.0
    %3310 = vmatpush1.xpose.msra.mxu0 0.0
    %3311 = vmatprep.subr.mxu0 0.0
    %3312 = vmatpush1.xpose.msra.mxu0 0.0
    %3313 = vmatprep.subr.mxu0 0.0
    %3314 = vmatpush1.xpose.msra.mxu0 0.0
    %3315 = vmatprep.subr.mxu0 0.0
    %3316 = vmatpush1.xpose.msra.mxu0 0.0
    %3317 = vmatprep.subr.mxu0 0.0
    %3318 = vmatpush1.xpose.msra.mxu0 0.0
    %3319 = vmatprep.subr.mxu0 0.0
    %3320 = vmatpush1.xpose.msra.mxu0 0.0
    %3321 = vmatprep.subr.mxu0 0.0
    %3322 = vmatpush1.xpose.msra.mxu0 0.0
    %3323 = vmatprep.subr.mxu0 0.0
    %3324 = vmatpush1.xpose.msra.mxu0 0.0
    %3325 = vmatprep.subr.mxu0 0.0
    %3326 = vmatpush1.xpose.msra.mxu0 0.0
    %3327 = vmatprep.subr.mxu0 0.0
    %3328 = vmatpush1.xpose.msra.mxu0 0.0
    %3329 = vmatprep.subr.mxu0 0.0
    %3330 = vmatpush1.xpose.msra.mxu0 0.0
    %3331 = vmatprep.subr.mxu0 0.0
    %3332 = vmatpush1.xpose.msra.mxu0 0.0
    %3333 = vmatprep.subr.mxu0 0.0
    %3334 = vmatpush1.xpose.msra.mxu0 0.0
    %3335 = vmatprep.subr.mxu0 0.0
    %3336 = vmatpush1.xpose.msra.mxu0 0.0
    %3337 = vmatprep.subr.mxu0 0.0
    %3338 = vmatpush1.xpose.msra.mxu0 0.0
    %3339 = vmatprep.subr.mxu0 0.0
    %3340 = vmatpush1.xpose.msra.mxu0 0.0
    %3341 = vmatprep.subr.mxu0 0.0
    %3342 = vmatpush1.xpose.msra.mxu0 0.0
    %3343 = vmatprep.subr.mxu0 0.0
    %3344 = vmatpush1.xpose.msra.mxu0 0.0
    %3345 = vmatprep.subr.mxu0 0.0
    %3346 = vmatpush1.xpose.msra.mxu0 0.0
    %3347 = vmatprep.subr.mxu0 0.0
    %3348 = vmatpush1.xpose.msra.mxu0 0.0
    %3349 = vmatprep.subr.mxu0 0.0
    %3350 = vmatpush1.xpose.msra.mxu0 0.0
    %3351 = vmatprep.subr.mxu0 0.0
    %3352 = vmatpush1.xpose.msra.mxu0 0.0
    %3353 = vmatprep.subr.mxu0 0.0
    %3354 = vmatpush1.xpose.msra.mxu0 0.0
    %3355 = vmatprep.subr.mxu0 0.0
    %3356 = vmatpush1.xpose.msra.mxu0 0.0
    %3357 = vmatprep.mubr.f32.mxu0 0.0
    %3358 = vmatmul.mubr.f32.gmra.mrb[0].mxu0 %v3289
    %v3359 = vpop.f32.mrb[0].mxu0
    %v3360 = vadd.f32 0.0, %v3359
    %v3361 = vpop.f32.mrb[0].mxu0
    %3362 = vdwg.mxu0
    %v3363 = vsel %vm182, %v3282, -inf
    %3364 = vmax.xlane.f32.xlu0 %v3363
    %v3365 = vpop.xlane.xlu0 %3364
    %v3366 = vsel %vm182, %v3360, -inf
    %3367 = vmax.xlane.f32.xlu0 %v3366
    %v3368 = vpop.xlane.xlu0 %3367
    %v3369 = vsub.f32 %v3282, %v3365
    %v3370 = vsub.f32 %v3360, %v3368
    %v3371 = vmul.f32 %v3369, 1.442695
    %v3372 = vpow.pop %v3371
    %v3373 = vmul.f32 %v3370, 1.442695
    %v3374 = vpow.pop %v3373
    %v3375 = vsel %vm182, %v3372, 0.0
    %3376 = vadd.xlane.f32.xlu0 %v3375
    %v3377 = vpop.xlane.xlu0 %3376
    %v3378 = vsel %vm182, %v3374, 0.0
    %3379 = vadd.xlane.f32.xlu0 %v3378
    %v3380 = vpop.xlane.xlu0 %3379
    %v3381 = vrcp.pop %v3377
    %v3382 = vrcp.pop %v3380
    %v3383 = vmul.f32 %v3372, %v3381
    %v3384 = vmul.f32 %v3374, %v3382
    %3385 = vrot.lane.b32.xlu0 %v2045, 72
    %v3386 = vpop.permute.xlu0 %3385
    %v3389 = vsel %vm182, %v3383, 0
    %3391 = vmatprep.subr.mxu0 0.0
    %3392 = vmatpush1.msra.mxu0 %v3386
    %3393 = vmatprep.subr.mxu0 0.0
    %3394 = vmatpush1.msra.mxu0 0.0
    %3395 = vmatprep.subr.mxu0 0.0
    %3396 = vmatpush1.msra.mxu0 0.0
    %3397 = vmatprep.subr.mxu0 0.0
    %3398 = vmatpush1.msra.mxu0 0.0
    %3399 = vmatprep.subr.mxu0 0.0
    %3400 = vmatpush1.msra.mxu0 0.0
    %3401 = vmatprep.subr.mxu0 0.0
    %3402 = vmatpush1.msra.mxu0 0.0
    %3403 = vmatprep.subr.mxu0 0.0
    %3404 = vmatpush1.msra.mxu0 0.0
    %3405 = vmatprep.subr.mxu0 0.0
    %3406 = vmatpush1.msra.mxu0 0.0
    %3407 = vmatprep.subr.mxu0 0.0
    %3408 = vmatpush1.msra.mxu0 0.0
    %3409 = vmatprep.subr.mxu0 0.0
    %3410 = vmatpush1.msra.mxu0 0.0
    %3411 = vmatprep.subr.mxu0 0.0
    %3412 = vmatpush1.msra.mxu0 0.0
    %3413 = vmatprep.subr.mxu0 0.0
    %3414 = vmatpush1.msra.mxu0 0.0
    %3415 = vmatprep.subr.mxu0 0.0
    %3416 = vmatpush1.msra.mxu0 0.0
    %3417 = vmatprep.subr.mxu0 0.0
    %3418 = vmatpush1.msra.mxu0 0.0
    %3419 = vmatprep.subr.mxu0 0.0
    %3420 = vmatpush1.msra.mxu0 0.0
    %3421 = vmatprep.subr.mxu0 0.0
    %3422 = vmatpush1.msra.mxu0 0.0
    %3423 = vmatprep.subr.mxu0 0.0
    %3424 = vmatpush1.msra.mxu0 0.0
    %3425 = vmatprep.subr.mxu0 0.0
    %3426 = vmatpush1.msra.mxu0 0.0
    %3427 = vmatprep.subr.mxu0 0.0
    %3428 = vmatpush1.msra.mxu0 0.0
    %3429 = vmatprep.subr.mxu0 0.0
    %3430 = vmatpush1.msra.mxu0 0.0
    %3431 = vmatprep.subr.mxu0 0.0
    %3432 = vmatpush1.msra.mxu0 0.0
    %3433 = vmatprep.subr.mxu0 0.0
    %3434 = vmatpush1.msra.mxu0 0.0
    %3435 = vmatprep.subr.mxu0 0.0
    %3436 = vmatpush1.msra.mxu0 0.0
    %3437 = vmatprep.subr.mxu0 0.0
    %3438 = vmatpush1.msra.mxu0 0.0
    %3439 = vmatprep.subr.mxu0 0.0
    %3440 = vmatpush1.msra.mxu0 0.0
    %3441 = vmatprep.subr.mxu0 0.0
    %3442 = vmatpush1.msra.mxu0 0.0
    %3443 = vmatprep.subr.mxu0 0.0
    %3444 = vmatpush1.msra.mxu0 0.0
    %3445 = vmatprep.subr.mxu0 0.0
    %3446 = vmatpush1.msra.mxu0 0.0
    %3447 = vmatprep.subr.mxu0 0.0
    %3448 = vmatpush1.msra.mxu0 0.0
    %3449 = vmatprep.subr.mxu0 0.0
    %3450 = vmatpush1.msra.mxu0 0.0
    %3451 = vmatprep.subr.mxu0 0.0
    %3452 = vmatpush1.msra.mxu0 0.0
    %3453 = vmatprep.subr.mxu0 0.0
    %3454 = vmatpush1.msra.mxu0 0.0
    %3455 = vmatprep.mubr.f32.mxu0 0.0
    %3456 = vmatmul.mubr.f32.gmra.mrb[0].mxu0 %v3389
    %v3457 = vpop.f32.mrb[0].mxu0
    %v3458 = vadd.f32 0.0, %v3457
    %v3459 = vpop.f32.mrb[0].mxu0
    %3460 = vdwg.mxu0
    %3461 = vrot.lane.b32.xlu0 %v2050, 72
    %v3462 = vpop.permute.xlu0 %3461
    %v3465 = vsel %vm182, %v3384, 0
    %3467 = vmatprep.subr.mxu0 0.0
    %3468 = vmatpush1.msra.mxu0 %v3462
    %3469 = vmatprep.subr.mxu0 0.0
    %3470 = vmatpush1.msra.mxu0 0.0
    %3471 = vmatprep.subr.mxu0 0.0
    %3472 = vmatpush1.msra.mxu0 0.0
    %3473 = vmatprep.subr.mxu0 0.0
    %3474 = vmatpush1.msra.mxu0 0.0
    %3475 = vmatprep.subr.mxu0 0.0
    %3476 = vmatpush1.msra.mxu0 0.0
    %3477 = vmatprep.subr.mxu0 0.0
    %3478 = vmatpush1.msra.mxu0 0.0
    %3479 = vmatprep.subr.mxu0 0.0
    %3480 = vmatpush1.msra.mxu0 0.0
    %3481 = vmatprep.subr.mxu0 0.0
    %3482 = vmatpush1.msra.mxu0 0.0
    %3483 = vmatprep.subr.mxu0 0.0
    %3484 = vmatpush1.msra.mxu0 0.0
    %3485 = vmatprep.subr.mxu0 0.0
    %3486 = vmatpush1.msra.mxu0 0.0
    %3487 = vmatprep.subr.mxu0 0.0
    %3488 = vmatpush1.msra.mxu0 0.0
    %3489 = vmatprep.subr.mxu0 0.0
    %3490 = vmatpush1.msra.mxu0 0.0
    %3491 = vmatprep.subr.mxu0 0.0
    %3492 = vmatpush1.msra.mxu0 0.0
    %3493 = vmatprep.subr.mxu0 0.0
    %3494 = vmatpush1.msra.mxu0 0.0
    %3495 = vmatprep.subr.mxu0 0.0
    %3496 = vmatpush1.msra.mxu0 0.0
    %3497 = vmatprep.subr.mxu0 0.0
    %3498 = vmatpush1.msra.mxu0 0.0
    %3499 = vmatprep.subr.mxu0 0.0
    %3500 = vmatpush1.msra.mxu0 0.0
    %3501 = vmatprep.subr.mxu0 0.0
    %3502 = vmatpush1.msra.mxu0 0.0
    %3503 = vmatprep.subr.mxu0 0.0
    %3504 = vmatpush1.msra.mxu0 0.0
    %3505 = vmatprep.subr.mxu0 0.0
    %3506 = vmatpush1.msra.mxu0 0.0
    %3507 = vmatprep.subr.mxu0 0.0
    %3508 = vmatpush1.msra.mxu0 0.0
    %3509 = vmatprep.subr.mxu0 0.0
    %3510 = vmatpush1.msra.mxu0 0.0
    %3511 = vmatprep.subr.mxu0 0.0
    %3512 = vmatpush1.msra.mxu0 0.0
    %3513 = vmatprep.subr.mxu0 0.0
    %3514 = vmatpush1.msra.mxu0 0.0
    %3515 = vmatprep.subr.mxu0 0.0
    %3516 = vmatpush1.msra.mxu0 0.0
    %3517 = vmatprep.subr.mxu0 0.0
    %3518 = vmatpush1.msra.mxu0 0.0
    %3519 = vmatprep.subr.mxu0 0.0
    %3520 = vmatpush1.msra.mxu0 0.0
    %3521 = vmatprep.subr.mxu0 0.0
    %3522 = vmatpush1.msra.mxu0 0.0
    %3523 = vmatprep.subr.mxu0 0.0
    %3524 = vmatpush1.msra.mxu0 0.0
    %3525 = vmatprep.subr.mxu0 0.0
    %3526 = vmatpush1.msra.mxu0 0.0
    %3527 = vmatprep.subr.mxu0 0.0
    %3528 = vmatpush1.msra.mxu0 0.0
    %3529 = vmatprep.subr.mxu0 0.0
    %3530 = vmatpush1.msra.mxu0 0.0
    %3531 = vmatprep.mubr.f32.mxu0 0.0
    %3532 = vmatmul.mubr.f32.gmra.mrb[0].mxu0 %v3465
    %v3533 = vpop.f32.mrb[0].mxu0
    %v3534 = vadd.f32 0.0, %v3533
    %v3535 = vpop.f32.mrb[0].mxu0
    %3536 = vdwg.mxu0
    %v3538 = vsel %vm182, %v3458, 0
    %v3541 = vsel %vm182, %v3534, 0
    %3543 = vmatprep.subr.mxu0 0.0
    %3544 = vmatpush1.msra.mxu0 %v2056
    %3545 = vmatprep.subr.mxu0 0.0
    %3546 = vmatpush1.msra.mxu0 0.0
    %3547 = vmatprep.subr.mxu0 0.0
    %3548 = vmatpush1.msra.mxu0 0.0
    %3549 = vmatprep.subr.mxu0 0.0
    %3550 = vmatpush1.msra.mxu0 0.0
    %3551 = vmatprep.subr.mxu0 0.0
    %3552 = vmatpush1.msra.mxu0 0.0
    %3553 = vmatprep.subr.mxu0 0.0
    %3554 = vmatpush1.msra.mxu0 0.0
    %3555 = vmatprep.subr.mxu0 0.0
    %3556 = vmatpush1.msra.mxu0 0.0
    %3557 = vmatprep.subr.mxu0 0.0
    %3558 = vmatpush1.msra.mxu0 0.0
    %3559 = vmatprep.subr.mxu0 0.0
    %3560 = vmatpush1.msra.mxu0 0.0
    %3561 = vmatprep.subr.mxu0 0.0
    %3562 = vmatpush1.msra.mxu0 0.0
    %3563 = vmatprep.subr.mxu0 0.0
    %3564 = vmatpush1.msra.mxu0 0.0
    %3565 = vmatprep.subr.mxu0 0.0
    %3566 = vmatpush1.msra.mxu0 0.0
    %3567 = vmatprep.subr.mxu0 0.0
    %3568 = vmatpush1.msra.mxu0 0.0
    %3569 = vmatprep.subr.mxu0 0.0
    %3570 = vmatpush1.msra.mxu0 0.0
    %3571 = vmatprep.subr.mxu0 0.0
    %3572 = vmatpush1.msra.mxu0 0.0
    %3573 = vmatprep.subr.mxu0 0.0
    %3574 = vmatpush1.msra.mxu0 0.0
    %3575 = vmatprep.subr.mxu0 0.0
    %3576 = vmatpush1.msra.mxu0 0.0
    %3577 = vmatprep.subr.mxu0 0.0
    %3578 = vmatpush1.msra.mxu0 0.0
    %3579 = vmatprep.subr.mxu0 0.0
    %3580 = vmatpush1.msra.mxu0 0.0
    %3581 = vmatprep.subr.mxu0 0.0
    %3582 = vmatpush1.msra.mxu0 0.0
    %3583 = vmatprep.subr.mxu0 0.0
    %3584 = vmatpush1.msra.mxu0 0.0
    %3585 = vmatprep.subr.mxu0 0.0
    %3586 = vmatpush1.msra.mxu0 0.0
    %3587 = vmatprep.subr.mxu0 0.0
    %3588 = vmatpush1.msra.mxu0 0.0
    %3589 = vmatprep.subr.mxu0 0.0
    %3590 = vmatpush1.msra.mxu0 0.0
    %3591 = vmatprep.subr.mxu0 0.0
    %3592 = vmatpush1.msra.mxu0 0.0
    %3593 = vmatprep.subr.mxu0 0.0
    %3594 = vmatpush1.msra.mxu0 0.0
    %3595 = vmatprep.subr.mxu0 0.0
    %3596 = vmatpush1.msra.mxu0 0.0
    %3597 = vmatprep.subr.mxu0 0.0
    %3598 = vmatpush1.msra.mxu0 0.0
    %3599 = vmatprep.subr.mxu0 0.0
    %3600 = vmatpush1.msra.mxu0 0.0
    %3601 = vmatprep.subr.mxu0 0.0
    %3602 = vmatpush1.msra.mxu0 0.0
    %3603 = vmatprep.subr.mxu0 0.0
    %3604 = vmatpush1.msra.mxu0 0.0
    %3605 = vmatprep.subr.mxu0 0.0
    %3606 = vmatpush1.msra.mxu0 0.0
    %3607 = vmatprep.mubr.f32.mxu0 0.0
    %3608 = vmatmul.mubr.f32.gmra.mrb[0].mxu0 %v3538
    %v3609 = vpop.f32.mrb[0].mxu0
    %v3610 = vadd.f32 0.0, %v3609
    %v3611 = vpop.f32.mrb[0].mxu0
    %3612 = vmatprep.mubr.f32.mxu0 0.0
    %3613 = vmatmul.mubr.f32.gmra.mrb[0].mxu0 %v3541
    %v3614 = vpop.f32.mrb[0].mxu0
    %v3615 = vadd.f32 0.0, %v3614
    %v3616 = vpop.f32.mrb[0].mxu0
    %3617 = vdwg.mxu0
    %v3619 = vsel %vm182, %v2306, 0
    %v3622 = vsel %vm182, %v2382, 0
    %3624 = vmatprep.subr.mxu0 0.0
    %3625 = vmatpush1.msra.mxu0 %v2053
    %3626 = vmatprep.subr.mxu0 0.0
    %3627 = vmatpush1.msra.mxu0 0.0
    %3628 = vmatprep.subr.mxu0 0.0
    %3629 = vmatpush1.msra.mxu0 0.0
    %3630 = vmatprep.subr.mxu0 0.0
    %3631 = vmatpush1.msra.mxu0 0.0
    %3632 = vmatprep.subr.mxu0 0.0
    %3633 = vmatpush1.msra.mxu0 0.0
    %3634 = vmatprep.subr.mxu0 0.0
    %3635 = vmatpush1.msra.mxu0 0.0
    %3636 = vmatprep.subr.mxu0 0.0
    %3637 = vmatpush1.msra.mxu0 0.0
    %3638 = vmatprep.subr.mxu0 0.0
    %3639 = vmatpush1.msra.mxu0 0.0
    %3640 = vmatprep.subr.mxu0 0.0
    %3641 = vmatpush1.msra.mxu0 0.0
    %3642 = vmatprep.subr.mxu0 0.0
    %3643 = vmatpush1.msra.mxu0 0.0
    %3644 = vmatprep.subr.mxu0 0.0
    %3645 = vmatpush1.msra.mxu0 0.0
    %3646 = vmatprep.subr.mxu0 0.0
    %3647 = vmatpush1.msra.mxu0 0.0
    %3648 = vmatprep.subr.mxu0 0.0
    %3649 = vmatpush1.msra.mxu0 0.0
    %3650 = vmatprep.subr.mxu0 0.0
    %3651 = vmatpush1.msra.mxu0 0.0
    %3652 = vmatprep.subr.mxu0 0.0
    %3653 = vmatpush1.msra.mxu0 0.0
    %3654 = vmatprep.subr.mxu0 0.0
    %3655 = vmatpush1.msra.mxu0 0.0
    %3656 = vmatprep.subr.mxu0 0.0
    %3657 = vmatpush1.msra.mxu0 0.0
    %3658 = vmatprep.subr.mxu0 0.0
    %3659 = vmatpush1.msra.mxu0 0.0
    %3660 = vmatprep.subr.mxu0 0.0
    %3661 = vmatpush1.msra.mxu0 0.0
    %3662 = vmatprep.subr.mxu0 0.0
    %3663 = vmatpush1.msra.mxu0 0.0
    %3664 = vmatprep.subr.mxu0 0.0
    %3665 = vmatpush1.msra.mxu0 0.0
    %3666 = vmatprep.subr.mxu0 0.0
    %3667 = vmatpush1.msra.mxu0 0.0
    %3668 = vmatprep.subr.mxu0 0.0
    %3669 = vmatpush1.msra.mxu0 0.0
    %3670 = vmatprep.subr.mxu0 0.0
    %3671 = vmatpush1.msra.mxu0 0.0
    %3672 = vmatprep.subr.mxu0 0.0
    %3673 = vmatpush1.msra.mxu0 0.0
    %3674 = vmatprep.subr.mxu0 0.0
    %3675 = vmatpush1.msra.mxu0 0.0
    %3676 = vmatprep.subr.mxu0 0.0
    %3677 = vmatpush1.msra.mxu0 0.0
    %3678 = vmatprep.subr.mxu0 0.0
    %3679 = vmatpush1.msra.mxu0 0.0
    %3680 = vmatprep.subr.mxu0 0.0
    %3681 = vmatpush1.msra.mxu0 0.0
    %3682 = vmatprep.subr.mxu0 0.0
    %3683 = vmatpush1.msra.mxu0 0.0
    %3684 = vmatprep.subr.mxu0 0.0
    %3685 = vmatpush1.msra.mxu0 0.0
    %3686 = vmatprep.subr.mxu0 0.0
    %3687 = vmatpush1.msra.mxu0 0.0
    %3688 = vmatprep.mubr.f32.mxu0 0.0
    %3689 = vmatmul.mubr.f32.gmra.mrb[0].mxu0 %v3619
    %v3690 = vpop.f32.mrb[0].mxu0
    %v3691 = vadd.f32 %v2788, %v3690
    %v3692 = vpop.f32.mrb[0].mxu0
    %3693 = vmatprep.mubr.f32.mxu0 0.0
    %3694 = vmatmul.mubr.f32.gmra.mrb[0].mxu0 %v3622
    %v3695 = vpop.f32.mrb[0].mxu0
    %v3696 = vadd.f32 %v2793, %v3695
    %v3697 = vpop.f32.mrb[0].mxu0
    %3698 = vdwg.mxu0
    %v3699 = vadd.f32 %v3691, %v3199
    %v3700 = vadd.f32 %v3696, %v3204
    %v3701 = vadd.f32 %v3699, %v3610
    %v3702 = vadd.f32 %v3700, %v3615
    %v3703 = vlaneseq
    %v3704 = vshrl.u32 %v3703, 7
    %v3705 = vsub.s32 4, %v3704
    %v3706 = vrot.slane %v81, %v3705
    %v3707 = vadd.f32 %v3701, %v3706
    %v3708 = vadd.f32 %v3702, %v3706
    %v3709 = vadd.f32 %v3707, %v1873
    %v3710 = vadd.f32 %v3708, %v1874
    %v3711 = vsel %vm91, %v3709, 0.0
    %3712 = vadd.xlane.f32.xlu0 %v3711
    %v3713 = vpop.xlane.xlu0 %3712
    %v3714 = vsel %vm91, %v3710, 0.0
    %3715 = vadd.xlane.f32.xlu0 %v3714
    %v3716 = vpop.xlane.xlu0 %3715
    %v3717 = vmul.f32 %v3713, %v1842
    %v3718 = vmul.f32 %v3716, %v1842
    %v3719 = vsub.f32 %v3709, %v3717
    %v3720 = vsub.f32 %v3710, %v3718
    %v3721 = vmul.f32 %v3719, %v3719
    %v3722 = vmul.f32 %v3720, %v3720
    %v3723 = vsel %vm91, %v3721, 0.0
    %3724 = vadd.xlane.f32.xlu0 %v3723
    %v3725 = vpop.xlane.xlu0 %3724
    %v3726 = vsel %vm91, %v3722, 0.0
    %3727 = vadd.xlane.f32.xlu0 %v3726
    %v3728 = vpop.xlane.xlu0 %3727
    %v3729 = vmul.f32 %v3725, %v1842
    %v3730 = vmul.f32 %v3728, %v1842
    %v3731 = vadd.f32 %v3729, 1e-05
    %v3732 = vadd.f32 %v3730, 1e-05
    %v3733 = vrsqrt.pop %v3731
    %v3734 = vrsqrt.pop %v3732
    %v3735 = vmul.f32 %v3719, %v3733
    %v3736 = vmul.f32 %v3720, %v3734
    %v3737 = vlaneseq
    %v3738 = vshrl.u32 %v3737, 7
    %v3739 = vsub.s32 7, %v3738
    %v3740 = vrot.slane %v81, %v3739
    %v3741 = vmul.f32 %v3735, %v3740
    %v3742 = vmul.f32 %v3736, %v3740
    %v3743 = vlaneseq
    %v3744 = vshrl.u32 %v3743, 7
    %v3745 = vsub.s32 0, %v3744
    %v3746 = vrot.slane %v82, %v3745
    %v3747 = vadd.f32 %v3741, %v3746
    %v3748 = vadd.f32 %v3742, %v3746
    %v3749 = vld [vmem:[#allocation7] sm:$0xff]
    %v3750 = vld [vmem:[#allocation7 + $0x8] sm:$0xff]
    %v3751 = vld [vmem:[#allocation7 + $0x10] sm:$0xff]
    %v3752 = vld [vmem:[#allocation7 + $0x18] sm:$0xff]
    %v3753 = vlaneseq
    %v3754 = vshrl.u32 %v3753, 7
    %v3755 = vsub.s32 1, %v3754
    %v3756 = vrot.slane %v82, %v3755
    %v3758 = vsel %vm91, %v3747, 0
    %v3761 = vsel %vm91, %v3748, 0
    %3763 = vmatprep.subr.mxu0 0.0
    %3764 = vmatpush1.msra.mxu0 %v3749
    %3765 = vmatprep.subr.mxu0 0.0
    %3766 = vmatpush1.msra.mxu0 %v3750
    %3767 = vmatprep.subr.mxu0 0.0
    %3768 = vmatpush1.msra.mxu0 %v3751
    %3769 = vmatprep.subr.mxu0 0.0
    %3770 = vmatpush1.msra.mxu0 %v3752
    %3771 = vmatprep.subr.mxu0 0.0
    %3772 = vmatpush1.msra.mxu0 0.0
    %3773 = vmatprep.subr.mxu0 0.0
    %3774 = vmatpush1.msra.mxu0 0.0
    %3775 = vmatprep.subr.mxu0 0.0
    %3776 = vmatpush1.msra.mxu0 0.0
    %3777 = vmatprep.subr.mxu0 0.0
    %3778 = vmatpush1.msra.mxu0 0.0
    %3779 = vmatprep.subr.mxu0 0.0
    %3780 = vmatpush1.msra.mxu0 0.0
    %3781 = vmatprep.subr.mxu0 0.0
    %3782 = vmatpush1.msra.mxu0 0.0
    %3783 = vmatprep.subr.mxu0 0.0
    %3784 = vmatpush1.msra.mxu0 0.0
    %3785 = vmatprep.subr.mxu0 0.0
    %3786 = vmatpush1.msra.mxu0 0.0
    %3787 = vmatprep.subr.mxu0 0.0
    %3788 = vmatpush1.msra.mxu0 0.0
    %3789 = vmatprep.subr.mxu0 0.0
    %3790 = vmatpush1.msra.mxu0 0.0
    %3791 = vmatprep.subr.mxu0 0.0
    %3792 = vmatpush1.msra.mxu0 0.0
    %3793 = vmatprep.subr.mxu0 0.0
    %3794 = vmatpush1.msra.mxu0 0.0
    %3795 = vmatprep.subr.mxu0 0.0
    %3796 = vmatpush1.msra.mxu0 0.0
    %3797 = vmatprep.subr.mxu0 0.0
    %3798 = vmatpush1.msra.mxu0 0.0
    %3799 = vmatprep.subr.mxu0 0.0
    %3800 = vmatpush1.msra.mxu0 0.0
    %3801 = vmatprep.subr.mxu0 0.0
    %3802 = vmatpush1.msra.mxu0 0.0
    %3803 = vmatprep.subr.mxu0 0.0
    %3804 = vmatpush1.msra.mxu0 0.0
    %3805 = vmatprep.subr.mxu0 0.0
    %3806 = vmatpush1.msra.mxu0 0.0
    %3807 = vmatprep.subr.mxu0 0.0
    %3808 = vmatpush1.msra.mxu0 0.0
    %3809 = vmatprep.subr.mxu0 0.0
    %3810 = vmatpush1.msra.mxu0 0.0
    %3811 = vmatprep.subr.mxu0 0.0
    %3812 = vmatpush1.msra.mxu0 0.0
    %3813 = vmatprep.subr.mxu0 0.0
    %3814 = vmatpush1.msra.mxu0 0.0
    %3815 = vmatprep.subr.mxu0 0.0
    %3816 = vmatpush1.msra.mxu0 0.0
    %3817 = vmatprep.subr.mxu0 0.0
    %3818 = vmatpush1.msra.mxu0 0.0
    %3819 = vmatprep.subr.mxu0 0.0
    %3820 = vmatpush1.msra.mxu0 0.0
    %3821 = vmatprep.subr.mxu0 0.0
    %3822 = vmatpush1.msra.mxu0 0.0
    %3823 = vmatprep.subr.mxu0 0.0
    %3824 = vmatpush1.msra.mxu0 0.0
    %3825 = vmatprep.subr.mxu0 0.0
    %3826 = vmatpush1.msra.mxu0 0.0
    %3827 = vmatprep.mubr.f32.mxu0 0.0
    %3828 = vmatmul.mubr.f32.gmra.mrb[0].mxu0 %v3758
    %v3829 = vpop.f32.mrb[0].mxu0
    %v3830 = vadd.f32 %v3756, %v3829
    %v3831 = vpop.f32.mrb[0].mxu0
    %3832 = vmatprep.mubr.f32.mxu0 0.0
    %3833 = vmatmul.mubr.f32.gmra.mrb[0].mxu0 %v3761
    %v3834 = vpop.f32.mrb[0].mxu0
    %v3835 = vadd.f32 %v3756, %v3834
    %v3836 = vpop.f32.mrb[0].mxu0
    %3837 = vdwg.mxu0
    %v3838 = vmax.f32 %v3830, 0.0
    %v3839 = vmax.f32 %v3835, 0.0
    %v3840 = vld [vmem:[%s8] sm:$0xff]
    %v3841 = vld [vmem:[%s8 + $0x8] sm:$0xff]
    %v3842 = vld [vmem:[%s8 + $0x10] sm:$0xff]
    %v3843 = vld [vmem:[%s8 + $0x18] sm:$0xff]
    %v3844 = vld [vmem:[%s8 + $0x20] sm:$0xff]
    %v3845 = vld [vmem:[%s8 + $0x28] sm:$0xff]
    %v3846 = vld [vmem:[%s8 + $0x30] sm:$0xff]
    %v3847 = vld [vmem:[%s8 + $0x38] sm:$0xff]
    %v3848 = vld [vmem:[%s8 + $0x40] sm:$0xff]
    %v3849 = vld [vmem:[%s8 + $0x48] sm:$0xff]
    %v3850 = vld [vmem:[%s8 + $0x50] sm:$0xff]
    %v3851 = vld [vmem:[%s8 + $0x58] sm:$0xff]
    %v3852 = vld [vmem:[%s8 + $0x60] sm:$0xff]
    %v3853 = vld [vmem:[%s8 + $0x68] sm:$0xff]
    %v3854 = vld [vmem:[%s8 + $0x70] sm:$0xff]
    %v3855 = vld [vmem:[%s8 + $0x78] sm:$0xff]
    %v3856 = vlaneseq
    %v3857 = vshrl.u32 %v3856, 7
    %v3858 = vsub.s32 2, %v3857
    %v3859 = vrot.slane %v82, %v3858
    %3860 = vmatprep.subr.mxu0 0.0
    %3861 = vmatpush1.msra.mxu0 %v3840
    %3862 = vmatprep.subr.mxu0 0.0
    %3863 = vmatpush1.msra.mxu0 %v3841
    %3864 = vmatprep.subr.mxu0 0.0
    %3865 = vmatpush1.msra.mxu0 %v3842
    %3866 = vmatprep.subr.mxu0 0.0
    %3867 = vmatpush1.msra.mxu0 %v3843
    %3868 = vmatprep.subr.mxu0 0.0
    %3869 = vmatpush1.msra.mxu0 %v3844
    %3870 = vmatprep.subr.mxu0 0.0
    %3871 = vmatpush1.msra.mxu0 %v3845
    %3872 = vmatprep.subr.mxu0 0.0
    %3873 = vmatpush1.msra.mxu0 %v3846
    %3874 = vmatprep.subr.mxu0 0.0
    %3875 = vmatpush1.msra.mxu0 %v3847
    %3876 = vmatprep.subr.mxu0 0.0
    %3877 = vmatpush1.msra.mxu0 %v3848
    %3878 = vmatprep.subr.mxu0 0.0
    %3879 = vmatpush1.msra.mxu0 %v3849
    %3880 = vmatprep.subr.mxu0 0.0
    %3881 = vmatpush1.msra.mxu0 %v3850
    %3882 = vmatprep.subr.mxu0 0.0
    %3883 = vmatpush1.msra.mxu0 %v3851
    %3884 = vmatprep.subr.mxu0 0.0
    %3885 = vmatpush1.msra.mxu0 %v3852
    %3886 = vmatprep.subr.mxu0 0.0
    %3887 = vmatpush1.msra.mxu0 %v3853
    %3888 = vmatprep.subr.mxu0 0.0
    %3889 = vmatpush1.msra.mxu0 %v3854
    %3890 = vmatprep.subr.mxu0 0.0
    %3891 = vmatpush1.msra.mxu0 %v3855
    %3892 = vmatprep.subr.mxu0 0.0
    %3893 = vmatpush1.msra.mxu0 0.0
    %3894 = vmatprep.subr.mxu0 0.0
    %3895 = vmatpush1.msra.mxu0 0.0
    %3896 = vmatprep.subr.mxu0 0.0
    %3897 = vmatpush1.msra.mxu0 0.0
    %3898 = vmatprep.subr.mxu0 0.0
    %3899 = vmatpush1.msra.mxu0 0.0
    %3900 = vmatprep.subr.mxu0 0.0
    %3901 = vmatpush1.msra.mxu0 0.0
    %3902 = vmatprep.subr.mxu0 0.0
    %3903 = vmatpush1.msra.mxu0 0.0
    %3904 = vmatprep.subr.mxu0 0.0
    %3905 = vmatpush1.msra.mxu0 0.0
    %3906 = vmatprep.subr.mxu0 0.0
    %3907 = vmatpush1.msra.mxu0 0.0
    %3908 = vmatprep.subr.mxu0 0.0
    %3909 = vmatpush1.msra.mxu0 0.0
    %3910 = vmatprep.subr.mxu0 0.0
    %3911 = vmatpush1.msra.mxu0 0.0
    %3912 = vmatprep.subr.mxu0 0.0
    %3913 = vmatpush1.msra.mxu0 0.0
    %3914 = vmatprep.subr.mxu0 0.0
    %3915 = vmatpush1.msra.mxu0 0.0
    %3916 = vmatprep.subr.mxu0 0.0
    %3917 = vmatpush1.msra.mxu0 0.0
    %3918 = vmatprep.subr.mxu0 0.0
    %3919 = vmatpush1.msra.mxu0 0.0
    %3920 = vmatprep.subr.mxu0 0.0
    %3921 = vmatpush1.msra.mxu0 0.0
    %3922 = vmatprep.subr.mxu0 0.0
    %3923 = vmatpush1.msra.mxu0 0.0
    %3924 = vmatprep.mubr.f32.mxu0 0.0
    %3925 = vmatmul.mubr.f32.gmra.mrb[0].mxu0 %v3838
    %v3926 = vpop.f32.mrb[0].mxu0
    %v3927 = vadd.f32 %v3859, %v3926
    %v3928 = vpop.f32.mrb[0].mxu0
    %3929 = vmatprep.mubr.f32.mxu0 0.0
    %3930 = vmatmul.mubr.f32.gmra.mrb[0].mxu0 %v3839
    %v3931 = vpop.f32.mrb[0].mxu0
    %v3932 = vadd.f32 %v3859, %v3931
    %v3933 = vpop.f32.mrb[0].mxu0
    %3934 = vdwg.mxu0
    %v3935 = vadd.f32 %v3927, %v3747
    %v3936 = vadd.f32 %v3932, %v3748
    %v3937 = vsel %vm91, %v3935, 0.0
    %3938 = vadd.xlane.f32.xlu0 %v3937
    %v3939 = vpop.xlane.xlu0 %3938
    %v3940 = vsel %vm91, %v3936, 0.0
    %3941 = vadd.xlane.f32.xlu0 %v3940
    %v3942 = vpop.xlane.xlu0 %3941
    %v3943 = vmul.f32 %v3939, %v1842
    %v3944 = vmul.f32 %v3942, %v1842
    %v3945 = vsub.f32 %v3935, %v3943
    %v3946 = vsub.f32 %v3936, %v3944
    %v3947 = vmul.f32 %v3945, %v3945
    %v3948 = vmul.f32 %v3946, %v3946
    %v3949 = vsel %vm91, %v3947, 0.0
    %3950 = vadd.xlane.f32.xlu0 %v3949
    %v3951 = vpop.xlane.xlu0 %3950
    %v3952 = vsel %vm91, %v3948, 0.0
    %3953 = vadd.xlane.f32.xlu0 %v3952
    %v3954 = vpop.xlane.xlu0 %3953
    %v3955 = vmul.f32 %v3951, %v1842
    %v3956 = vmul.f32 %v3954, %v1842
    %v3957 = vadd.f32 %v3955, 1e-05
    %v3958 = vadd.f32 %v3956, 1e-05
    %v3959 = vrsqrt.pop %v3957
    %v3960 = vrsqrt.pop %v3958
    %v3961 = vmul.f32 %v3945, %v3959
    %v3962 = vmul.f32 %v3946, %v3960
    %v3963 = vlaneseq
    %v3964 = vshrl.u32 %v3963, 7
    %v3965 = vsub.s32 3, %v3964
    %v3966 = vrot.slane %v82, %v3965
    %v3967 = vmul.f32 %v3961, %v3966
    %v3968 = vmul.f32 %v3962, %v3966
    %v3969 = vlaneseq
    %v3970 = vshrl.u32 %v3969, 7
    %v3971 = vsub.s32 4, %v3970
    %v3972 = vrot.slane %v82, %v3971
    %v3973 = vadd.f32 %v3967, %v3972
    %v3974 = vadd.f32 %v3968, %v3972
    %3975 = vst.msk [vmem:[#allocation8] sm:$0xff] %vm91, %v3973
    %3976 = vst.msk [vmem:[#allocation8 + $0x8] sm:$0xff] %vm91, %v3974
    // Predicated region
    $region54: #{tpu_custom_call.1} parent=1 // pred_check
      _
    $region55: #{tpu_custom_call.1} parent=1 // pred_check_branch
      %3978 = sbr.rel (0) target = $region57
    $region56: #{tpu_custom_call.1} parent=1 // pred_region
      %s3980 = ssub.s32 256, 256
      %3981 = vsyncadd [#allocation4], %s3980
      %s3982 = sshll.u32 [#allocation8], 4
      %s3983 = int_to_ptr.vmem [resolvable:$true] %s3982
      %3988 = dma.vmem_to_hbm [thread:$0]  %s3983, 256, %s10, [#allocation4], 128, 128, 8
    $region57: #{tpu_custom_call.1} parent=1 // pred_fallthru
      _
    // Predicated region
    $region58: #{tpu_custom_call.1} parent=1 // pred_check
      _
    $region59: #{tpu_custom_call.1} parent=1 // pred_check_branch
      %3990 = sbr.rel (0) target = $region61
    $region60: #{tpu_custom_call.1} parent=1 // pred_region
      %3991 = dma.done [#allocation4], 256
    $region61: #{tpu_custom_call.1} parent=1 // pred_fallthru
      _
    %3992 = vsyncpa [#allocation3], 1
    %3993 = vsyncpa [#allocation6], 1
    %3994 = vsyncpa [#allocation4], 1

</llo_original>
